<compile_context>
chip_gen: v5e
topology: v5e:2x2
jax: 0.10.0
libtpu: 0.0.40
codegen_flags: <defaults>
</compile_context>

<pallas_src>
import functools

import jax
import jax.numpy as jnp
from jax.experimental import pallas as pl
from jax.experimental.pallas import tpu as pltpu


def _layer_kernel(x_ref,
                  ln1_g_ref, ln1_b_ref,
                  wqkv_ref, wo_ref, bo_ref,
                  ln2_g_ref, ln2_b_ref,
                  w1_ref, b1_ref, w2_ref, b2_ref,
                  y_ref, attn_ref,
                  *, block_b, seq_len, num_heads, head_dim, eps):
    """One grid step = `block_b` batch elements flattened to M = block_b*L rows.

    x_ref: (M, D) fp32 residual stream.
    wqkv_ref: (D, 3*H*Dh) bf16 (scale folded into the Q columns).
    wo_ref: (H*Dh, D) bf16.  w1_ref: (D, 4D), w2_ref: (4D, D) bf16.
    Biases / LN params: (1, D) / (1, 4D) fp32.
    y_ref: (M, D) fp32.  attn_ref: (block_b, H, L, L) fp32 (batch-major).
    """
    L, H, Dh = seq_len, num_heads, head_dim
    HD = H * Dh
    M = block_b * L
    G = block_b * H
    cdt = wqkv_ref.dtype                       # MXU operand dtype (bf16)

    x = x_ref[...]                             # (M, D) fp32

    def layer_norm(t, g_ref, b_ref):           # fp32 VPU math, rsqrt on the EUP
        mu = jnp.mean(t, axis=-1, keepdims=True)
        tc = t - mu
        var = jnp.mean(tc * tc, axis=-1, keepdims=True)
        return tc * jax.lax.rsqrt(var + eps) * g_ref[...] + b_ref[...]

    # ---------------- attention branch ----------------
    xn1 = layer_norm(x, ln1_g_ref, ln1_b_ref).astype(cdt)               # (M, D)

    # Single packed QKV projection: full-width MXU matmul, fp32 accumulation.
    qkv = jnp.dot(xn1, wqkv_ref[...],
                  preferred_element_type=jnp.float32)                   # (M, 3*HD)

    # Rearrange (M, HD) -> (G, Dh, L) using only sublane-aligned reshapes (fp32,
    # L % 8 == 0 and Dh % 8 == 0 here) and last-two-dim XLU transposes; reshapes
    # happen BEFORE the bf16 cast so the bf16 16-row sublane pack never bites.
    def to_heads_t(t2):                         # (M, HD) fp32 -> (G, Dh, L) fp32
        t3 = t2.reshape(block_b, L, HD)         # split sublane dim (free, L%8==0)
        t3 = jnp.swapaxes(t3, -1, -2)           # (block_b, HD, L) XLU transpose
        return t3.reshape(G, Dh, L)             # split sublanes (Dh%8==0) + merge lead

    q_t = to_heads_t(qkv[:, 0:HD])              # (G, Dh, L)
    k_t = to_heads_t(qkv[:, HD:2 * HD])
    v_t = to_heads_t(qkv[:, 2 * HD:3 * HD])
    q = jnp.swapaxes(q_t, -1, -2)               # (G, L, Dh)

    # scores[g,q,k] = sum_d q[g,q,d] * k_t[g,d,k]  (canonical batched matmul).
    scores = jnp.einsum('gqd,gdk->gqk', q.astype(cdt), k_t.astype(cdt),
                        preferred_element_type=jnp.float32)             # (G, L, L)
    scores = jnp.exp(scores - jnp.max(scores, axis=-1, keepdims=True))  # reuse buffer
    attn = scores / jnp.sum(scores, axis=-1, keepdims=True)             # exact softmax
    # TODO(synk): attention_mask / causal_mask / supplied_attn mixing and
    # training-mode dropout are not plumbed (eval-mode, unmasked path).
    # TODO(synk): KV-tile the softmax (online softmax over key blocks) once
    # G*L*L*4B approaches the VMEM budget at large L.

    # Batch-major attention output: (G, L, L) -> (block_b, H, L, L) is a free
    # leading-dim split, and the out_spec block index is (b, 0, 0, 0).
    attn_ref[...] = attn.reshape(block_b, H, L, L).astype(attn_ref.dtype)

    # ctx_t[g,d,q] = sum_k v_t[g,d,k] * attn[g,q,k]  (contract-last batched matmul).
    ctx_t = jnp.einsum('gdk,gqk->gdq', v_t.astype(cdt), attn.astype(cdt),
                       preferred_element_type=jnp.float32)              # (G, Dh, L)

    # Back to (M, HD): free leading/sublane merges + one XLU transpose, then ONE
    # packed output projection with contraction depth H*Dh.
    ctx = jnp.swapaxes(ctx_t.reshape(block_b, HD, L), -1, -2).reshape(M, HD)
    attn_out = jnp.dot(ctx.astype(cdt), wo_ref[...],
                       preferred_element_type=jnp.float32) + bo_ref[...]  # (M, D)

    x = x + attn_out                                                    # residual 1

    # ---------------- MLP branch ----------------
    xn2 = layer_norm(x, ln2_g_ref, ln2_b_ref).astype(cdt)
    h = jnp.dot(xn2, w1_ref[...],
                preferred_element_type=jnp.float32) + b1_ref[...]       # (M, 4D)
    # tanh-approximate GELU (EUP tanh).
    # TODO(synk): PyTorch nn.GELU default is the exact erf form; |diff| ~ 1e-3.
    h = 0.5 * h * (1.0 + jnp.tanh(0.7978845608028654
                                  * (h + 0.044715 * h * h * h)))
    mlp = jnp.dot(h.astype(cdt), w2_ref[...],
                  preferred_element_type=jnp.float32) + b2_ref[...]
    # nn.Dropout == identity in eval mode.

    y_ref[...] = (x + mlp).astype(y_ref.dtype)                          # residual 2


def _num_tensorcores():
    """v7x has 2 TensorCores per chip; v5e/v6e have 1.  Best-effort detection."""
    try:
        kind = (getattr(jax.devices()[0], "device_kind", "") or "").lower()
        return 2 if "v7" in kind else 1
    except Exception:
        return 1


def _pick_block_b(batch, seq_len, target_rows=512, num_cores=1):
    """Largest divisor of `batch` whose row slab (block_b*L) stays ~<= target_rows.
    Only shrinks further (to expose >= num_cores grid steps) when the chip really
    has multiple TensorCores; on single-TC v5e/v6e bigger slabs amortize the
    ~0.35 us per-step overhead and fill the 256-wide MXU."""
    divisors = [d for d in range(1, batch + 1) if batch % d == 0]
    limit = max(1, target_rows // max(seq_len, 1))
    cands = [d for d in divisors if d <= limit] or [1]
    bb = max(cands)
    if num_cores > 1:
        while bb > 1 and (batch // bb) < num_cores:
            smaller = [d for d in divisors if d < bb]
            if not smaller:
                break
            bb = max(smaller)
    return bb


def _estimate_vmem_bytes(M, D, Dm, HD, block_b, H, L, Dh):
    """Rough VMEM budget: double-buffered I/O blocks + weights + live intermediates."""
    f32, bf16 = 4, 2
    G = block_b * H
    slabs = 2 * 2 * M * D * f32                         # x & y blocks, double-buffered
    attn_out = 2 * block_b * H * L * L * f32            # attention block, double-buffered
    weights = 2 * bf16 * (3 * HD * D + HD * D + 2 * D * Dm)
    small = 2 * f32 * 8 * (6 * D + Dm)                  # biases / LN params (padded)
    live = f32 * (4 * M * D + M * 3 * HD + 3 * G * Dh * L + 3 * G * L * L + M * Dm)
    est = slabs + attn_out + weights + small + live
    return int(min(max(2 * est, 8 * 2 ** 20), 64 * 2 ** 20))


def latent_transformer_layer(x, params, *, num_heads, head_dim,
                             compute_dtype=jnp.bfloat16, eps=1e-5,
                             block_b=None):
    """x: (B, L, dim) fp32.  params hold torch-layout weights (see __main__).
    Returns (y, adj_matrix): y (B, L, dim) fp32, adj_matrix (B, H, L, L) fp32."""
    B, L, D = x.shape
    H, Dh = num_heads, head_dim
    HD = H * Dh
    Dm = params['w1'].shape[0]               # MLP hidden = 4*dim

    if block_b is None:
        block_b = _pick_block_b(B, L, num_cores=_num_tensorcores())
    assert B % block_b == 0
    n_steps = B // block_b
    M = block_b * L

    scale = float(Dh) ** -0.5
    # Host-side glue: packed, pre-transposed bf16 weights; fp32 biases / LN params.
    wqkv = jnp.concatenate([params['wq'] * scale, params['wk'], params['wv']],
                           axis=0).T.astype(compute_dtype)             # (D, 3*HD)
    wo = params['wo'].T.astype(compute_dtype)                          # (HD, D)
    w1T = params['w1'].T.astype(compute_dtype)                         # (D, 4D)
    w2T = params['w2'].T.astype(compute_dtype)                         # (4D, D)
    bo = params['bo'].reshape(1, D).astype(jnp.float32)
    b1 = params['b1'].reshape(1, Dm).astype(jnp.float32)
    b2 = params['b2'].reshape(1, D).astype(jnp.float32)
    ln1_g = params['ln1_g'].reshape(1, D).astype(jnp.float32)
    ln1_b = params['ln1_b'].reshape(1, D).astype(jnp.float32)
    ln2_g = params['ln2_g'].reshape(1, D).astype(jnp.float32)
    ln2_b = params['ln2_b'].reshape(1, D).astype(jnp.float32)

    x_flat = x.reshape(B * L, D).astype(jnp.float32)                   # batch -> sublanes

    kernel = functools.partial(_layer_kernel, block_b=block_b, seq_len=L,
                               num_heads=H, head_dim=Dh, eps=eps)
    vmem_limit = _estimate_vmem_bytes(M, D, Dm, HD, block_b, H, L, Dh)

    def build_and_run(single_buffer_weights):
        wkw = dict(pipeline_mode=pl.Buffered(1)) if single_buffer_weights else {}

        def wspec(shape):                      # constant-index (replicated) weight block
            return pl.BlockSpec(shape, lambda b: (0, 0), **wkw)

        grid_spec = pltpu.PrefetchScalarGridSpec(
            num_scalar_prefetch=0,
            grid=(n_steps,),
            in_specs=[
                pl.BlockSpec((M, D), lambda b: (b, 0)),                # x slab
                wspec((1, D)), wspec((1, D)),                          # LN1 gamma/beta
                wspec((D, 3 * HD)),                                    # packed Wqkv
                wspec((HD, D)), wspec((1, D)),                         # Wo, bo
                wspec((1, D)), wspec((1, D)),                          # LN2 gamma/beta
                wspec((D, Dm)), wspec((1, Dm)),                        # W1, b1
                wspec((Dm, D)), wspec((1, D)),                         # W2, b2
            ],
            out_specs=(
                pl.BlockSpec((M, D), lambda b: (b, 0)),                       # y slab
                pl.BlockSpec((block_b, H, L, L), lambda b: (b, 0, 0, 0)),     # attention
            ),
        )
        return pl.pallas_call(
            kernel,
            out_shape=(jax.ShapeDtypeStruct((B * L, D), jnp.float32),
                       jax.ShapeDtypeStruct((B, H, L, L), jnp.float32)),
            grid_spec=grid_spec,
            compiler_params=pltpu.CompilerParams(
                dimension_semantics=("parallel",),
                vmem_limit_bytes=vmem_limit),
        )(x_flat, ln1_g, ln1_b, wqkv, wo, bo,
          ln2_g, ln2_b, w1T, b1, w2T, b2)

    try:
        # Single-buffer the constant weight blocks (halves their VMEM footprint,
        # the main lever under v7x's 64 MiB VMEM at realistic D).
        y_flat, attn = build_and_run(True)
    except Exception:
        # TODO(synk): pl.Buffered(1) not supported by this JAX build; fall back to
        # default double-buffered weight blocks (identical numerics).
        y_flat, attn = build_and_run(False)

    y = y_flat.reshape(B, L, D)               # free metadata reshape (host side)
    return y, attn                            # attn already batch-major (B, H, L, L)


def _reference(x, params, *, num_heads, head_dim, eps=1e-5):
    """Pure-JAX fp32 mirror of LatentTransformerLayerPlus.forward (eval mode)."""
    B, L, D = x.shape
    H, Dh = num_heads, head_dim

    def ln(t, g, b):
        mu = t.mean(-1, keepdims=True)
        var = ((t - mu) ** 2).mean(-1, keepdims=True)
        return (t - mu) / jnp.sqrt(var + eps) * g + b

    xn = ln(x, params['ln1_g'], params['ln1_b'])
    q = (xn @ params['wq'].T).reshape(B, L, H, Dh).transpose(0, 2, 1, 3)
    k = (xn @ params['wk'].T).reshape(B, L, H, Dh).transpose(0, 2, 1, 3)
    v = (xn @ params['wv'].T).reshape(B, L, H, Dh).transpose(0, 2, 1, 3)
    scores = jnp.einsum('bhqd,bhkd->bhqk', q, k) * (float(Dh) ** -0.5)
    attn = jax.nn.softmax(scores, axis=-1)
    ctx = jnp.einsum('bhqk,bhkd->bhqd', attn, v)
    ctx = ctx.transpose(0, 2, 1, 3).reshape(B, L, H * Dh)
    x = x + (ctx @ params['wo'].T + params['bo'])
    xn2 = ln(x, params['ln2_g'], params['ln2_b'])
    h = xn2 @ params['w1'].T + params['b1']
    h = jax.nn.gelu(h, approximate=False)        # exact erf GELU (PyTorch default)
    x = x + (h @ params['w2'].T + params['b2'])
    return x, attn


if __name__ == "__main__":
    B, L = 2, 8
    dim, num_heads, head_dim = 32, 4, 8
    HD = num_heads * head_dim
    hidden = 4 * dim

    root = jax.random.PRNGKey(0)
    ks = jax.random.split(root, 14)
    x = jax.random.normal(ks[0], (B, L, dim), dtype=jnp.float32)
    params = dict(
        ln1_g=1.0 + 0.1 * jax.random.normal(ks[1], (dim,), dtype=jnp.float32),
        ln1_b=0.05 * jax.random.normal(ks[2], (dim,), dtype=jnp.float32),
        wq=0.05 * jax.random.normal(ks[3], (HD, dim), dtype=jnp.float32),
        wk=0.05 * jax.random.normal(ks[4], (HD, dim), dtype=jnp.float32),
        wv=0.05 * jax.random.normal(ks[5], (HD, dim), dtype=jnp.float32),
        wo=0.05 * jax.random.normal(ks[6], (dim, HD), dtype=jnp.float32),
        bo=0.01 * jax.random.normal(ks[7], (dim,), dtype=jnp.float32),
        ln2_g=1.0 + 0.1 * jax.random.normal(ks[8], (dim,), dtype=jnp.float32),
        ln2_b=0.05 * jax.random.normal(ks[9], (dim,), dtype=jnp.float32),
        w1=0.05 * jax.random.normal(ks[10], (hidden, dim), dtype=jnp.float32),
        b1=0.02 * jax.random.normal(ks[11], (hidden,), dtype=jnp.float32),
        w2=0.05 * jax.random.normal(ks[12], (dim, hidden), dtype=jnp.float32),
        b2=0.02 * jax.random.normal(ks[13], (dim,), dtype=jnp.float32),
    )

    y, adj = latent_transformer_layer(x, params,
                                      num_heads=num_heads, head_dim=head_dim)
    y = jax.block_until_ready(y)
    adj = jax.block_until_ready(adj)

    y_ref, adj_ref = _reference(x, params, num_heads=num_heads, head_dim=head_dim)

    assert y.shape == (B, L, dim)
    assert adj.shape == (B, num_heads, L, L)
    # bf16 operands + fp32 accumulation + tanh-GELU => ~1e-3 level differences vs.
    # the exact fp32 reference; 2e-2 is a comfortable bound.
    assert jnp.allclose(y, y_ref, atol=2e-2, rtol=2e-2), "output mismatch vs reference"
    assert jnp.allclose(adj, adj_ref, atol=2e-2, rtol=2e-2), "attention mismatch vs reference"

    print("KERNEL_OK")
</pallas_src>

<mosaic_0001>
module attributes {stable_mosaic.version = 11 : i64} {
  func.func @_layer_kernel(%arg0: i32, %arg1: memref<16x32xf32, #tpu.memory_space<vmem>>, %arg2: memref<1x32xf32, #tpu.memory_space<vmem>>, %arg3: memref<1x32xf32, #tpu.memory_space<vmem>>, %arg4: memref<32x96xbf16, #tpu.memory_space<vmem>>, %arg5: memref<32x32xbf16, #tpu.memory_space<vmem>>, %arg6: memref<1x32xf32, #tpu.memory_space<vmem>>, %arg7: memref<1x32xf32, #tpu.memory_space<vmem>>, %arg8: memref<1x32xf32, #tpu.memory_space<vmem>>, %arg9: memref<32x128xbf16, #tpu.memory_space<vmem>>, %arg10: memref<1x128xf32, #tpu.memory_space<vmem>>, %arg11: memref<128x32xbf16, #tpu.memory_space<vmem>>, %arg12: memref<1x32xf32, #tpu.memory_space<vmem>>, %arg13: memref<16x32xf32, #tpu.memory_space<vmem>>, %arg14: memref<2x4x8x8xf32, #tpu.memory_space<vmem>>) attributes {dimension_semantics = [#tpu.dimension_semantics<parallel>], iteration_bounds = array<i64: 1>, scalar_prefetch = 0 : i64, scratch_operands = 0 : i64, tpu.core_type = #tpu.core_type<tc>, window_params = [{transform_indices = @transform_0, window_bounds = array<i64: 16, 32>}, {pipeline_mode = #tpu.pipeline_mode<synchronous>, transform_indices = @transform_1, window_bounds = array<i64: 1, 32>}, {pipeline_mode = #tpu.pipeline_mode<synchronous>, transform_indices = @transform_2, window_bounds = array<i64: 1, 32>}, {pipeline_mode = #tpu.pipeline_mode<synchronous>, transform_indices = @transform_3, window_bounds = array<i64: 32, 96>}, {pipeline_mode = #tpu.pipeline_mode<synchronous>, transform_indices = @transform_4, window_bounds = array<i64: 32, 32>}, {pipeline_mode = #tpu.pipeline_mode<synchronous>, transform_indices = @transform_5, window_bounds = array<i64: 1, 32>}, {pipeline_mode = #tpu.pipeline_mode<synchronous>, transform_indices = @transform_6, window_bounds = array<i64: 1, 32>}, {pipeline_mode = #tpu.pipeline_mode<synchronous>, transform_indices = @transform_7, window_bounds = array<i64: 1, 32>}, {pipeline_mode = #tpu.pipeline_mode<synchronous>, transform_indices = @transform_8, window_bounds = array<i64: 32, 128>}, {pipeline_mode = #tpu.pipeline_mode<synchronous>, transform_indices = @transform_9, window_bounds = array<i64: 1, 128>}, {pipeline_mode = #tpu.pipeline_mode<synchronous>, transform_indices = @transform_10, window_bounds = array<i64: 128, 32>}, {pipeline_mode = #tpu.pipeline_mode<synchronous>, transform_indices = @transform_11, window_bounds = array<i64: 1, 32>}, {transform_indices = @transform_12, window_bounds = array<i64: 16, 32>}, {transform_indices = @transform_13, window_bounds = array<i64: 2, 4, 8, 8>}]} {
    %c0 = arith.constant 0 : index
    %c0_0 = arith.constant 0 : index
    %0 = vector.load %arg1[%c0, %c0_0] : memref<16x32xf32, #tpu.memory_space<vmem>>, vector<16x32xf32>
    %cst = arith.constant dense<0.000000e+00> : vector<16xf32>
    %1 = vector.multi_reduction <add>, %0, %cst [1] : vector<16x32xf32> to vector<16xf32>
    %2 = vector.shape_cast %1 : vector<16xf32> to vector<16x1xf32>
    %cst_1 = arith.constant 3.200000e+01 : f32
    %3 = vector.broadcast %cst_1 : f32 to vector<16x1xf32>
    %4 = arith.divf %2, %3 : vector<16x1xf32>
    %5 = vector.broadcast %4 : vector<16x1xf32> to vector<16x32xf32>
    %6 = arith.subf %0, %5 : vector<16x32xf32>
    %7 = arith.mulf %6, %6 : vector<16x32xf32>
    %cst_2 = arith.constant dense<0.000000e+00> : vector<16xf32>
    %8 = vector.multi_reduction <add>, %7, %cst_2 [1] : vector<16x32xf32> to vector<16xf32>
    %9 = vector.shape_cast %8 : vector<16xf32> to vector<16x1xf32>
    %cst_3 = arith.constant 3.200000e+01 : f32
    %10 = vector.broadcast %cst_3 : f32 to vector<16x1xf32>
    %11 = arith.divf %9, %10 : vector<16x1xf32>
    %cst_4 = arith.constant 9.99999974E-6 : f32
    %12 = vector.broadcast %cst_4 : f32 to vector<16x1xf32>
    %13 = arith.addf %11, %12 : vector<16x1xf32>
    %14 = math.rsqrt %13 : vector<16x1xf32>
    %15 = vector.broadcast %14 : vector<16x1xf32> to vector<16x32xf32>
    %16 = arith.mulf %6, %15 : vector<16x32xf32>
    %c0_5 = arith.constant 0 : index
    %c0_6 = arith.constant 0 : index
    %17 = vector.load %arg2[%c0_5, %c0_6] : memref<1x32xf32, #tpu.memory_space<vmem>>, vector<1x32xf32>
    %18 = vector.broadcast %17 : vector<1x32xf32> to vector<16x32xf32>
    %19 = arith.mulf %16, %18 : vector<16x32xf32>
    %c0_7 = arith.constant 0 : index
    %c0_8 = arith.constant 0 : index
    %20 = vector.load %arg3[%c0_7, %c0_8] : memref<1x32xf32, #tpu.memory_space<vmem>>, vector<1x32xf32>
    %21 = vector.broadcast %20 : vector<1x32xf32> to vector<16x32xf32>
    %22 = arith.addf %19, %21 : vector<16x32xf32>
    %23 = arith.truncf %22 : vector<16x32xf32> to vector<16x32xbf16>
    %c0_9 = arith.constant 0 : index
    %c0_10 = arith.constant 0 : index
    %24 = vector.load %arg4[%c0_9, %c0_10] : memref<32x96xbf16, #tpu.memory_space<vmem>>, vector<32x96xbf16>
    %cst_11 = arith.constant dense<0.000000e+00> : vector<16x96xf32>
    %25 = tpu.matmul %23, %24, %cst_11 {dimension_numbers = #tpu.dot_dimension_numbers<[1], [0], [0], [1], [0, 0, 1, 1], [], []>} : vector<16x32xbf16>, vector<32x96xbf16>, vector<16x96xf32> -> vector<16x96xf32>
    %26 = vector.extract_strided_slice %25 {offsets = [0, 0], sizes = [16, 32], strides = [1, 1]} : vector<16x96xf32> to vector<16x32xf32>
    %27 = vector.shape_cast %26 : vector<16x32xf32> to vector<2x8x32xf32>
    %28 = tpu.transpose %27, [0, 2, 1] : vector<2x8x32xf32> -> vector<2x32x8xf32>
    %29 = vector.shape_cast %28 : vector<2x32x8xf32> to vector<8x8x8xf32>
    %30 = vector.extract_strided_slice %25 {offsets = [0, 32], sizes = [16, 32], strides = [1, 1]} : vector<16x96xf32> to vector<16x32xf32>
    %31 = vector.shape_cast %30 : vector<16x32xf32> to vector<2x8x32xf32>
    %32 = tpu.transpose %31, [0, 2, 1] : vector<2x8x32xf32> -> vector<2x32x8xf32>
    %33 = vector.shape_cast %32 : vector<2x32x8xf32> to vector<8x8x8xf32>
    %34 = vector.extract_strided_slice %25 {offsets = [0, 64], sizes = [16, 32], strides = [1, 1]} : vector<16x96xf32> to vector<16x32xf32>
    %35 = vector.shape_cast %34 : vector<16x32xf32> to vector<2x8x32xf32>
    %36 = tpu.transpose %35, [0, 2, 1] : vector<2x8x32xf32> -> vector<2x32x8xf32>
    %37 = vector.shape_cast %36 : vector<2x32x8xf32> to vector<8x8x8xf32>
    %38 = tpu.transpose %29, [0, 2, 1] : vector<8x8x8xf32> -> vector<8x8x8xf32>
    %39 = arith.truncf %38 : vector<8x8x8xf32> to vector<8x8x8xbf16>
    %40 = arith.truncf %33 : vector<8x8x8xf32> to vector<8x8x8xbf16>
    "tpu.trace_start"() <{level = 10 : i32, message = "gqd,gdk->gqk"}> : () -> ()
    %cst_12 = arith.constant dense<0.000000e+00> : vector<8x8x8xf32>
    %41 = tpu.matmul %39, %40, %cst_12 {dimension_numbers = #tpu.dot_dimension_numbers<[2], [1], [1], [2], [0, 0, 0, 1, 1, 2], [0], [0]>} : vector<8x8x8xbf16>, vector<8x8x8xbf16>, vector<8x8x8xf32> -> vector<8x8x8xf32>
    "tpu.trace_stop"() : () -> ()
    %cst_13 = arith.constant dense<0xFF800000> : vector<8x8xf32>
    %42 = vector.multi_reduction <maximumf>, %41, %cst_13 [2] : vector<8x8x8xf32> to vector<8x8xf32>
    %43 = vector.shape_cast %42 : vector<8x8xf32> to vector<8x8x1xf32>
    %44 = vector.broadcast %43 : vector<8x8x1xf32> to vector<8x8x8xf32>
    %45 = arith.subf %41, %44 : vector<8x8x8xf32>
    %46 = math.exp %45 : vector<8x8x8xf32>
    %cst_14 = arith.constant dense<0.000000e+00> : vector<8x8xf32>
    %47 = vector.multi_reduction <add>, %46, %cst_14 [2] : vector<8x8x8xf32> to vector<8x8xf32>
    %48 = vector.shape_cast %47 : vector<8x8xf32> to vector<8x8x1xf32>
    %49 = vector.broadcast %48 : vector<8x8x1xf32> to vector<8x8x8xf32>
    %50 = arith.divf %46, %49 : vector<8x8x8xf32>
    %51 = vector.shape_cast %50 : vector<8x8x8xf32> to vector<2x4x8x8xf32>
    %c0_15 = arith.constant 0 : index
    %c0_16 = arith.constant 0 : index
    %c0_17 = arith.constant 0 : index
    %c0_18 = arith.constant 0 : index
    %52 = vector.load %arg14[%c0_15, %c0_16, %c0_17, %c0_18] : memref<2x4x8x8xf32, #tpu.memory_space<vmem>>, vector<2x4x8x8xf32>
    tpu.vector_store %arg14[%c0_15, %c0_16, %c0_17, %c0_18], %51 {strides = array<i32>} : memref<2x4x8x8xf32, #tpu.memory_space<vmem>>, vector<2x4x8x8xf32>,
    %53 = arith.truncf %37 : vector<8x8x8xf32> to vector<8x8x8xbf16>
    %54 = arith.truncf %50 : vector<8x8x8xf32> to vector<8x8x8xbf16>
    "tpu.trace_start"() <{level = 10 : i32, message = "gdk,gqk->gdq"}> : () -> ()
    %cst_19 = arith.constant dense<0.000000e+00> : vector<8x8x8xf32>
    %55 = tpu.matmul %53, %54, %cst_19 {dimension_numbers = #tpu.dot_dimension_numbers<[2], [2], [1], [1], [0, 0, 0, 1, 1, 1], [0], [0]>} : vector<8x8x8xbf16>, vector<8x8x8xbf16>, vector<8x8x8xf32> -> vector<8x8x8xf32>
    "tpu.trace_stop"() : () -> ()
    %56 = vector.shape_cast %55 : vector<8x8x8xf32> to vector<2x32x8xf32>
    %57 = tpu.transpose %56, [0, 2, 1] : vector<2x32x8xf32> -> vector<2x8x32xf32>
    %58 = vector.shape_cast %57 : vector<2x8x32xf32> to vector<16x32xf32>
    %59 = arith.truncf %58 : vector<16x32xf32> to vector<16x32xbf16>
    %c0_20 = arith.constant 0 : index
    %c0_21 = arith.constant 0 : index
    %60 = vector.load %arg5[%c0_20, %c0_21] : memref<32x32xbf16, #tpu.memory_space<vmem>>, vector<32x32xbf16>
    %cst_22 = arith.constant dense<0.000000e+00> : vector<16x32xf32>
    %61 = tpu.matmul %59, %60, %cst_22 {dimension_numbers = #tpu.dot_dimension_numbers<[1], [0], [0], [1], [0, 0, 1, 1], [], []>} : vector<16x32xbf16>, vector<32x32xbf16>, vector<16x32xf32> -> vector<16x32xf32>
    %c0_23 = arith.constant 0 : index
    %c0_24 = arith.constant 0 : index
    %62 = vector.load %arg6[%c0_23, %c0_24] : memref<1x32xf32, #tpu.memory_space<vmem>>, vector<1x32xf32>
    %63 = vector.broadcast %62 : vector<1x32xf32> to vector<16x32xf32>
    %64 = arith.addf %61, %63 : vector<16x32xf32>
    %65 = arith.addf %0, %64 : vector<16x32xf32>
    %cst_25 = arith.constant dense<0.000000e+00> : vector<16xf32>
    %66 = vector.multi_reduction <add>, %65, %cst_25 [1] : vector<16x32xf32> to vector<16xf32>
    %67 = vector.shape_cast %66 : vector<16xf32> to vector<16x1xf32>
    %cst_26 = arith.constant 3.200000e+01 : f32
    %68 = vector.broadcast %cst_26 : f32 to vector<16x1xf32>
    %69 = arith.divf %67, %68 : vector<16x1xf32>
    %70 = vector.broadcast %69 : vector<16x1xf32> to vector<16x32xf32>
    %71 = arith.subf %65, %70 : vector<16x32xf32>
    %72 = arith.mulf %71, %71 : vector<16x32xf32>
    %cst_27 = arith.constant dense<0.000000e+00> : vector<16xf32>
    %73 = vector.multi_reduction <add>, %72, %cst_27 [1] : vector<16x32xf32> to vector<16xf32>
    %74 = vector.shape_cast %73 : vector<16xf32> to vector<16x1xf32>
    %cst_28 = arith.constant 3.200000e+01 : f32
    %75 = vector.broadcast %cst_28 : f32 to vector<16x1xf32>
    %76 = arith.divf %74, %75 : vector<16x1xf32>
    %cst_29 = arith.constant 9.99999974E-6 : f32
    %77 = vector.broadcast %cst_29 : f32 to vector<16x1xf32>
    %78 = arith.addf %76, %77 : vector<16x1xf32>
    %79 = math.rsqrt %78 : vector<16x1xf32>
    %80 = vector.broadcast %79 : vector<16x1xf32> to vector<16x32xf32>
    %81 = arith.mulf %71, %80 : vector<16x32xf32>
    %c0_30 = arith.constant 0 : index
    %c0_31 = arith.constant 0 : index
    %82 = vector.load %arg7[%c0_30, %c0_31] : memref<1x32xf32, #tpu.memory_space<vmem>>, vector<1x32xf32>
    %83 = vector.broadcast %82 : vector<1x32xf32> to vector<16x32xf32>
    %84 = arith.mulf %81, %83 : vector<16x32xf32>
    %c0_32 = arith.constant 0 : index
    %c0_33 = arith.constant 0 : index
    %85 = vector.load %arg8[%c0_32, %c0_33] : memref<1x32xf32, #tpu.memory_space<vmem>>, vector<1x32xf32>
    %86 = vector.broadcast %85 : vector<1x32xf32> to vector<16x32xf32>
    %87 = arith.addf %84, %86 : vector<16x32xf32>
    %88 = arith.truncf %87 : vector<16x32xf32> to vector<16x32xbf16>
    %c0_34 = arith.constant 0 : index
    %c0_35 = arith.constant 0 : index
    %89 = vector.load %arg9[%c0_34, %c0_35] : memref<32x128xbf16, #tpu.memory_space<vmem>>, vector<32x128xbf16>
    %cst_36 = arith.constant dense<0.000000e+00> : vector<16x128xf32>
    %90 = tpu.matmul %88, %89, %cst_36 {dimension_numbers = #tpu.dot_dimension_numbers<[1], [0], [0], [1], [0, 0, 1, 1], [], []>} : vector<16x32xbf16>, vector<32x128xbf16>, vector<16x128xf32> -> vector<16x128xf32>
    %c0_37 = arith.constant 0 : index
    %c0_38 = arith.constant 0 : index
    %91 = vector.load %arg10[%c0_37, %c0_38] : memref<1x128xf32, #tpu.memory_space<vmem>>, vector<1x128xf32>
    %92 = vector.broadcast %91 : vector<1x128xf32> to vector<16x128xf32>
    %93 = arith.addf %90, %92 : vector<16x128xf32>
    %cst_39 = arith.constant 5.000000e-01 : f32
    %94 = vector.broadcast %cst_39 : f32 to vector<16x128xf32>
    %95 = arith.mulf %94, %93 : vector<16x128xf32>
    %cst_40 = arith.constant 4.471500e-02 : f32
    %96 = vector.broadcast %cst_40 : f32 to vector<16x128xf32>
    %97 = arith.mulf %96, %93 : vector<16x128xf32>
    %98 = arith.mulf %97, %93 : vector<16x128xf32>
    %99 = arith.mulf %98, %93 : vector<16x128xf32>
    %100 = arith.addf %93, %99 : vector<16x128xf32>
    %cst_41 = arith.constant 0.797884583 : f32
    %101 = vector.broadcast %cst_41 : f32 to vector<16x128xf32>
    %102 = arith.mulf %101, %100 : vector<16x128xf32>
    %103 = math.tanh %102 : vector<16x128xf32>
    %cst_42 = arith.constant 1.000000e+00 : f32
    %104 = vector.broadcast %cst_42 : f32 to vector<16x128xf32>
    %105 = arith.addf %104, %103 : vector<16x128xf32>
    %106 = arith.mulf %95, %105 : vector<16x128xf32>
    %107 = arith.truncf %106 : vector<16x128xf32> to vector<16x128xbf16>
    %c0_43 = arith.constant 0 : index
    %c0_44 = arith.constant 0 : index
    %108 = vector.load %arg11[%c0_43, %c0_44] : memref<128x32xbf16, #tpu.memory_space<vmem>>, vector<128x32xbf16>
    %cst_45 = arith.constant dense<0.000000e+00> : vector<16x32xf32>
    %109 = tpu.matmul %107, %108, %cst_45 {dimension_numbers = #tpu.dot_dimension_numbers<[1], [0], [0], [1], [0, 0, 1, 1], [], []>} : vector<16x128xbf16>, vector<128x32xbf16>, vector<16x32xf32> -> vector<16x32xf32>
    %c0_46 = arith.constant 0 : index
    %c0_47 = arith.constant 0 : index
    %110 = vector.load %arg12[%c0_46, %c0_47] : memref<1x32xf32, #tpu.memory_space<vmem>>, vector<1x32xf32>
    %111 = vector.broadcast %110 : vector<1x32xf32> to vector<16x32xf32>
    %112 = arith.addf %109, %111 : vector<16x32xf32>
    %113 = arith.addf %65, %112 : vector<16x32xf32>
    %c0_48 = arith.constant 0 : index
    %c0_49 = arith.constant 0 : index
    %114 = vector.load %arg13[%c0_48, %c0_49] : memref<16x32xf32, #tpu.memory_space<vmem>>, vector<16x32xf32>
    tpu.vector_store %arg13[%c0_48, %c0_49], %113 {strides = array<i32>} : memref<16x32xf32, #tpu.memory_space<vmem>>, vector<16x32xf32>,
    return
  }
  func.func @transform_0(%arg0: i32) -> (i32, i32) {
    %c0_i32 = arith.constant 0 : i32
    %c0_i32_0 = arith.constant 0 : i32
    return %arg0, %c0_i32 : i32, i32
  }
  func.func @transform_1(%arg0: i32) -> (i32, i32) {
    %c0_i32 = arith.constant 0 : i32
    %c0_i32_0 = arith.constant 0 : i32
    %c0_i32_1 = arith.constant 0 : i32
    return %c0_i32, %c0_i32_0 : i32, i32
  }
  func.func @transform_2(%arg0: i32) -> (i32, i32) {
    %c0_i32 = arith.constant 0 : i32
    %c0_i32_0 = arith.constant 0 : i32
    %c0_i32_1 = arith.constant 0 : i32
    return %c0_i32, %c0_i32_0 : i32, i32
  }
  func.func @transform_3(%arg0: i32) -> (i32, i32) {
    %c0_i32 = arith.constant 0 : i32
    %c0_i32_0 = arith.constant 0 : i32
    %c0_i32_1 = arith.constant 0 : i32
    return %c0_i32, %c0_i32_0 : i32, i32
  }
  func.func @transform_4(%arg0: i32) -> (i32, i32) {
    %c0_i32 = arith.constant 0 : i32
    %c0_i32_0 = arith.constant 0 : i32
    %c0_i32_1 = arith.constant 0 : i32
    return %c0_i32, %c0_i32_0 : i32, i32
  }
  func.func @transform_5(%arg0: i32) -> (i32, i32) {
    %c0_i32 = arith.constant 0 : i32
    %c0_i32_0 = arith.constant 0 : i32
    %c0_i32_1 = arith.constant 0 : i32
    return %c0_i32, %c0_i32_0 : i32, i32
  }
  func.func @transform_6(%arg0: i32) -> (i32, i32) {
    %c0_i32 = arith.constant 0 : i32
    %c0_i32_0 = arith.constant 0 : i32
    %c0_i32_1 = arith.constant 0 : i32
    return %c0_i32, %c0_i32_0 : i32, i32
  }
  func.func @transform_7(%arg0: i32) -> (i32, i32) {
    %c0_i32 = arith.constant 0 : i32
    %c0_i32_0 = arith.constant 0 : i32
    %c0_i32_1 = arith.constant 0 : i32
    return %c0_i32, %c0_i32_0 : i32, i32
  }
  func.func @transform_8(%arg0: i32) -> (i32, i32) {
    %c0_i32 = arith.constant 0 : i32
    %c0_i32_0 = arith.constant 0 : i32
    %c0_i32_1 = arith.constant 0 : i32
    return %c0_i32, %c0_i32_0 : i32, i32
  }
  func.func @transform_9(%arg0: i32) -> (i32, i32) {
    %c0_i32 = arith.constant 0 : i32
    %c0_i32_0 = arith.constant 0 : i32
    %c0_i32_1 = arith.constant 0 : i32
    return %c0_i32, %c0_i32_0 : i32, i32
  }
  func.func @transform_10(%arg0: i32) -> (i32, i32) {
    %c0_i32 = arith.constant 0 : i32
    %c0_i32_0 = arith.constant 0 : i32
    %c0_i32_1 = arith.constant 0 : i32
    return %c0_i32, %c0_i32_0 : i32, i32
  }
  func.func @transform_11(%arg0: i32) -> (i32, i32) {
    %c0_i32 = arith.constant 0 : i32
    %c0_i32_0 = arith.constant 0 : i32
    %c0_i32_1 = arith.constant 0 : i32
    return %c0_i32, %c0_i32_0 : i32, i32
  }
  func.func @transform_12(%arg0: i32) -> (i32, i32) {
    %c0_i32 = arith.constant 0 : i32
    %c0_i32_0 = arith.constant 0 : i32
    return %arg0, %c0_i32 : i32, i32
  }
  func.func @transform_13(%arg0: i32) -> (i32, i32, i32, i32) {
    %c0_i32 = arith.constant 0 : i32
    %c0_i32_0 = arith.constant 0 : i32
    %c0_i32_1 = arith.constant 0 : i32
    %c0_i32_2 = arith.constant 0 : i32
    return %arg0, %c0_i32, %c0_i32_0, %c0_i32_1 : i32, i32, i32, i32
  }
}

module attributes {stable_mosaic.version = 11 : i64} {
  func.func @_layer_kernel(%arg0: i32, %arg1: memref<16x32xf32, #tpu.memory_space<vmem>>, %arg2: memref<1x32xf32, #tpu.memory_space<vmem>>, %arg3: memref<1x32xf32, #tpu.memory_space<vmem>>, %arg4: memref<32x96xbf16, #tpu.memory_space<vmem>>, %arg5: memref<32x32xbf16, #tpu.memory_space<vmem>>, %arg6: memref<1x32xf32, #tpu.memory_space<vmem>>, %arg7: memref<1x32xf32, #tpu.memory_space<vmem>>, %arg8: memref<1x32xf32, #tpu.memory_space<vmem>>, %arg9: memref<32x128xbf16, #tpu.memory_space<vmem>>, %arg10: memref<1x128xf32, #tpu.memory_space<vmem>>, %arg11: memref<128x32xbf16, #tpu.memory_space<vmem>>, %arg12: memref<1x32xf32, #tpu.memory_space<vmem>>, %arg13: memref<16x32xf32, #tpu.memory_space<vmem>>, %arg14: memref<2x4x8x8xf32, #tpu.memory_space<vmem>>) attributes {dimension_semantics = [#tpu.dimension_semantics<parallel>], iteration_bounds = array<i64: 1>, scalar_prefetch = 0 : i64, scratch_operands = 0 : i64, tpu.core_type = #tpu.core_type<tc>, window_params = [{transform_indices = @transform_0, window_bounds = array<i64: 16, 32>}, {pipeline_mode = #tpu.pipeline_mode<synchronous>, transform_indices = @transform_1, window_bounds = array<i64: 1, 32>}, {pipeline_mode = #tpu.pipeline_mode<synchronous>, transform_indices = @transform_2, window_bounds = array<i64: 1, 32>}, {pipeline_mode = #tpu.pipeline_mode<synchronous>, transform_indices = @transform_3, window_bounds = array<i64: 32, 96>}, {pipeline_mode = #tpu.pipeline_mode<synchronous>, transform_indices = @transform_4, window_bounds = array<i64: 32, 32>}, {pipeline_mode = #tpu.pipeline_mode<synchronous>, transform_indices = @transform_5, window_bounds = array<i64: 1, 32>}, {pipeline_mode = #tpu.pipeline_mode<synchronous>, transform_indices = @transform_6, window_bounds = array<i64: 1, 32>}, {pipeline_mode = #tpu.pipeline_mode<synchronous>, transform_indices = @transform_7, window_bounds = array<i64: 1, 32>}, {pipeline_mode = #tpu.pipeline_mode<synchronous>, transform_indices = @transform_8, window_bounds = array<i64: 32, 128>}, {pipeline_mode = #tpu.pipeline_mode<synchronous>, transform_indices = @transform_9, window_bounds = array<i64: 1, 128>}, {pipeline_mode = #tpu.pipeline_mode<synchronous>, transform_indices = @transform_10, window_bounds = array<i64: 128, 32>}, {pipeline_mode = #tpu.pipeline_mode<synchronous>, transform_indices = @transform_11, window_bounds = array<i64: 1, 32>}, {transform_indices = @transform_12, window_bounds = array<i64: 16, 32>}, {transform_indices = @transform_13, window_bounds = array<i64: 2, 4, 8, 8>}]} {
    %c0 = arith.constant 0 : index
    %c0_0 = arith.constant 0 : index
    %0 = vector.load %arg1[%c0, %c0_0] : memref<16x32xf32, #tpu.memory_space<vmem>>, vector<16x32xf32>
    %cst = arith.constant dense<0.000000e+00> : vector<16xf32>
    %1 = vector.multi_reduction <add>, %0, %cst [1] : vector<16x32xf32> to vector<16xf32>
    %2 = vector.shape_cast %1 : vector<16xf32> to vector<16x1xf32>
    %cst_1 = arith.constant 3.200000e+01 : f32
    %3 = vector.broadcast %cst_1 : f32 to vector<16x1xf32>
    %4 = arith.divf %2, %3 : vector<16x1xf32>
    %5 = vector.broadcast %4 : vector<16x1xf32> to vector<16x32xf32>
    %6 = arith.subf %0, %5 : vector<16x32xf32>
    %7 = arith.mulf %6, %6 : vector<16x32xf32>
    %cst_2 = arith.constant dense<0.000000e+00> : vector<16xf32>
    %8 = vector.multi_reduction <add>, %7, %cst_2 [1] : vector<16x32xf32> to vector<16xf32>
    %9 = vector.shape_cast %8 : vector<16xf32> to vector<16x1xf32>
    %cst_3 = arith.constant 3.200000e+01 : f32
    %10 = vector.broadcast %cst_3 : f32 to vector<16x1xf32>
    %11 = arith.divf %9, %10 : vector<16x1xf32>
    %cst_4 = arith.constant 9.99999974E-6 : f32
    %12 = vector.broadcast %cst_4 : f32 to vector<16x1xf32>
    %13 = arith.addf %11, %12 : vector<16x1xf32>
    %14 = math.rsqrt %13 : vector<16x1xf32>
    %15 = vector.broadcast %14 : vector<16x1xf32> to vector<16x32xf32>
    %16 = arith.mulf %6, %15 : vector<16x32xf32>
    %c0_5 = arith.constant 0 : index
    %c0_6 = arith.constant 0 : index
    %17 = vector.load %arg2[%c0_5, %c0_6] : memref<1x32xf32, #tpu.memory_space<vmem>>, vector<1x32xf32>
    %18 = vector.broadcast %17 : vector<1x32xf32> to vector<16x32xf32>
    %19 = arith.mulf %16, %18 : vector<16x32xf32>
    %c0_7 = arith.constant 0 : index
    %c0_8 = arith.constant 0 : index
    %20 = vector.load %arg3[%c0_7, %c0_8] : memref<1x32xf32, #tpu.memory_space<vmem>>, vector<1x32xf32>
    %21 = vector.broadcast %20 : vector<1x32xf32> to vector<16x32xf32>
    %22 = arith.addf %19, %21 : vector<16x32xf32>
    %23 = arith.truncf %22 : vector<16x32xf32> to vector<16x32xbf16>
    %c0_9 = arith.constant 0 : index
    %c0_10 = arith.constant 0 : index
    %24 = vector.load %arg4[%c0_9, %c0_10] : memref<32x96xbf16, #tpu.memory_space<vmem>>, vector<32x96xbf16>
    %cst_11 = arith.constant dense<0.000000e+00> : vector<16x96xf32>
    %25 = tpu.matmul %23, %24, %cst_11 {dimension_numbers = #tpu.dot_dimension_numbers<[1], [0], [0], [1], [0, 0, 1, 1], [], []>} : vector<16x32xbf16>, vector<32x96xbf16>, vector<16x96xf32> -> vector<16x96xf32>
    %26 = vector.extract_strided_slice %25 {offsets = [0, 0], sizes = [16, 32], strides = [1, 1]} : vector<16x96xf32> to vector<16x32xf32>
    %27 = vector.shape_cast %26 : vector<16x32xf32> to vector<2x8x32xf32>
    %28 = tpu.transpose %27, [0, 2, 1] : vector<2x8x32xf32> -> vector<2x32x8xf32>
    %29 = vector.shape_cast %28 : vector<2x32x8xf32> to vector<8x8x8xf32>
    %30 = vector.extract_strided_slice %25 {offsets = [0, 32], sizes = [16, 32], strides = [1, 1]} : vector<16x96xf32> to vector<16x32xf32>
    %31 = vector.shape_cast %30 : vector<16x32xf32> to vector<2x8x32xf32>
    %32 = tpu.transpose %31, [0, 2, 1] : vector<2x8x32xf32> -> vector<2x32x8xf32>
    %33 = vector.shape_cast %32 : vector<2x32x8xf32> to vector<8x8x8xf32>
    %34 = vector.extract_strided_slice %25 {offsets = [0, 64], sizes = [16, 32], strides = [1, 1]} : vector<16x96xf32> to vector<16x32xf32>
    %35 = vector.shape_cast %34 : vector<16x32xf32> to vector<2x8x32xf32>
    %36 = tpu.transpose %35, [0, 2, 1] : vector<2x8x32xf32> -> vector<2x32x8xf32>
    %37 = vector.shape_cast %36 : vector<2x32x8xf32> to vector<8x8x8xf32>
    %38 = tpu.transpose %29, [0, 2, 1] : vector<8x8x8xf32> -> vector<8x8x8xf32>
    %39 = arith.truncf %38 : vector<8x8x8xf32> to vector<8x8x8xbf16>
    %40 = arith.truncf %33 : vector<8x8x8xf32> to vector<8x8x8xbf16>
    "tpu.trace_start"() <{level = 10 : i32, message = "gqd,gdk->gqk"}> : () -> ()
    %cst_12 = arith.constant dense<0.000000e+00> : vector<8x8x8xf32>
    %41 = tpu.matmul %39, %40, %cst_12 {dimension_numbers = #tpu.dot_dimension_numbers<[2], [1], [1], [2], [0, 0, 0, 1, 1, 2], [0], [0]>} : vector<8x8x8xbf16>, vector<8x8x8xbf16>, vector<8x8x8xf32> -> vector<8x8x8xf32>
    "tpu.trace_stop"() : () -> ()
    %cst_13 = arith.constant dense<0xFF800000> : vector<8x8xf32>
    %42 = vector.multi_reduction <maximumf>, %41, %cst_13 [2] : vector<8x8x8xf32> to vector<8x8xf32>
    %43 = vector.shape_cast %42 : vector<8x8xf32> to vector<8x8x1xf32>
    %44 = vector.broadcast %43 : vector<8x8x1xf32> to vector<8x8x8xf32>
    %45 = arith.subf %41, %44 : vector<8x8x8xf32>
    %46 = math.exp %45 : vector<8x8x8xf32>
    %cst_14 = arith.constant dense<0.000000e+00> : vector<8x8xf32>
    %47 = vector.multi_reduction <add>, %46, %cst_14 [2] : vector<8x8x8xf32> to vector<8x8xf32>
    %48 = vector.shape_cast %47 : vector<8x8xf32> to vector<8x8x1xf32>
    %49 = vector.broadcast %48 : vector<8x8x1xf32> to vector<8x8x8xf32>
    %50 = arith.divf %46, %49 : vector<8x8x8xf32>
    %51 = vector.shape_cast %50 : vector<8x8x8xf32> to vector<2x4x8x8xf32>
    %c0_15 = arith.constant 0 : index
    %c0_16 = arith.constant 0 : index
    %c0_17 = arith.constant 0 : index
    %c0_18 = arith.constant 0 : index
    %52 = vector.load %arg14[%c0_15, %c0_16, %c0_17, %c0_18] : memref<2x4x8x8xf32, #tpu.memory_space<vmem>>, vector<2x4x8x8xf32>
    tpu.vector_store %arg14[%c0_15, %c0_16, %c0_17, %c0_18], %51 {strides = array<i32>} : memref<2x4x8x8xf32, #tpu.memory_space<vmem>>, vector<2x4x8x8xf32>,
    %53 = arith.truncf %37 : vector<8x8x8xf32> to vector<8x8x8xbf16>
    %54 = arith.truncf %50 : vector<8x8x8xf32> to vector<8x8x8xbf16>
    "tpu.trace_start"() <{level = 10 : i32, message = "gdk,gqk->gdq"}> : () -> ()
    %cst_19 = arith.constant dense<0.000000e+00> : vector<8x8x8xf32>
    %55 = tpu.matmul %53, %54, %cst_19 {dimension_numbers = #tpu.dot_dimension_numbers<[2], [2], [1], [1], [0, 0, 0, 1, 1, 1], [0], [0]>} : vector<8x8x8xbf16>, vector<8x8x8xbf16>, vector<8x8x8xf32> -> vector<8x8x8xf32>
    "tpu.trace_stop"() : () -> ()
    %56 = vector.shape_cast %55 : vector<8x8x8xf32> to vector<2x32x8xf32>
    %57 = tpu.transpose %56, [0, 2, 1] : vector<2x32x8xf32> -> vector<2x8x32xf32>
    %58 = vector.shape_cast %57 : vector<2x8x32xf32> to vector<16x32xf32>
    %59 = arith.truncf %58 : vector<16x32xf32> to vector<16x32xbf16>
    %c0_20 = arith.constant 0 : index
    %c0_21 = arith.constant 0 : index
    %60 = vector.load %arg5[%c0_20, %c0_21] : memref<32x32xbf16, #tpu.memory_space<vmem>>, vector<32x32xbf16>
    %cst_22 = arith.constant dense<0.000000e+00> : vector<16x32xf32>
    %61 = tpu.matmul %59, %60, %cst_22 {dimension_numbers = #tpu.dot_dimension_numbers<[1], [0], [0], [1], [0, 0, 1, 1], [], []>} : vector<16x32xbf16>, vector<32x32xbf16>, vector<16x32xf32> -> vector<16x32xf32>
    %c0_23 = arith.constant 0 : index
    %c0_24 = arith.constant 0 : index
    %62 = vector.load %arg6[%c0_23, %c0_24] : memref<1x32xf32, #tpu.memory_space<vmem>>, vector<1x32xf32>
    %63 = vector.broadcast %62 : vector<1x32xf32> to vector<16x32xf32>
    %64 = arith.addf %61, %63 : vector<16x32xf32>
    %65 = arith.addf %0, %64 : vector<16x32xf32>
    %cst_25 = arith.constant dense<0.000000e+00> : vector<16xf32>
    %66 = vector.multi_reduction <add>, %65, %cst_25 [1] : vector<16x32xf32> to vector<16xf32>
    %67 = vector.shape_cast %66 : vector<16xf32> to vector<16x1xf32>
    %cst_26 = arith.constant 3.200000e+01 : f32
    %68 = vector.broadcast %cst_26 : f32 to vector<16x1xf32>
    %69 = arith.divf %67, %68 : vector<16x1xf32>
    %70 = vector.broadcast %69 : vector<16x1xf32> to vector<16x32xf32>
    %71 = arith.subf %65, %70 : vector<16x32xf32>
    %72 = arith.mulf %71, %71 : vector<16x32xf32>
    %cst_27 = arith.constant dense<0.000000e+00> : vector<16xf32>
    %73 = vector.multi_reduction <add>, %72, %cst_27 [1] : vector<16x32xf32> to vector<16xf32>
    %74 = vector.shape_cast %73 : vector<16xf32> to vector<16x1xf32>
    %cst_28 = arith.constant 3.200000e+01 : f32
    %75 = vector.broadcast %cst_28 : f32 to vector<16x1xf32>
    %76 = arith.divf %74, %75 : vector<16x1xf32>
    %cst_29 = arith.constant 9.99999974E-6 : f32
    %77 = vector.broadcast %cst_29 : f32 to vector<16x1xf32>
    %78 = arith.addf %76, %77 : vector<16x1xf32>
    %79 = math.rsqrt %78 : vector<16x1xf32>
    %80 = vector.broadcast %79 : vector<16x1xf32> to vector<16x32xf32>
    %81 = arith.mulf %71, %80 : vector<16x32xf32>
    %c0_30 = arith.constant 0 : index
    %c0_31 = arith.constant 0 : index
    %82 = vector.load %arg7[%c0_30, %c0_31] : memref<1x32xf32, #tpu.memory_space<vmem>>, vector<1x32xf32>
    %83 = vector.broadcast %82 : vector<1x32xf32> to vector<16x32xf32>
    %84 = arith.mulf %81, %83 : vector<16x32xf32>
    %c0_32 = arith.constant 0 : index
    %c0_33 = arith.constant 0 : index
    %85 = vector.load %arg8[%c0_32, %c0_33] : memref<1x32xf32, #tpu.memory_space<vmem>>, vector<1x32xf32>
    %86 = vector.broadcast %85 : vector<1x32xf32> to vector<16x32xf32>
    %87 = arith.addf %84, %86 : vector<16x32xf32>
    %88 = arith.truncf %87 : vector<16x32xf32> to vector<16x32xbf16>
    %c0_34 = arith.constant 0 : index
    %c0_35 = arith.constant 0 : index
    %89 = vector.load %arg9[%c0_34, %c0_35] : memref<32x128xbf16, #tpu.memory_space<vmem>>, vector<32x128xbf16>
    %cst_36 = arith.constant dense<0.000000e+00> : vector<16x128xf32>
    %90 = tpu.matmul %88, %89, %cst_36 {dimension_numbers = #tpu.dot_dimension_numbers<[1], [0], [0], [1], [0, 0, 1, 1], [], []>} : vector<16x32xbf16>, vector<32x128xbf16>, vector<16x128xf32> -> vector<16x128xf32>
    %c0_37 = arith.constant 0 : index
    %c0_38 = arith.constant 0 : index
    %91 = vector.load %arg10[%c0_37, %c0_38] : memref<1x128xf32, #tpu.memory_space<vmem>>, vector<1x128xf32>
    %92 = vector.broadcast %91 : vector<1x128xf32> to vector<16x128xf32>
    %93 = arith.addf %90, %92 : vector<16x128xf32>
    %cst_39 = arith.constant 5.000000e-01 : f32
    %94 = vector.broadcast %cst_39 : f32 to vector<16x128xf32>
    %95 = arith.mulf %94, %93 : vector<16x128xf32>
    %cst_40 = arith.constant 4.471500e-02 : f32
    %96 = vector.broadcast %cst_40 : f32 to vector<16x128xf32>
    %97 = arith.mulf %96, %93 : vector<16x128xf32>
    %98 = arith.mulf %97, %93 : vector<16x128xf32>
    %99 = arith.mulf %98, %93 : vector<16x128xf32>
    %100 = arith.addf %93, %99 : vector<16x128xf32>
    %cst_41 = arith.constant 0.797884583 : f32
    %101 = vector.broadcast %cst_41 : f32 to vector<16x128xf32>
    %102 = arith.mulf %101, %100 : vector<16x128xf32>
    %103 = math.tanh %102 : vector<16x128xf32>
    %cst_42 = arith.constant 1.000000e+00 : f32
    %104 = vector.broadcast %cst_42 : f32 to vector<16x128xf32>
    %105 = arith.addf %104, %103 : vector<16x128xf32>
    %106 = arith.mulf %95, %105 : vector<16x128xf32>
    %107 = arith.truncf %106 : vector<16x128xf32> to vector<16x128xbf16>
    %c0_43 = arith.constant 0 : index
    %c0_44 = arith.constant 0 : index
    %108 = vector.load %arg11[%c0_43, %c0_44] : memref<128x32xbf16, #tpu.memory_space<vmem>>, vector<128x32xbf16>
    %cst_45 = arith.constant dense<0.000000e+00> : vector<16x32xf32>
    %109 = tpu.matmul %107, %108, %cst_45 {dimension_numbers = #tpu.dot_dimension_numbers<[1], [0], [0], [1], [0, 0, 1, 1], [], []>} : vector<16x128xbf16>, vector<128x32xbf16>, vector<16x32xf32> -> vector<16x32xf32>
    %c0_46 = arith.constant 0 : index
    %c0_47 = arith.constant 0 : index
    %110 = vector.load %arg12[%c0_46, %c0_47] : memref<1x32xf32, #tpu.memory_space<vmem>>, vector<1x32xf32>
    %111 = vector.broadcast %110 : vector<1x32xf32> to vector<16x32xf32>
    %112 = arith.addf %109, %111 : vector<16x32xf32>
    %113 = arith.addf %65, %112 : vector<16x32xf32>
    %c0_48 = arith.constant 0 : index
    %c0_49 = arith.constant 0 : index
    %114 = vector.load %arg13[%c0_48, %c0_49] : memref<16x32xf32, #tpu.memory_space<vmem>>, vector<16x32xf32>
    tpu.vector_store %arg13[%c0_48, %c0_49], %113 {strides = array<i32>} : memref<16x32xf32, #tpu.memory_space<vmem>>, vector<16x32xf32>,
    return
  }
  func.func @transform_0(%arg0: i32) -> (i32, i32) {
    %c0_i32 = arith.constant 0 : i32
    %c0_i32_0 = arith.constant 0 : i32
    return %arg0, %c0_i32 : i32, i32
  }
  func.func @transform_1(%arg0: i32) -> (i32, i32) {
    %c0_i32 = arith.constant 0 : i32
    %c0_i32_0 = arith.constant 0 : i32
    %c0_i32_1 = arith.constant 0 : i32
    return %c0_i32, %c0_i32_0 : i32, i32
  }
  func.func @transform_2(%arg0: i32) -> (i32, i32) {
    %c0_i32 = arith.constant 0 : i32
    %c0_i32_0 = arith.constant 0 : i32
    %c0_i32_1 = arith.constant 0 : i32
    return %c0_i32, %c0_i32_0 : i32, i32
  }
  func.func @transform_3(%arg0: i32) -> (i32, i32) {
    %c0_i32 = arith.constant 0 : i32
    %c0_i32_0 = arith.constant 0 : i32
    %c0_i32_1 = arith.constant 0 : i32
    return %c0_i32, %c0_i32_0 : i32, i32
  }
  func.func @transform_4(%arg0: i32) -> (i32, i32) {
    %c0_i32 = arith.constant 0 : i32
    %c0_i32_0 = arith.constant 0 : i32
    %c0_i32_1 = arith.constant 0 : i32
    return %c0_i32, %c0_i32_0 : i32, i32
  }
  func.func @transform_5(%arg0: i32) -> (i32, i32) {
    %c0_i32 = arith.constant 0 : i32
    %c0_i32_0 = arith.constant 0 : i32
    %c0_i32_1 = arith.constant 0 : i32
    return %c0_i32, %c0_i32_0 : i32, i32
  }
  func.func @transform_6(%arg0: i32) -> (i32, i32) {
    %c0_i32 = arith.constant 0 : i32
    %c0_i32_0 = arith.constant 0 : i32
    %c0_i32_1 = arith.constant 0 : i32
    return %c0_i32, %c0_i32_0 : i32, i32
  }
  func.func @transform_7(%arg0: i32) -> (i32, i32) {
    %c0_i32 = arith.constant 0 : i32
    %c0_i32_0 = arith.constant 0 : i32
    %c0_i32_1 = arith.constant 0 : i32
    return %c0_i32, %c0_i32_0 : i32, i32
  }
  func.func @transform_8(%arg0: i32) -> (i32, i32) {
    %c0_i32 = arith.constant 0 : i32
    %c0_i32_0 = arith.constant 0 : i32
    %c0_i32_1 = arith.constant 0 : i32
    return %c0_i32, %c0_i32_0 : i32, i32
  }
  func.func @transform_9(%arg0: i32) -> (i32, i32) {
    %c0_i32 = arith.constant 0 : i32
    %c0_i32_0 = arith.constant 0 : i32
    %c0_i32_1 = arith.constant 0 : i32
    return %c0_i32, %c0_i32_0 : i32, i32
  }
  func.func @transform_10(%arg0: i32) -> (i32, i32) {
    %c0_i32 = arith.constant 0 : i32
    %c0_i32_0 = arith.constant 0 : i32
    %c0_i32_1 = arith.constant 0 : i32
    return %c0_i32, %c0_i32_0 : i32, i32
  }
  func.func @transform_11(%arg0: i32) -> (i32, i32) {
    %c0_i32 = arith.constant 0 : i32
    %c0_i32_0 = arith.constant 0 : i32
    %c0_i32_1 = arith.constant 0 : i32
    return %c0_i32, %c0_i32_0 : i32, i32
  }
  func.func @transform_12(%arg0: i32) -> (i32, i32) {
    %c0_i32 = arith.constant 0 : i32
    %c0_i32_0 = arith.constant 0 : i32
    return %arg0, %c0_i32 : i32, i32
  }
  func.func @transform_13(%arg0: i32) -> (i32, i32, i32, i32) {
    %c0_i32 = arith.constant 0 : i32
    %c0_i32_0 = arith.constant 0 : i32
    %c0_i32_1 = arith.constant 0 : i32
    %c0_i32_2 = arith.constant 0 : i32
    return %arg0, %c0_i32, %c0_i32_0, %c0_i32_1 : i32, i32, i32, i32
  }
}

</mosaic_0001>

<llo_original>
// kernel: tpu_custom_call.1
$region0: #{tpu_custom_call.1}
  #allocation0 [shape = 'u32[]', space=smem, size = 0x4, offset = 0x4, fixed_abs, tag = 'smem constant byte address 0x4 - core index']
  #allocation1 [shape = 'u32[72,128]{1,0:T(1,128)}', space=vmem, size = 0x9000, scoped, tag = 'internal scratch']
  %s0 = inlined_call_operand.vmem [shape: f32[16,32], index: 0, kind: input, shape index: {}]
  %s1 = inlined_call_operand.vmem [shape: f32[1,32], index: 1, kind: input, shape index: {}]
  %s2 = inlined_call_operand.vmem [shape: f32[1,32], index: 2, kind: input, shape index: {}]
  %s3 = inlined_call_operand.vmem [shape: bf16[32,96], index: 3, kind: input, shape index: {}]
  %s4 = inlined_call_operand.vmem [shape: bf16[32,32], index: 4, kind: input, shape index: {}]
  %s5 = inlined_call_operand.vmem [shape: f32[1,32], index: 5, kind: input, shape index: {}]
  %s6 = inlined_call_operand.vmem [shape: f32[1,32], index: 6, kind: input, shape index: {}]
  %s7 = inlined_call_operand.vmem [shape: f32[1,32], index: 7, kind: input, shape index: {}]
  %s8 = inlined_call_operand.vmem [shape: bf16[32,128], index: 8, kind: input, shape index: {}]
  %s9 = inlined_call_operand.vmem [shape: f32[1,128], index: 9, kind: input, shape index: {}]
  %s10 = inlined_call_operand.vmem [shape: bf16[128,32], index: 10, kind: input, shape index: {}]
  %s11 = inlined_call_operand.vmem [shape: f32[1,32], index: 11, kind: input, shape index: {}]
  %s12 = inlined_call_operand.hbm [shape: f32[16,32], index: 12, kind: output, shape index: {0}]
  %s13 = inlined_call_operand.hbm [shape: f32[2,4,8,8], index: 13, kind: output, shape index: {1}]
  %14 = xla_tuple %s12, %s13
  %s15 = sld [smem:[#allocation0]]
  $region66: #{tpu_custom_call.1} parent=0
    _
  %s17 = ssub.s32 1, %s15
  %s18 = scalar_select 0, %s17, %s15
  $region1: #{tpu_custom_call.1} parent=0
    #allocation2 [shape = 'u8[8192]{0}', space=vmem, size = 0x2000, scoped, tag = 'output window, operand 0, single buffered']
    #allocation3 [shape = 's32[1]{0}', space=sflag, size = 0x4, scoped, tag = 'scoped memory for tpu_custom_call.1']
    #allocation4 [shape = 'u8[32768]{0}', space=vmem, size = 0x8000, scoped, tag = 'output window, operand 1, single buffered']
    #allocation5 [shape = 's32[1]{0}', space=sflag, size = 0x4, scoped, tag = 'scoped memory for tpu_custom_call.1']
    %19 = vsyncpa [#allocation3], 0
    %20 = vsyncpa [#allocation5], 0
    // Predicated region
    $region2: #{tpu_custom_call.1} parent=1 // pred_check
      _
    $region3: #{tpu_custom_call.1} parent=1 // pred_check_branch
      %22 = sbr.rel (0) target = $region5
    $region4: #{tpu_custom_call.1} parent=1 // pred_region
      _
    $region5: #{tpu_custom_call.1} parent=1 // pred_fallthru
      _
    // Predicated region
    $region6: #{tpu_custom_call.1} parent=1 // pred_check
      _
    $region7: #{tpu_custom_call.1} parent=1 // pred_check_branch
      %24 = sbr.rel (0) target = $region9
    $region8: #{tpu_custom_call.1} parent=1 // pred_region
      _
    $region9: #{tpu_custom_call.1} parent=1 // pred_fallthru
      _
    // Predicated region
    $region10: #{tpu_custom_call.1} parent=1 // pred_check
      _
    $region11: #{tpu_custom_call.1} parent=1 // pred_check_branch
      %26 = sbr.rel (0) target = $region13
    $region12: #{tpu_custom_call.1} parent=1 // pred_region
      _
    $region13: #{tpu_custom_call.1} parent=1 // pred_fallthru
      _
    // Predicated region
    $region14: #{tpu_custom_call.1} parent=1 // pred_check
      _
    $region15: #{tpu_custom_call.1} parent=1 // pred_check_branch
      %28 = sbr.rel (0) target = $region17
    $region16: #{tpu_custom_call.1} parent=1 // pred_region
      _
    $region17: #{tpu_custom_call.1} parent=1 // pred_fallthru
      _
    // Predicated region
    $region18: #{tpu_custom_call.1} parent=1 // pred_check
      _
    $region19: #{tpu_custom_call.1} parent=1 // pred_check_branch
      %30 = sbr.rel (0) target = $region21
    $region20: #{tpu_custom_call.1} parent=1 // pred_region
      _
    $region21: #{tpu_custom_call.1} parent=1 // pred_fallthru
      _
    // Predicated region
    $region22: #{tpu_custom_call.1} parent=1 // pred_check
      _
    $region23: #{tpu_custom_call.1} parent=1 // pred_check_branch
      %32 = sbr.rel (0) target = $region25
    $region24: #{tpu_custom_call.1} parent=1 // pred_region
      _
    $region25: #{tpu_custom_call.1} parent=1 // pred_fallthru
      _
    // Predicated region
    $region26: #{tpu_custom_call.1} parent=1 // pred_check
      _
    $region27: #{tpu_custom_call.1} parent=1 // pred_check_branch
      %34 = sbr.rel (0) target = $region29
    $region28: #{tpu_custom_call.1} parent=1 // pred_region
      _
    $region29: #{tpu_custom_call.1} parent=1 // pred_fallthru
      _
    // Predicated region
    $region30: #{tpu_custom_call.1} parent=1 // pred_check
      _
    $region31: #{tpu_custom_call.1} parent=1 // pred_check_branch
      %36 = sbr.rel (0) target = $region33
    $region32: #{tpu_custom_call.1} parent=1 // pred_region
      _
    $region33: #{tpu_custom_call.1} parent=1 // pred_fallthru
      _
    // Predicated region
    $region34: #{tpu_custom_call.1} parent=1 // pred_check
      _
    $region35: #{tpu_custom_call.1} parent=1 // pred_check_branch
      %38 = sbr.rel (0) target = $region37
    $region36: #{tpu_custom_call.1} parent=1 // pred_region
      _
    $region37: #{tpu_custom_call.1} parent=1 // pred_fallthru
      _
    // Predicated region
    $region38: #{tpu_custom_call.1} parent=1 // pred_check
      _
    $region39: #{tpu_custom_call.1} parent=1 // pred_check_branch
      %40 = sbr.rel (0) target = $region41
    $region40: #{tpu_custom_call.1} parent=1 // pred_region
      _
    $region41: #{tpu_custom_call.1} parent=1 // pred_fallthru
      _
    // Predicated region
    $region42: #{tpu_custom_call.1} parent=1 // pred_check
      _
    $region43: #{tpu_custom_call.1} parent=1 // pred_check_branch
      %42 = sbr.rel (0) target = $region45
    $region44: #{tpu_custom_call.1} parent=1 // pred_region
      _
    $region45: #{tpu_custom_call.1} parent=1 // pred_fallthru
      _
    // Predicated region
    $region46: #{tpu_custom_call.1} parent=1 // pred_check
      _
    $region47: #{tpu_custom_call.1} parent=1 // pred_check_branch
      %44 = sbr.rel (0) target = $region49
    $region48: #{tpu_custom_call.1} parent=1 // pred_region
      _
    $region49: #{tpu_custom_call.1} parent=1 // pred_fallthru
      _
    %v46 = vld [vmem:[%s0] sm:$0xff]
    %v47 = vld [vmem:[%s0 + $0x8] sm:$0xff]
    %vm48 = vcmask 261120
    %v49 = vsel %vm48, %v46, 0.0
    %50 = vadd.xlane.f32.xlu0 %v49
    %v51 = vpop.xlane.xlu0 %50
    %v52 = vsel %vm48, %v47, 0.0
    %53 = vadd.xlane.f32.xlu0 %v52
    %v54 = vpop.xlane.xlu0 %53
    %v55 = vrcp.pop 32.0
    %v56 = vmul.f32 32.0, %v55
    %v57 = vsub.f32 1.0, %v56
    %v58 = vmul.f32 %v55, %v57
    %v59 = vadd.f32 %v55, %v58
    %vm60 = vweird.f32 %v55
    %v61 = vsel %vm60, %v55, %v59
    %v62 = vmul.f32 %v51, %v61
    %v63 = vmul.f32 %v54, %v61
    %v64 = vsub.f32 %v46, %v62
    %v65 = vsub.f32 %v47, %v63
    %v66 = vmul.f32 %v64, %v64
    %v67 = vmul.f32 %v65, %v65
    %v68 = vsel %vm48, %v66, 0.0
    %69 = vadd.xlane.f32.xlu0 %v68
    %v70 = vpop.xlane.xlu0 %69
    %v71 = vsel %vm48, %v67, 0.0
    %72 = vadd.xlane.f32.xlu0 %v71
    %v73 = vpop.xlane.xlu0 %72
    %v74 = vmul.f32 %v70, %v61
    %v75 = vmul.f32 %v73, %v61
    %v76 = vadd.f32 %v74, 1e-05
    %v77 = vadd.f32 %v75, 1e-05
    %v78 = vrsqrt.pop %v76
    %v79 = vmul.f32 %v78, %v76
    %v80 = vmul.f32 %v79, %v78
    %v81 = vmul.f32 0.5, %v80
    %v82 = vsub.f32 1.5, %v81
    %v83 = vmul.f32 %v78, %v82
    %vm84 = vweird.f32 %v76
    %vm85 = vweird.f32 %v78
    %vm86 = vmor %vm84, %vm85
    %v87 = vsel %vm86, %v78, %v83
    %v88 = vrsqrt.pop %v77
    %v89 = vmul.f32 %v88, %v77
    %v90 = vmul.f32 %v89, %v88
    %v91 = vmul.f32 0.5, %v90
    %v92 = vsub.f32 1.5, %v91
    %v93 = vmul.f32 %v88, %v92
    %vm94 = vweird.f32 %v77
    %vm95 = vweird.f32 %v88
    %vm96 = vmor %vm94, %vm95
    %v97 = vsel %vm96, %v88, %v93
    %v98 = vmul.f32 %v64, %v87
    %v99 = vmul.f32 %v65, %v97
    %v100 = vld [vmem:[%s1] sm:$0x1]
    %v102 = vperm.slane %v100, 0
    %v104 = vmul.f32 %v98, %v102
    %v105 = vmul.f32 %v99, %v102
    %v106 = vld [vmem:[%s2] sm:$0x1]
    %v108 = vperm.slane %v106, 0
    %v110 = vadd.f32 %v104, %v108
    %v111 = vadd.f32 %v105, %v108
    %v112 = vpack.c.bf16 %v111, %v110
    %v113 = vld [vmem:[%s3] sm:$0xf]
    %v114 = vld [vmem:[%s3 + $0x4] sm:$0xf]
    %v115 = vld [vmem:[%s3 + $0x8] sm:$0xf]
    %v116 = vld [vmem:[%s3 + $0xc] sm:$0xf]
    %v121 = vunpack.c.l.b16 %v113
    %v122 = vunpack.c.l.b16 %v114
    %v123 = vunpack.c.l.b16 %v115
    %v124 = vunpack.c.l.b16 %v116
    %v125 = vpack.c.b16 %v122, %v121
    %v126 = vpack.c.b16 %v124, %v123
    %v130 = vsel %vm48, %v112, 0
    %132 = vmatpush.bf16.msra.mxu0 0
    %133 = vmatpush.bf16.msra.mxu0 0
    %134 = vmatpush.bf16.msra.mxu0 0
    %135 = vmatpush.bf16.msra.mxu0 0
    %136 = vmatpush.bf16.msra.mxu0 0
    %137 = vmatpush.bf16.msra.mxu0 0
    %138 = vmatpush.bf16.msra.mxu0 %v126
    %139 = vmatpush.bf16.msra.mxu0 %v125
    %140 = vmatmul.bf16.gmra.mxu0 %v130
    %v141 = vpop.f32.mrf.mxu0
    %v142 = vadd.f32 0.0, %v141
    %v143 = vpop.f32.mrf.mxu0
    %v144 = vadd.f32 0.0, %v143
    %145 = vdwg.mxu0
    %146 = vxpose.xlu0.b32.start [1/16] %v142, 128
    %147 = vxpose.xlu0.b32.cont [2/16] 0.0, 128
    %148 = vxpose.xlu0.b32.cont [3/16] 0.0, 128
    %149 = vxpose.xlu0.b32.cont [4/16] 0.0, 128
    %150 = vxpose.xlu0.b32.cont [5/16] 0.0, 128
    %151 = vxpose.xlu0.b32.cont [6/16] 0.0, 128
    %152 = vxpose.xlu0.b32.cont [7/16] 0.0, 128
    %153 = vxpose.xlu0.b32.cont [8/16] 0.0, 128
    %154 = vxpose.xlu0.b32.cont [9/16] 0.0, 128
    %155 = vxpose.xlu0.b32.cont [10/16] 0.0, 128
    %156 = vxpose.xlu0.b32.cont [11/16] 0.0, 128
    %157 = vxpose.xlu0.b32.cont [12/16] 0.0, 128
    %158 = vxpose.xlu0.b32.cont [13/16] 0.0, 128
    %159 = vxpose.xlu0.b32.cont [14/16] 0.0, 128
    %160 = vxpose.xlu0.b32.cont [15/16] 0.0, 128
    %161 = vxpose.xlu0.b32.end [16/16] 0.0, 128
    %v162 = vpop.trf.xlu0
    %v163 = vpop.trf.xlu0
    %v164 = vpop.trf.xlu0
    %v165 = vpop.trf.xlu0
    %v166 = vpop.trf.xlu0
    %v167 = vpop.trf.xlu0
    %v168 = vpop.trf.xlu0
    %v169 = vpop.trf.xlu0
    %v170 = vpop.trf.xlu0
    %v171 = vpop.trf.xlu0
    %v172 = vpop.trf.xlu0
    %v173 = vpop.trf.xlu0
    %v174 = vpop.trf.xlu0
    %v175 = vpop.trf.xlu0
    %v176 = vpop.trf.xlu0
    %v177 = vpop.trf.xlu0
    %178 = vxpose.xlu0.b32.start [1/16] %v144, 128
    %179 = vxpose.xlu0.b32.cont [2/16] 0.0, 128
    %180 = vxpose.xlu0.b32.cont [3/16] 0.0, 128
    %181 = vxpose.xlu0.b32.cont [4/16] 0.0, 128
    %182 = vxpose.xlu0.b32.cont [5/16] 0.0, 128
    %183 = vxpose.xlu0.b32.cont [6/16] 0.0, 128
    %184 = vxpose.xlu0.b32.cont [7/16] 0.0, 128
    %185 = vxpose.xlu0.b32.cont [8/16] 0.0, 128
    %186 = vxpose.xlu0.b32.cont [9/16] 0.0, 128
    %187 = vxpose.xlu0.b32.cont [10/16] 0.0, 128
    %188 = vxpose.xlu0.b32.cont [11/16] 0.0, 128
    %189 = vxpose.xlu0.b32.cont [12/16] 0.0, 128
    %190 = vxpose.xlu0.b32.cont [13/16] 0.0, 128
    %191 = vxpose.xlu0.b32.cont [14/16] 0.0, 128
    %192 = vxpose.xlu0.b32.cont [15/16] 0.0, 128
    %193 = vxpose.xlu0.b32.end [16/16] 0.0, 128
    %v194 = vpop.trf.xlu0
    %v195 = vpop.trf.xlu0
    %v196 = vpop.trf.xlu0
    %v197 = vpop.trf.xlu0
    %v198 = vpop.trf.xlu0
    %v199 = vpop.trf.xlu0
    %v200 = vpop.trf.xlu0
    %v201 = vpop.trf.xlu0
    %v202 = vpop.trf.xlu0
    %v203 = vpop.trf.xlu0
    %v204 = vpop.trf.xlu0
    %v205 = vpop.trf.xlu0
    %v206 = vpop.trf.xlu0
    %v207 = vpop.trf.xlu0
    %v208 = vpop.trf.xlu0
    %v209 = vpop.trf.xlu0
    %212 = vrot.lane.b32.xlu0 %v142, 96
    %v213 = vpop.permute.xlu0 %212
    %214 = vrot.lane.b32.xlu0 %v144, 96
    %v215 = vpop.permute.xlu0 %214
    %218 = vxpose.xlu0.b32.start [1/16] %v213, 128
    %219 = vxpose.xlu0.b32.cont [2/16] 0.0, 128
    %220 = vxpose.xlu0.b32.cont [3/16] 0.0, 128
    %221 = vxpose.xlu0.b32.cont [4/16] 0.0, 128
    %222 = vxpose.xlu0.b32.cont [5/16] 0.0, 128
    %223 = vxpose.xlu0.b32.cont [6/16] 0.0, 128
    %224 = vxpose.xlu0.b32.cont [7/16] 0.0, 128
    %225 = vxpose.xlu0.b32.cont [8/16] 0.0, 128
    %226 = vxpose.xlu0.b32.cont [9/16] 0.0, 128
    %227 = vxpose.xlu0.b32.cont [10/16] 0.0, 128
    %228 = vxpose.xlu0.b32.cont [11/16] 0.0, 128
    %229 = vxpose.xlu0.b32.cont [12/16] 0.0, 128
    %230 = vxpose.xlu0.b32.cont [13/16] 0.0, 128
    %231 = vxpose.xlu0.b32.cont [14/16] 0.0, 128
    %232 = vxpose.xlu0.b32.cont [15/16] 0.0, 128
    %233 = vxpose.xlu0.b32.end [16/16] 0.0, 128
    %v234 = vpop.trf.xlu0
    %v235 = vpop.trf.xlu0
    %v236 = vpop.trf.xlu0
    %v237 = vpop.trf.xlu0
    %v238 = vpop.trf.xlu0
    %v239 = vpop.trf.xlu0
    %v240 = vpop.trf.xlu0
    %v241 = vpop.trf.xlu0
    %v242 = vpop.trf.xlu0
    %v243 = vpop.trf.xlu0
    %v244 = vpop.trf.xlu0
    %v245 = vpop.trf.xlu0
    %v246 = vpop.trf.xlu0
    %v247 = vpop.trf.xlu0
    %v248 = vpop.trf.xlu0
    %v249 = vpop.trf.xlu0
    %250 = vxpose.xlu0.b32.start [1/16] %v215, 128
    %251 = vxpose.xlu0.b32.cont [2/16] 0.0, 128
    %252 = vxpose.xlu0.b32.cont [3/16] 0.0, 128
    %253 = vxpose.xlu0.b32.cont [4/16] 0.0, 128
    %254 = vxpose.xlu0.b32.cont [5/16] 0.0, 128
    %255 = vxpose.xlu0.b32.cont [6/16] 0.0, 128
    %256 = vxpose.xlu0.b32.cont [7/16] 0.0, 128
    %257 = vxpose.xlu0.b32.cont [8/16] 0.0, 128
    %258 = vxpose.xlu0.b32.cont [9/16] 0.0, 128
    %259 = vxpose.xlu0.b32.cont [10/16] 0.0, 128
    %260 = vxpose.xlu0.b32.cont [11/16] 0.0, 128
    %261 = vxpose.xlu0.b32.cont [12/16] 0.0, 128
    %262 = vxpose.xlu0.b32.cont [13/16] 0.0, 128
    %263 = vxpose.xlu0.b32.cont [14/16] 0.0, 128
    %264 = vxpose.xlu0.b32.cont [15/16] 0.0, 128
    %265 = vxpose.xlu0.b32.end [16/16] 0.0, 128
    %v266 = vpop.trf.xlu0
    %v267 = vpop.trf.xlu0
    %v268 = vpop.trf.xlu0
    %v269 = vpop.trf.xlu0
    %v270 = vpop.trf.xlu0
    %v271 = vpop.trf.xlu0
    %v272 = vpop.trf.xlu0
    %v273 = vpop.trf.xlu0
    %v274 = vpop.trf.xlu0
    %v275 = vpop.trf.xlu0
    %v276 = vpop.trf.xlu0
    %v277 = vpop.trf.xlu0
    %v278 = vpop.trf.xlu0
    %v279 = vpop.trf.xlu0
    %v280 = vpop.trf.xlu0
    %v281 = vpop.trf.xlu0
    %282 = vrot.lane.b32.xlu0 %v142, 64
    %v283 = vpop.permute.xlu0 %282
    %284 = vrot.lane.b32.xlu0 %v144, 64
    %v285 = vpop.permute.xlu0 %284
    %288 = vxpose.xlu0.b32.start [1/16] %v283, 128
    %289 = vxpose.xlu0.b32.cont [2/16] 0.0, 128
    %290 = vxpose.xlu0.b32.cont [3/16] 0.0, 128
    %291 = vxpose.xlu0.b32.cont [4/16] 0.0, 128
    %292 = vxpose.xlu0.b32.cont [5/16] 0.0, 128
    %293 = vxpose.xlu0.b32.cont [6/16] 0.0, 128
    %294 = vxpose.xlu0.b32.cont [7/16] 0.0, 128
    %295 = vxpose.xlu0.b32.cont [8/16] 0.0, 128
    %296 = vxpose.xlu0.b32.cont [9/16] 0.0, 128
    %297 = vxpose.xlu0.b32.cont [10/16] 0.0, 128
    %298 = vxpose.xlu0.b32.cont [11/16] 0.0, 128
    %299 = vxpose.xlu0.b32.cont [12/16] 0.0, 128
    %300 = vxpose.xlu0.b32.cont [13/16] 0.0, 128
    %301 = vxpose.xlu0.b32.cont [14/16] 0.0, 128
    %302 = vxpose.xlu0.b32.cont [15/16] 0.0, 128
    %303 = vxpose.xlu0.b32.end [16/16] 0.0, 128
    %v304 = vpop.trf.xlu0
    %v305 = vpop.trf.xlu0
    %v306 = vpop.trf.xlu0
    %v307 = vpop.trf.xlu0
    %v308 = vpop.trf.xlu0
    %v309 = vpop.trf.xlu0
    %v310 = vpop.trf.xlu0
    %v311 = vpop.trf.xlu0
    %v312 = vpop.trf.xlu0
    %v313 = vpop.trf.xlu0
    %v314 = vpop.trf.xlu0
    %v315 = vpop.trf.xlu0
    %v316 = vpop.trf.xlu0
    %v317 = vpop.trf.xlu0
    %v318 = vpop.trf.xlu0
    %v319 = vpop.trf.xlu0
    %320 = vxpose.xlu0.b32.start [1/16] %v285, 128
    %321 = vxpose.xlu0.b32.cont [2/16] 0.0, 128
    %322 = vxpose.xlu0.b32.cont [3/16] 0.0, 128
    %323 = vxpose.xlu0.b32.cont [4/16] 0.0, 128
    %324 = vxpose.xlu0.b32.cont [5/16] 0.0, 128
    %325 = vxpose.xlu0.b32.cont [6/16] 0.0, 128
    %326 = vxpose.xlu0.b32.cont [7/16] 0.0, 128
    %327 = vxpose.xlu0.b32.cont [8/16] 0.0, 128
    %328 = vxpose.xlu0.b32.cont [9/16] 0.0, 128
    %329 = vxpose.xlu0.b32.cont [10/16] 0.0, 128
    %330 = vxpose.xlu0.b32.cont [11/16] 0.0, 128
    %331 = vxpose.xlu0.b32.cont [12/16] 0.0, 128
    %332 = vxpose.xlu0.b32.cont [13/16] 0.0, 128
    %333 = vxpose.xlu0.b32.cont [14/16] 0.0, 128
    %334 = vxpose.xlu0.b32.cont [15/16] 0.0, 128
    %335 = vxpose.xlu0.b32.end [16/16] 0.0, 128
    %v336 = vpop.trf.xlu0
    %v337 = vpop.trf.xlu0
    %v338 = vpop.trf.xlu0
    %v339 = vpop.trf.xlu0
    %v340 = vpop.trf.xlu0
    %v341 = vpop.trf.xlu0
    %v342 = vpop.trf.xlu0
    %v343 = vpop.trf.xlu0
    %v344 = vpop.trf.xlu0
    %v345 = vpop.trf.xlu0
    %v346 = vpop.trf.xlu0
    %v347 = vpop.trf.xlu0
    %v348 = vpop.trf.xlu0
    %v349 = vpop.trf.xlu0
    %v350 = vpop.trf.xlu0
    %v351 = vpop.trf.xlu0
    %352 = vxpose.xlu0.b32.start [1/16] %v162, 128
    %353 = vxpose.xlu0.b32.cont [2/16] 0.0, 128
    %354 = vxpose.xlu0.b32.cont [3/16] 0.0, 128
    %355 = vxpose.xlu0.b32.cont [4/16] 0.0, 128
    %356 = vxpose.xlu0.b32.cont [5/16] 0.0, 128
    %357 = vxpose.xlu0.b32.cont [6/16] 0.0, 128
    %358 = vxpose.xlu0.b32.cont [7/16] 0.0, 128
    %359 = vxpose.xlu0.b32.cont [8/16] 0.0, 128
    %360 = vxpose.xlu0.b32.cont [9/16] 0.0, 128
    %361 = vxpose.xlu0.b32.cont [10/16] 0.0, 128
    %362 = vxpose.xlu0.b32.cont [11/16] 0.0, 128
    %363 = vxpose.xlu0.b32.cont [12/16] 0.0, 128
    %364 = vxpose.xlu0.b32.cont [13/16] 0.0, 128
    %365 = vxpose.xlu0.b32.cont [14/16] 0.0, 128
    %366 = vxpose.xlu0.b32.cont [15/16] 0.0, 128
    %367 = vxpose.xlu0.b32.end [16/16] 0.0, 128
    %v368 = vpop.trf.xlu0
    %v369 = vpop.trf.xlu0
    %v370 = vpop.trf.xlu0
    %v371 = vpop.trf.xlu0
    %v372 = vpop.trf.xlu0
    %v373 = vpop.trf.xlu0
    %v374 = vpop.trf.xlu0
    %v375 = vpop.trf.xlu0
    %v376 = vpop.trf.xlu0
    %v377 = vpop.trf.xlu0
    %v378 = vpop.trf.xlu0
    %v379 = vpop.trf.xlu0
    %v380 = vpop.trf.xlu0
    %v381 = vpop.trf.xlu0
    %v382 = vpop.trf.xlu0
    %v383 = vpop.trf.xlu0
    %384 = vxpose.xlu0.b32.start [1/16] %v163, 128
    %385 = vxpose.xlu0.b32.cont [2/16] 0.0, 128
    %386 = vxpose.xlu0.b32.cont [3/16] 0.0, 128
    %387 = vxpose.xlu0.b32.cont [4/16] 0.0, 128
    %388 = vxpose.xlu0.b32.cont [5/16] 0.0, 128
    %389 = vxpose.xlu0.b32.cont [6/16] 0.0, 128
    %390 = vxpose.xlu0.b32.cont [7/16] 0.0, 128
    %391 = vxpose.xlu0.b32.cont [8/16] 0.0, 128
    %392 = vxpose.xlu0.b32.cont [9/16] 0.0, 128
    %393 = vxpose.xlu0.b32.cont [10/16] 0.0, 128
    %394 = vxpose.xlu0.b32.cont [11/16] 0.0, 128
    %395 = vxpose.xlu0.b32.cont [12/16] 0.0, 128
    %396 = vxpose.xlu0.b32.cont [13/16] 0.0, 128
    %397 = vxpose.xlu0.b32.cont [14/16] 0.0, 128
    %398 = vxpose.xlu0.b32.cont [15/16] 0.0, 128
    %399 = vxpose.xlu0.b32.end [16/16] 0.0, 128
    %v400 = vpop.trf.xlu0
    %v401 = vpop.trf.xlu0
    %v402 = vpop.trf.xlu0
    %v403 = vpop.trf.xlu0
    %v404 = vpop.trf.xlu0
    %v405 = vpop.trf.xlu0
    %v406 = vpop.trf.xlu0
    %v407 = vpop.trf.xlu0
    %v408 = vpop.trf.xlu0
    %v409 = vpop.trf.xlu0
    %v410 = vpop.trf.xlu0
    %v411 = vpop.trf.xlu0
    %v412 = vpop.trf.xlu0
    %v413 = vpop.trf.xlu0
    %v414 = vpop.trf.xlu0
    %v415 = vpop.trf.xlu0
    %416 = vxpose.xlu0.b32.start [1/16] %v164, 128
    %417 = vxpose.xlu0.b32.cont [2/16] 0.0, 128
    %418 = vxpose.xlu0.b32.cont [3/16] 0.0, 128
    %419 = vxpose.xlu0.b32.cont [4/16] 0.0, 128
    %420 = vxpose.xlu0.b32.cont [5/16] 0.0, 128
    %421 = vxpose.xlu0.b32.cont [6/16] 0.0, 128
    %422 = vxpose.xlu0.b32.cont [7/16] 0.0, 128
    %423 = vxpose.xlu0.b32.cont [8/16] 0.0, 128
    %424 = vxpose.xlu0.b32.cont [9/16] 0.0, 128
    %425 = vxpose.xlu0.b32.cont [10/16] 0.0, 128
    %426 = vxpose.xlu0.b32.cont [11/16] 0.0, 128
    %427 = vxpose.xlu0.b32.cont [12/16] 0.0, 128
    %428 = vxpose.xlu0.b32.cont [13/16] 0.0, 128
    %429 = vxpose.xlu0.b32.cont [14/16] 0.0, 128
    %430 = vxpose.xlu0.b32.cont [15/16] 0.0, 128
    %431 = vxpose.xlu0.b32.end [16/16] 0.0, 128
    %v432 = vpop.trf.xlu0
    %v433 = vpop.trf.xlu0
    %v434 = vpop.trf.xlu0
    %v435 = vpop.trf.xlu0
    %v436 = vpop.trf.xlu0
    %v437 = vpop.trf.xlu0
    %v438 = vpop.trf.xlu0
    %v439 = vpop.trf.xlu0
    %v440 = vpop.trf.xlu0
    %v441 = vpop.trf.xlu0
    %v442 = vpop.trf.xlu0
    %v443 = vpop.trf.xlu0
    %v444 = vpop.trf.xlu0
    %v445 = vpop.trf.xlu0
    %v446 = vpop.trf.xlu0
    %v447 = vpop.trf.xlu0
    %448 = vxpose.xlu0.b32.start [1/16] %v165, 128
    %449 = vxpose.xlu0.b32.cont [2/16] 0.0, 128
    %450 = vxpose.xlu0.b32.cont [3/16] 0.0, 128
    %451 = vxpose.xlu0.b32.cont [4/16] 0.0, 128
    %452 = vxpose.xlu0.b32.cont [5/16] 0.0, 128
    %453 = vxpose.xlu0.b32.cont [6/16] 0.0, 128
    %454 = vxpose.xlu0.b32.cont [7/16] 0.0, 128
    %455 = vxpose.xlu0.b32.cont [8/16] 0.0, 128
    %456 = vxpose.xlu0.b32.cont [9/16] 0.0, 128
    %457 = vxpose.xlu0.b32.cont [10/16] 0.0, 128
    %458 = vxpose.xlu0.b32.cont [11/16] 0.0, 128
    %459 = vxpose.xlu0.b32.cont [12/16] 0.0, 128
    %460 = vxpose.xlu0.b32.cont [13/16] 0.0, 128
    %461 = vxpose.xlu0.b32.cont [14/16] 0.0, 128
    %462 = vxpose.xlu0.b32.cont [15/16] 0.0, 128
    %463 = vxpose.xlu0.b32.end [16/16] 0.0, 128
    %v464 = vpop.trf.xlu0
    %v465 = vpop.trf.xlu0
    %v466 = vpop.trf.xlu0
    %v467 = vpop.trf.xlu0
    %v468 = vpop.trf.xlu0
    %v469 = vpop.trf.xlu0
    %v470 = vpop.trf.xlu0
    %v471 = vpop.trf.xlu0
    %v472 = vpop.trf.xlu0
    %v473 = vpop.trf.xlu0
    %v474 = vpop.trf.xlu0
    %v475 = vpop.trf.xlu0
    %v476 = vpop.trf.xlu0
    %v477 = vpop.trf.xlu0
    %v478 = vpop.trf.xlu0
    %v479 = vpop.trf.xlu0
    %480 = vxpose.xlu0.b32.start [1/16] %v194, 128
    %481 = vxpose.xlu0.b32.cont [2/16] 0.0, 128
    %482 = vxpose.xlu0.b32.cont [3/16] 0.0, 128
    %483 = vxpose.xlu0.b32.cont [4/16] 0.0, 128
    %484 = vxpose.xlu0.b32.cont [5/16] 0.0, 128
    %485 = vxpose.xlu0.b32.cont [6/16] 0.0, 128
    %486 = vxpose.xlu0.b32.cont [7/16] 0.0, 128
    %487 = vxpose.xlu0.b32.cont [8/16] 0.0, 128
    %488 = vxpose.xlu0.b32.cont [9/16] 0.0, 128
    %489 = vxpose.xlu0.b32.cont [10/16] 0.0, 128
    %490 = vxpose.xlu0.b32.cont [11/16] 0.0, 128
    %491 = vxpose.xlu0.b32.cont [12/16] 0.0, 128
    %492 = vxpose.xlu0.b32.cont [13/16] 0.0, 128
    %493 = vxpose.xlu0.b32.cont [14/16] 0.0, 128
    %494 = vxpose.xlu0.b32.cont [15/16] 0.0, 128
    %495 = vxpose.xlu0.b32.end [16/16] 0.0, 128
    %v496 = vpop.trf.xlu0
    %v497 = vpop.trf.xlu0
    %v498 = vpop.trf.xlu0
    %v499 = vpop.trf.xlu0
    %v500 = vpop.trf.xlu0
    %v501 = vpop.trf.xlu0
    %v502 = vpop.trf.xlu0
    %v503 = vpop.trf.xlu0
    %v504 = vpop.trf.xlu0
    %v505 = vpop.trf.xlu0
    %v506 = vpop.trf.xlu0
    %v507 = vpop.trf.xlu0
    %v508 = vpop.trf.xlu0
    %v509 = vpop.trf.xlu0
    %v510 = vpop.trf.xlu0
    %v511 = vpop.trf.xlu0
    %512 = vxpose.xlu0.b32.start [1/16] %v195, 128
    %513 = vxpose.xlu0.b32.cont [2/16] 0.0, 128
    %514 = vxpose.xlu0.b32.cont [3/16] 0.0, 128
    %515 = vxpose.xlu0.b32.cont [4/16] 0.0, 128
    %516 = vxpose.xlu0.b32.cont [5/16] 0.0, 128
    %517 = vxpose.xlu0.b32.cont [6/16] 0.0, 128
    %518 = vxpose.xlu0.b32.cont [7/16] 0.0, 128
    %519 = vxpose.xlu0.b32.cont [8/16] 0.0, 128
    %520 = vxpose.xlu0.b32.cont [9/16] 0.0, 128
    %521 = vxpose.xlu0.b32.cont [10/16] 0.0, 128
    %522 = vxpose.xlu0.b32.cont [11/16] 0.0, 128
    %523 = vxpose.xlu0.b32.cont [12/16] 0.0, 128
    %524 = vxpose.xlu0.b32.cont [13/16] 0.0, 128
    %525 = vxpose.xlu0.b32.cont [14/16] 0.0, 128
    %526 = vxpose.xlu0.b32.cont [15/16] 0.0, 128
    %527 = vxpose.xlu0.b32.end [16/16] 0.0, 128
    %v528 = vpop.trf.xlu0
    %v529 = vpop.trf.xlu0
    %v530 = vpop.trf.xlu0
    %v531 = vpop.trf.xlu0
    %v532 = vpop.trf.xlu0
    %v533 = vpop.trf.xlu0
    %v534 = vpop.trf.xlu0
    %v535 = vpop.trf.xlu0
    %v536 = vpop.trf.xlu0
    %v537 = vpop.trf.xlu0
    %v538 = vpop.trf.xlu0
    %v539 = vpop.trf.xlu0
    %v540 = vpop.trf.xlu0
    %v541 = vpop.trf.xlu0
    %v542 = vpop.trf.xlu0
    %v543 = vpop.trf.xlu0
    %544 = vxpose.xlu0.b32.start [1/16] %v196, 128
    %545 = vxpose.xlu0.b32.cont [2/16] 0.0, 128
    %546 = vxpose.xlu0.b32.cont [3/16] 0.0, 128
    %547 = vxpose.xlu0.b32.cont [4/16] 0.0, 128
    %548 = vxpose.xlu0.b32.cont [5/16] 0.0, 128
    %549 = vxpose.xlu0.b32.cont [6/16] 0.0, 128
    %550 = vxpose.xlu0.b32.cont [7/16] 0.0, 128
    %551 = vxpose.xlu0.b32.cont [8/16] 0.0, 128
    %552 = vxpose.xlu0.b32.cont [9/16] 0.0, 128
    %553 = vxpose.xlu0.b32.cont [10/16] 0.0, 128
    %554 = vxpose.xlu0.b32.cont [11/16] 0.0, 128
    %555 = vxpose.xlu0.b32.cont [12/16] 0.0, 128
    %556 = vxpose.xlu0.b32.cont [13/16] 0.0, 128
    %557 = vxpose.xlu0.b32.cont [14/16] 0.0, 128
    %558 = vxpose.xlu0.b32.cont [15/16] 0.0, 128
    %559 = vxpose.xlu0.b32.end [16/16] 0.0, 128
    %v560 = vpop.trf.xlu0
    %v561 = vpop.trf.xlu0
    %v562 = vpop.trf.xlu0
    %v563 = vpop.trf.xlu0
    %v564 = vpop.trf.xlu0
    %v565 = vpop.trf.xlu0
    %v566 = vpop.trf.xlu0
    %v567 = vpop.trf.xlu0
    %v568 = vpop.trf.xlu0
    %v569 = vpop.trf.xlu0
    %v570 = vpop.trf.xlu0
    %v571 = vpop.trf.xlu0
    %v572 = vpop.trf.xlu0
    %v573 = vpop.trf.xlu0
    %v574 = vpop.trf.xlu0
    %v575 = vpop.trf.xlu0
    %576 = vxpose.xlu0.b32.start [1/16] %v197, 128
    %577 = vxpose.xlu0.b32.cont [2/16] 0.0, 128
    %578 = vxpose.xlu0.b32.cont [3/16] 0.0, 128
    %579 = vxpose.xlu0.b32.cont [4/16] 0.0, 128
    %580 = vxpose.xlu0.b32.cont [5/16] 0.0, 128
    %581 = vxpose.xlu0.b32.cont [6/16] 0.0, 128
    %582 = vxpose.xlu0.b32.cont [7/16] 0.0, 128
    %583 = vxpose.xlu0.b32.cont [8/16] 0.0, 128
    %584 = vxpose.xlu0.b32.cont [9/16] 0.0, 128
    %585 = vxpose.xlu0.b32.cont [10/16] 0.0, 128
    %586 = vxpose.xlu0.b32.cont [11/16] 0.0, 128
    %587 = vxpose.xlu0.b32.cont [12/16] 0.0, 128
    %588 = vxpose.xlu0.b32.cont [13/16] 0.0, 128
    %589 = vxpose.xlu0.b32.cont [14/16] 0.0, 128
    %590 = vxpose.xlu0.b32.cont [15/16] 0.0, 128
    %591 = vxpose.xlu0.b32.end [16/16] 0.0, 128
    %v592 = vpop.trf.xlu0
    %v593 = vpop.trf.xlu0
    %v594 = vpop.trf.xlu0
    %v595 = vpop.trf.xlu0
    %v596 = vpop.trf.xlu0
    %v597 = vpop.trf.xlu0
    %v598 = vpop.trf.xlu0
    %v599 = vpop.trf.xlu0
    %v600 = vpop.trf.xlu0
    %v601 = vpop.trf.xlu0
    %v602 = vpop.trf.xlu0
    %v603 = vpop.trf.xlu0
    %v604 = vpop.trf.xlu0
    %v605 = vpop.trf.xlu0
    %v606 = vpop.trf.xlu0
    %v607 = vpop.trf.xlu0
    %v608 = vpack.c.bf16 %v368, %v368
    %v609 = vpack.c.bf16 %v400, %v400
    %v610 = vpack.c.bf16 %v432, %v432
    %v611 = vpack.c.bf16 %v464, %v464
    %v612 = vpack.c.bf16 %v496, %v496
    %v613 = vpack.c.bf16 %v528, %v528
    %v614 = vpack.c.bf16 %v560, %v560
    %v615 = vpack.c.bf16 %v592, %v592
    %v616 = vpack.c.bf16 %v234, %v234
    %v617 = vpack.c.bf16 %v235, %v235
    %v618 = vpack.c.bf16 %v236, %v236
    %v619 = vpack.c.bf16 %v237, %v237
    %v620 = vpack.c.bf16 %v266, %v266
    %v621 = vpack.c.bf16 %v267, %v267
    %v622 = vpack.c.bf16 %v268, %v268
    %v623 = vpack.c.bf16 %v269, %v269
    %vm624 = vcmask 64512
    %v626 = vsel %vm624, %v608, 0
    %vm628 = vcmask 1043456
    %v630 = vsel %vm628, %v616, 0
    %632 = vmatpush.bf16.msra.mxu0 0
    %633 = vmatpush.bf16.msra.mxu0 0
    %634 = vmatpush.bf16.msra.mxu0 0
    %635 = vmatpush.bf16.msra.mxu0 0
    %636 = vmatpush.bf16.msra.mxu0 0
    %637 = vmatpush.bf16.msra.mxu0 0
    %638 = vmatpush.bf16.msra.mxu0 0
    %639 = vmatpush.bf16.msra.mxu0 %v630
    %640 = vmatmul.bf16.gmra.mxu0 %v626
    %v641 = vpop.f32.mrf.mxu0
    %v642 = vadd.f32 0.0, %v641
    %v643 = vpop.f32.mrf.mxu0
    %644 = vdwg.mxu0
    %v646 = vsel %vm624, %v609, 0
    %v649 = vsel %vm628, %v617, 0
    %651 = vmatpush.bf16.msra.mxu0 0
    %652 = vmatpush.bf16.msra.mxu0 0
    %653 = vmatpush.bf16.msra.mxu0 0
    %654 = vmatpush.bf16.msra.mxu0 0
    %655 = vmatpush.bf16.msra.mxu0 0
    %656 = vmatpush.bf16.msra.mxu0 0
    %657 = vmatpush.bf16.msra.mxu0 0
    %658 = vmatpush.bf16.msra.mxu0 %v649
    %659 = vmatmul.bf16.gmra.mxu0 %v646
    %v660 = vpop.f32.mrf.mxu0
    %v661 = vadd.f32 0.0, %v660
    %v662 = vpop.f32.mrf.mxu0
    %663 = vdwg.mxu0
    %v665 = vsel %vm624, %v610, 0
    %v668 = vsel %vm628, %v618, 0
    %670 = vmatpush.bf16.msra.mxu0 0
    %671 = vmatpush.bf16.msra.mxu0 0
    %672 = vmatpush.bf16.msra.mxu0 0
    %673 = vmatpush.bf16.msra.mxu0 0
    %674 = vmatpush.bf16.msra.mxu0 0
    %675 = vmatpush.bf16.msra.mxu0 0
    %676 = vmatpush.bf16.msra.mxu0 0
    %677 = vmatpush.bf16.msra.mxu0 %v668
    %678 = vmatmul.bf16.gmra.mxu0 %v665
    %v679 = vpop.f32.mrf.mxu0
    %v680 = vadd.f32 0.0, %v679
    %v681 = vpop.f32.mrf.mxu0
    %682 = vdwg.mxu0
    %v684 = vsel %vm624, %v611, 0
    %v687 = vsel %vm628, %v619, 0
    %689 = vmatpush.bf16.msra.mxu0 0
    %690 = vmatpush.bf16.msra.mxu0 0
    %691 = vmatpush.bf16.msra.mxu0 0
    %692 = vmatpush.bf16.msra.mxu0 0
    %693 = vmatpush.bf16.msra.mxu0 0
    %694 = vmatpush.bf16.msra.mxu0 0
    %695 = vmatpush.bf16.msra.mxu0 0
    %696 = vmatpush.bf16.msra.mxu0 %v687
    %697 = vmatmul.bf16.gmra.mxu0 %v684
    %v698 = vpop.f32.mrf.mxu0
    %v699 = vadd.f32 0.0, %v698
    %v700 = vpop.f32.mrf.mxu0
    %701 = vdwg.mxu0
    %v703 = vsel %vm624, %v612, 0
    %v706 = vsel %vm628, %v620, 0
    %708 = vmatpush.bf16.msra.mxu0 0
    %709 = vmatpush.bf16.msra.mxu0 0
    %710 = vmatpush.bf16.msra.mxu0 0
    %711 = vmatpush.bf16.msra.mxu0 0
    %712 = vmatpush.bf16.msra.mxu0 0
    %713 = vmatpush.bf16.msra.mxu0 0
    %714 = vmatpush.bf16.msra.mxu0 0
    %715 = vmatpush.bf16.msra.mxu0 %v706
    %716 = vmatmul.bf16.gmra.mxu0 %v703
    %v717 = vpop.f32.mrf.mxu0
    %v718 = vadd.f32 0.0, %v717
    %v719 = vpop.f32.mrf.mxu0
    %720 = vdwg.mxu0
    %v722 = vsel %vm624, %v613, 0
    %v725 = vsel %vm628, %v621, 0
    %727 = vmatpush.bf16.msra.mxu0 0
    %728 = vmatpush.bf16.msra.mxu0 0
    %729 = vmatpush.bf16.msra.mxu0 0
    %730 = vmatpush.bf16.msra.mxu0 0
    %731 = vmatpush.bf16.msra.mxu0 0
    %732 = vmatpush.bf16.msra.mxu0 0
    %733 = vmatpush.bf16.msra.mxu0 0
    %734 = vmatpush.bf16.msra.mxu0 %v725
    %735 = vmatmul.bf16.gmra.mxu0 %v722
    %v736 = vpop.f32.mrf.mxu0
    %v737 = vadd.f32 0.0, %v736
    %v738 = vpop.f32.mrf.mxu0
    %739 = vdwg.mxu0
    %v741 = vsel %vm624, %v614, 0
    %v744 = vsel %vm628, %v622, 0
    %746 = vmatpush.bf16.msra.mxu0 0
    %747 = vmatpush.bf16.msra.mxu0 0
    %748 = vmatpush.bf16.msra.mxu0 0
    %749 = vmatpush.bf16.msra.mxu0 0
    %750 = vmatpush.bf16.msra.mxu0 0
    %751 = vmatpush.bf16.msra.mxu0 0
    %752 = vmatpush.bf16.msra.mxu0 0
    %753 = vmatpush.bf16.msra.mxu0 %v744
    %754 = vmatmul.bf16.gmra.mxu0 %v741
    %v755 = vpop.f32.mrf.mxu0
    %v756 = vadd.f32 0.0, %v755
    %v757 = vpop.f32.mrf.mxu0
    %758 = vdwg.mxu0
    %v760 = vsel %vm624, %v615, 0
    %v763 = vsel %vm628, %v623, 0
    %765 = vmatpush.bf16.msra.mxu0 0
    %766 = vmatpush.bf16.msra.mxu0 0
    %767 = vmatpush.bf16.msra.mxu0 0
    %768 = vmatpush.bf16.msra.mxu0 0
    %769 = vmatpush.bf16.msra.mxu0 0
    %770 = vmatpush.bf16.msra.mxu0 0
    %771 = vmatpush.bf16.msra.mxu0 0
    %772 = vmatpush.bf16.msra.mxu0 %v763
    %773 = vmatmul.bf16.gmra.mxu0 %v760
    %v774 = vpop.f32.mrf.mxu0
    %v775 = vadd.f32 0.0, %v774
    %v776 = vpop.f32.mrf.mxu0
    %777 = vdwg.mxu0
    %v778 = vsel %vm624, %v642, -inf
    %779 = vmax.xlane.f32.xlu0 %v778
    %v780 = vpop.xlane.xlu0 %779
    %v781 = vsel %vm624, %v661, -inf
    %782 = vmax.xlane.f32.xlu0 %v781
    %v783 = vpop.xlane.xlu0 %782
    %v784 = vsel %vm624, %v680, -inf
    %785 = vmax.xlane.f32.xlu0 %v784
    %v786 = vpop.xlane.xlu0 %785
    %v787 = vsel %vm624, %v699, -inf
    %788 = vmax.xlane.f32.xlu0 %v787
    %v789 = vpop.xlane.xlu0 %788
    %v790 = vsel %vm624, %v718, -inf
    %791 = vmax.xlane.f32.xlu0 %v790
    %v792 = vpop.xlane.xlu0 %791
    %v793 = vsel %vm624, %v737, -inf
    %794 = vmax.xlane.f32.xlu0 %v793
    %v795 = vpop.xlane.xlu0 %794
    %v796 = vsel %vm624, %v756, -inf
    %797 = vmax.xlane.f32.xlu0 %v796
    %v798 = vpop.xlane.xlu0 %797
    %v799 = vsel %vm624, %v775, -inf
    %800 = vmax.xlane.f32.xlu0 %v799
    %v801 = vpop.xlane.xlu0 %800
    %v802 = vsub.f32 %v642, %v780
    %v803 = vsub.f32 %v661, %v783
    %v804 = vsub.f32 %v680, %v786
    %v805 = vsub.f32 %v699, %v789
    %v806 = vsub.f32 %v718, %v792
    %v807 = vsub.f32 %v737, %v795
    %v808 = vsub.f32 %v756, %v798
    %v809 = vsub.f32 %v775, %v801
    %v810 = vmul.f32 %v802, 1.442695
    %v811 = vpow.pop %v810
    %v812 = vmul.f32 %v803, 1.442695
    %v813 = vpow.pop %v812
    %v814 = vmul.f32 %v804, 1.442695
    %v815 = vpow.pop %v814
    %v816 = vmul.f32 %v805, 1.442695
    %v817 = vpow.pop %v816
    %v818 = vmul.f32 %v806, 1.442695
    %v819 = vpow.pop %v818
    %v820 = vmul.f32 %v807, 1.442695
    %v821 = vpow.pop %v820
    %v822 = vmul.f32 %v808, 1.442695
    %v823 = vpow.pop %v822
    %v824 = vmul.f32 %v809, 1.442695
    %v825 = vpow.pop %v824
    %v826 = vsel %vm624, %v811, 0.0
    %827 = vadd.xlane.f32.xlu0 %v826
    %v828 = vpop.xlane.xlu0 %827
    %v829 = vsel %vm624, %v813, 0.0
    %830 = vadd.xlane.f32.xlu0 %v829
    %v831 = vpop.xlane.xlu0 %830
    %v832 = vsel %vm624, %v815, 0.0
    %833 = vadd.xlane.f32.xlu0 %v832
    %v834 = vpop.xlane.xlu0 %833
    %v835 = vsel %vm624, %v817, 0.0
    %836 = vadd.xlane.f32.xlu0 %v835
    %v837 = vpop.xlane.xlu0 %836
    %v838 = vsel %vm624, %v819, 0.0
    %839 = vadd.xlane.f32.xlu0 %v838
    %v840 = vpop.xlane.xlu0 %839
    %v841 = vsel %vm624, %v821, 0.0
    %842 = vadd.xlane.f32.xlu0 %v841
    %v843 = vpop.xlane.xlu0 %842
    %v844 = vsel %vm624, %v823, 0.0
    %845 = vadd.xlane.f32.xlu0 %v844
    %v846 = vpop.xlane.xlu0 %845
    %v847 = vsel %vm624, %v825, 0.0
    %848 = vadd.xlane.f32.xlu0 %v847
    %v849 = vpop.xlane.xlu0 %848
    %v850 = vrcp.pop %v828
    %v851 = vmul.f32 %v828, %v850
    %v852 = vsub.f32 1.0, %v851
    %v853 = vmul.f32 %v850, %v852
    %v854 = vadd.f32 %v850, %v853
    %vm855 = vweird.f32 %v828
    %vm856 = vweird.f32 %v850
    %vm857 = vmor %vm855, %vm856
    %v858 = vsel %vm857, %v850, %v854
    %v859 = vand.u32 2147483647, %v828
    %vm860 = vcmp.eq.f32.partialorder %v859, 8.507059e+37
    %v861 = vand.u32 %v828, 2147483648
    %v862 = vor.u32 1.1754944e-38, %v861
    %v863 = vsel %vm860, %v862, %v858
    %v864 = vmul.f32 %v811, %v863
    %v865 = vrcp.pop %v831
    %v866 = vmul.f32 %v831, %v865
    %v867 = vsub.f32 1.0, %v866
    %v868 = vmul.f32 %v865, %v867
    %v869 = vadd.f32 %v865, %v868
    %vm870 = vweird.f32 %v831
    %vm871 = vweird.f32 %v865
    %vm872 = vmor %vm870, %vm871
    %v873 = vsel %vm872, %v865, %v869
    %v874 = vand.u32 2147483647, %v831
    %vm875 = vcmp.eq.f32.partialorder %v874, 8.507059e+37
    %v876 = vand.u32 %v831, 2147483648
    %v877 = vor.u32 1.1754944e-38, %v876
    %v878 = vsel %vm875, %v877, %v873
    %v879 = vmul.f32 %v813, %v878
    %v880 = vrcp.pop %v834
    %v881 = vmul.f32 %v834, %v880
    %v882 = vsub.f32 1.0, %v881
    %v883 = vmul.f32 %v880, %v882
    %v884 = vadd.f32 %v880, %v883
    %vm885 = vweird.f32 %v834
    %vm886 = vweird.f32 %v880
    %vm887 = vmor %vm885, %vm886
    %v888 = vsel %vm887, %v880, %v884
    %v889 = vand.u32 2147483647, %v834
    %vm890 = vcmp.eq.f32.partialorder %v889, 8.507059e+37
    %v891 = vand.u32 %v834, 2147483648
    %v892 = vor.u32 1.1754944e-38, %v891
    %v893 = vsel %vm890, %v892, %v888
    %v894 = vmul.f32 %v815, %v893
    %v895 = vrcp.pop %v837
    %v896 = vmul.f32 %v837, %v895
    %v897 = vsub.f32 1.0, %v896
    %v898 = vmul.f32 %v895, %v897
    %v899 = vadd.f32 %v895, %v898
    %vm900 = vweird.f32 %v837
    %vm901 = vweird.f32 %v895
    %vm902 = vmor %vm900, %vm901
    %v903 = vsel %vm902, %v895, %v899
    %v904 = vand.u32 2147483647, %v837
    %vm905 = vcmp.eq.f32.partialorder %v904, 8.507059e+37
    %v906 = vand.u32 %v837, 2147483648
    %v907 = vor.u32 1.1754944e-38, %v906
    %v908 = vsel %vm905, %v907, %v903
    %v909 = vmul.f32 %v817, %v908
    %v910 = vrcp.pop %v840
    %v911 = vmul.f32 %v840, %v910
    %v912 = vsub.f32 1.0, %v911
    %v913 = vmul.f32 %v910, %v912
    %v914 = vadd.f32 %v910, %v913
    %vm915 = vweird.f32 %v840
    %vm916 = vweird.f32 %v910
    %vm917 = vmor %vm915, %vm916
    %v918 = vsel %vm917, %v910, %v914
    %v919 = vand.u32 2147483647, %v840
    %vm920 = vcmp.eq.f32.partialorder %v919, 8.507059e+37
    %v921 = vand.u32 %v840, 2147483648
    %v922 = vor.u32 1.1754944e-38, %v921
    %v923 = vsel %vm920, %v922, %v918
    %v924 = vmul.f32 %v819, %v923
    %v925 = vrcp.pop %v843
    %v926 = vmul.f32 %v843, %v925
    %v927 = vsub.f32 1.0, %v926
    %v928 = vmul.f32 %v925, %v927
    %v929 = vadd.f32 %v925, %v928
    %vm930 = vweird.f32 %v843
    %vm931 = vweird.f32 %v925
    %vm932 = vmor %vm930, %vm931
    %v933 = vsel %vm932, %v925, %v929
    %v934 = vand.u32 2147483647, %v843
    %vm935 = vcmp.eq.f32.partialorder %v934, 8.507059e+37
    %v936 = vand.u32 %v843, 2147483648
    %v937 = vor.u32 1.1754944e-38, %v936
    %v938 = vsel %vm935, %v937, %v933
    %v939 = vmul.f32 %v821, %v938
    %v940 = vrcp.pop %v846
    %v941 = vmul.f32 %v846, %v940
    %v942 = vsub.f32 1.0, %v941
    %v943 = vmul.f32 %v940, %v942
    %v944 = vadd.f32 %v940, %v943
    %vm945 = vweird.f32 %v846
    %vm946 = vweird.f32 %v940
    %vm947 = vmor %vm945, %vm946
    %v948 = vsel %vm947, %v940, %v944
    %v949 = vand.u32 2147483647, %v846
    %vm950 = vcmp.eq.f32.partialorder %v949, 8.507059e+37
    %v951 = vand.u32 %v846, 2147483648
    %v952 = vor.u32 1.1754944e-38, %v951
    %v953 = vsel %vm950, %v952, %v948
    %v954 = vmul.f32 %v823, %v953
    %v955 = vrcp.pop %v849
    %v956 = vmul.f32 %v849, %v955
    %v957 = vsub.f32 1.0, %v956
    %v958 = vmul.f32 %v955, %v957
    %v959 = vadd.f32 %v955, %v958
    %vm960 = vweird.f32 %v849
    %vm961 = vweird.f32 %v955
    %vm962 = vmor %vm960, %vm961
    %v963 = vsel %vm962, %v955, %v959
    %v964 = vand.u32 2147483647, %v849
    %vm965 = vcmp.eq.f32.partialorder %v964, 8.507059e+37
    %v966 = vand.u32 %v849, 2147483648
    %v967 = vor.u32 1.1754944e-38, %v966
    %v968 = vsel %vm965, %v967, %v963
    %v969 = vmul.f32 %v825, %v968
    %970 = vst.msk [vmem:[#allocation4] sm:$0xff] %vm624, %v864
    %971 = vst.msk [vmem:[#allocation4 + $0x8] sm:$0xff] %vm624, %v879
    %972 = vst.msk [vmem:[#allocation4 + $0x10] sm:$0xff] %vm624, %v894
    %973 = vst.msk [vmem:[#allocation4 + $0x18] sm:$0xff] %vm624, %v909
    %974 = vst.msk [vmem:[#allocation4 + $0x20] sm:$0xff] %vm624, %v924
    %975 = vst.msk [vmem:[#allocation4 + $0x28] sm:$0xff] %vm624, %v939
    %976 = vst.msk [vmem:[#allocation4 + $0x30] sm:$0xff] %vm624, %v954
    %977 = vst.msk [vmem:[#allocation4 + $0x38] sm:$0xff] %vm624, %v969
    %v978 = vpack.c.bf16 %v304, %v304
    %v979 = vpack.c.bf16 %v305, %v305
    %v980 = vpack.c.bf16 %v306, %v306
    %v981 = vpack.c.bf16 %v307, %v307
    %v982 = vpack.c.bf16 %v336, %v336
    %v983 = vpack.c.bf16 %v337, %v337
    %v984 = vpack.c.bf16 %v338, %v338
    %v985 = vpack.c.bf16 %v339, %v339
    %v986 = vpack.c.bf16 %v864, %v864
    %v987 = vpack.c.bf16 %v879, %v879
    %v988 = vpack.c.bf16 %v894, %v894
    %v989 = vpack.c.bf16 %v909, %v909
    %v990 = vpack.c.bf16 %v924, %v924
    %v991 = vpack.c.bf16 %v939, %v939
    %v992 = vpack.c.bf16 %v954, %v954
    %v993 = vpack.c.bf16 %v969, %v969
    %v995 = vsel %vm624, %v978, 0
    %v998 = vsel %vm624, %v986, 0
    %1000 = vmatpush.bf16.xpose.msra.mxu0 0
    %1001 = vmatpush.bf16.xpose.msra.mxu0 0
    %1002 = vmatpush.bf16.xpose.msra.mxu0 0
    %1003 = vmatpush.bf16.xpose.msra.mxu0 0
    %1004 = vmatpush.bf16.xpose.msra.mxu0 0
    %1005 = vmatpush.bf16.xpose.msra.mxu0 0
    %1006 = vmatpush.bf16.xpose.msra.mxu0 0
    %1007 = vmatpush.bf16.xpose.msra.mxu0 %v998
    %1008 = vmatmul.bf16.gmra.mxu0 %v995
    %v1009 = vpop.f32.mrf.mxu0
    %v1010 = vadd.f32 0.0, %v1009
    %v1011 = vpop.f32.mrf.mxu0
    %1012 = vdwg.mxu0
    %v1014 = vsel %vm624, %v979, 0
    %v1017 = vsel %vm624, %v987, 0
    %1019 = vmatpush.bf16.xpose.msra.mxu0 0
    %1020 = vmatpush.bf16.xpose.msra.mxu0 0
    %1021 = vmatpush.bf16.xpose.msra.mxu0 0
    %1022 = vmatpush.bf16.xpose.msra.mxu0 0
    %1023 = vmatpush.bf16.xpose.msra.mxu0 0
    %1024 = vmatpush.bf16.xpose.msra.mxu0 0
    %1025 = vmatpush.bf16.xpose.msra.mxu0 0
    %1026 = vmatpush.bf16.xpose.msra.mxu0 %v1017
    %1027 = vmatmul.bf16.gmra.mxu0 %v1014
    %v1028 = vpop.f32.mrf.mxu0
    %v1029 = vadd.f32 0.0, %v1028
    %v1030 = vpop.f32.mrf.mxu0
    %1031 = vdwg.mxu0
    %v1033 = vsel %vm624, %v980, 0
    %v1036 = vsel %vm624, %v988, 0
    %1038 = vmatpush.bf16.xpose.msra.mxu0 0
    %1039 = vmatpush.bf16.xpose.msra.mxu0 0
    %1040 = vmatpush.bf16.xpose.msra.mxu0 0
    %1041 = vmatpush.bf16.xpose.msra.mxu0 0
    %1042 = vmatpush.bf16.xpose.msra.mxu0 0
    %1043 = vmatpush.bf16.xpose.msra.mxu0 0
    %1044 = vmatpush.bf16.xpose.msra.mxu0 0
    %1045 = vmatpush.bf16.xpose.msra.mxu0 %v1036
    %1046 = vmatmul.bf16.gmra.mxu0 %v1033
    %v1047 = vpop.f32.mrf.mxu0
    %v1048 = vadd.f32 0.0, %v1047
    %v1049 = vpop.f32.mrf.mxu0
    %1050 = vdwg.mxu0
    %v1052 = vsel %vm624, %v981, 0
    %v1055 = vsel %vm624, %v989, 0
    %1057 = vmatpush.bf16.xpose.msra.mxu0 0
    %1058 = vmatpush.bf16.xpose.msra.mxu0 0
    %1059 = vmatpush.bf16.xpose.msra.mxu0 0
    %1060 = vmatpush.bf16.xpose.msra.mxu0 0
    %1061 = vmatpush.bf16.xpose.msra.mxu0 0
    %1062 = vmatpush.bf16.xpose.msra.mxu0 0
    %1063 = vmatpush.bf16.xpose.msra.mxu0 0
    %1064 = vmatpush.bf16.xpose.msra.mxu0 %v1055
    %1065 = vmatmul.bf16.gmra.mxu0 %v1052
    %v1066 = vpop.f32.mrf.mxu0
    %v1067 = vadd.f32 0.0, %v1066
    %v1068 = vpop.f32.mrf.mxu0
    %1069 = vdwg.mxu0
    %v1071 = vsel %vm624, %v982, 0
    %v1074 = vsel %vm624, %v990, 0
    %1076 = vmatpush.bf16.xpose.msra.mxu0 0
    %1077 = vmatpush.bf16.xpose.msra.mxu0 0
    %1078 = vmatpush.bf16.xpose.msra.mxu0 0
    %1079 = vmatpush.bf16.xpose.msra.mxu0 0
    %1080 = vmatpush.bf16.xpose.msra.mxu0 0
    %1081 = vmatpush.bf16.xpose.msra.mxu0 0
    %1082 = vmatpush.bf16.xpose.msra.mxu0 0
    %1083 = vmatpush.bf16.xpose.msra.mxu0 %v1074
    %1084 = vmatmul.bf16.gmra.mxu0 %v1071
    %v1085 = vpop.f32.mrf.mxu0
    %v1086 = vadd.f32 0.0, %v1085
    %v1087 = vpop.f32.mrf.mxu0
    %1088 = vdwg.mxu0
    %v1090 = vsel %vm624, %v983, 0
    %v1093 = vsel %vm624, %v991, 0
    %1095 = vmatpush.bf16.xpose.msra.mxu0 0
    %1096 = vmatpush.bf16.xpose.msra.mxu0 0
    %1097 = vmatpush.bf16.xpose.msra.mxu0 0
    %1098 = vmatpush.bf16.xpose.msra.mxu0 0
    %1099 = vmatpush.bf16.xpose.msra.mxu0 0
    %1100 = vmatpush.bf16.xpose.msra.mxu0 0
    %1101 = vmatpush.bf16.xpose.msra.mxu0 0
    %1102 = vmatpush.bf16.xpose.msra.mxu0 %v1093
    %1103 = vmatmul.bf16.gmra.mxu0 %v1090
    %v1104 = vpop.f32.mrf.mxu0
    %v1105 = vadd.f32 0.0, %v1104
    %v1106 = vpop.f32.mrf.mxu0
    %1107 = vdwg.mxu0
    %v1109 = vsel %vm624, %v984, 0
    %v1112 = vsel %vm624, %v992, 0
    %1114 = vmatpush.bf16.xpose.msra.mxu0 0
    %1115 = vmatpush.bf16.xpose.msra.mxu0 0
    %1116 = vmatpush.bf16.xpose.msra.mxu0 0
    %1117 = vmatpush.bf16.xpose.msra.mxu0 0
    %1118 = vmatpush.bf16.xpose.msra.mxu0 0
    %1119 = vmatpush.bf16.xpose.msra.mxu0 0
    %1120 = vmatpush.bf16.xpose.msra.mxu0 0
    %1121 = vmatpush.bf16.xpose.msra.mxu0 %v1112
    %1122 = vmatmul.bf16.gmra.mxu0 %v1109
    %v1123 = vpop.f32.mrf.mxu0
    %v1124 = vadd.f32 0.0, %v1123
    %v1125 = vpop.f32.mrf.mxu0
    %1126 = vdwg.mxu0
    %v1128 = vsel %vm624, %v985, 0
    %v1131 = vsel %vm624, %v993, 0
    %1133 = vmatpush.bf16.xpose.msra.mxu0 0
    %1134 = vmatpush.bf16.xpose.msra.mxu0 0
    %1135 = vmatpush.bf16.xpose.msra.mxu0 0
    %1136 = vmatpush.bf16.xpose.msra.mxu0 0
    %1137 = vmatpush.bf16.xpose.msra.mxu0 0
    %1138 = vmatpush.bf16.xpose.msra.mxu0 0
    %1139 = vmatpush.bf16.xpose.msra.mxu0 0
    %1140 = vmatpush.bf16.xpose.msra.mxu0 %v1131
    %1141 = vmatmul.bf16.gmra.mxu0 %v1128
    %v1142 = vpop.f32.mrf.mxu0
    %v1143 = vadd.f32 0.0, %v1142
    %v1144 = vpop.f32.mrf.mxu0
    %1145 = vdwg.mxu0
    %1146 = vxpose.xlu0.b32.start [1/16] %v1010, 128
    %1147 = vxpose.xlu0.b32.cont [2/16] %v1029, 128
    %1148 = vxpose.xlu0.b32.cont [3/16] %v1048, 128
    %1149 = vxpose.xlu0.b32.cont [4/16] %v1067, 128
    %1150 = vxpose.xlu0.b32.cont [5/16] 0.0, 128
    %1151 = vxpose.xlu0.b32.cont [6/16] 0.0, 128
    %1152 = vxpose.xlu0.b32.cont [7/16] 0.0, 128
    %1153 = vxpose.xlu0.b32.cont [8/16] 0.0, 128
    %1154 = vxpose.xlu0.b32.cont [9/16] 0.0, 128
    %1155 = vxpose.xlu0.b32.cont [10/16] 0.0, 128
    %1156 = vxpose.xlu0.b32.cont [11/16] 0.0, 128
    %1157 = vxpose.xlu0.b32.cont [12/16] 0.0, 128
    %1158 = vxpose.xlu0.b32.cont [13/16] 0.0, 128
    %1159 = vxpose.xlu0.b32.cont [14/16] 0.0, 128
    %1160 = vxpose.xlu0.b32.cont [15/16] 0.0, 128
    %1161 = vxpose.xlu0.b32.end [16/16] 0.0, 128
    %v1162 = vpop.trf.xlu0
    %v1163 = vpop.trf.xlu0
    %v1164 = vpop.trf.xlu0
    %v1165 = vpop.trf.xlu0
    %v1166 = vpop.trf.xlu0
    %v1167 = vpop.trf.xlu0
    %v1168 = vpop.trf.xlu0
    %v1169 = vpop.trf.xlu0
    %v1170 = vpop.trf.xlu0
    %v1171 = vpop.trf.xlu0
    %v1172 = vpop.trf.xlu0
    %v1173 = vpop.trf.xlu0
    %v1174 = vpop.trf.xlu0
    %v1175 = vpop.trf.xlu0
    %v1176 = vpop.trf.xlu0
    %v1177 = vpop.trf.xlu0
    %1178 = vxpose.xlu0.b32.start [1/16] %v1086, 128
    %1179 = vxpose.xlu0.b32.cont [2/16] %v1105, 128
    %1180 = vxpose.xlu0.b32.cont [3/16] %v1124, 128
    %1181 = vxpose.xlu0.b32.cont [4/16] %v1143, 128
    %1182 = vxpose.xlu0.b32.cont [5/16] 0.0, 128
    %1183 = vxpose.xlu0.b32.cont [6/16] 0.0, 128
    %1184 = vxpose.xlu0.b32.cont [7/16] 0.0, 128
    %1185 = vxpose.xlu0.b32.cont [8/16] 0.0, 128
    %1186 = vxpose.xlu0.b32.cont [9/16] 0.0, 128
    %1187 = vxpose.xlu0.b32.cont [10/16] 0.0, 128
    %1188 = vxpose.xlu0.b32.cont [11/16] 0.0, 128
    %1189 = vxpose.xlu0.b32.cont [12/16] 0.0, 128
    %1190 = vxpose.xlu0.b32.cont [13/16] 0.0, 128
    %1191 = vxpose.xlu0.b32.cont [14/16] 0.0, 128
    %1192 = vxpose.xlu0.b32.cont [15/16] 0.0, 128
    %1193 = vxpose.xlu0.b32.end [16/16] 0.0, 128
    %v1194 = vpop.trf.xlu0
    %v1195 = vpop.trf.xlu0
    %v1196 = vpop.trf.xlu0
    %v1197 = vpop.trf.xlu0
    %v1198 = vpop.trf.xlu0
    %v1199 = vpop.trf.xlu0
    %v1200 = vpop.trf.xlu0
    %v1201 = vpop.trf.xlu0
    %v1202 = vpop.trf.xlu0
    %v1203 = vpop.trf.xlu0
    %v1204 = vpop.trf.xlu0
    %v1205 = vpop.trf.xlu0
    %v1206 = vpop.trf.xlu0
    %v1207 = vpop.trf.xlu0
    %v1208 = vpop.trf.xlu0
    %v1209 = vpop.trf.xlu0
    %v1210 = vpack.c.bf16 %v1194, %v1162
    %v1211 = vld [vmem:[%s4] sm:$0xf]
    %v1212 = vld [vmem:[%s4 + $0x4] sm:$0xf]
    %v1213 = vld [vmem:[%s4 + $0x8] sm:$0xf]
    %v1214 = vld [vmem:[%s4 + $0xc] sm:$0xf]
    %v1215 = vld [vmem:[%s5] sm:$0x1]
    %v1217 = vperm.slane %v1215, 0
    %v1223 = vunpack.c.l.b16 %v1211
    %v1224 = vunpack.c.l.b16 %v1212
    %v1225 = vunpack.c.l.b16 %v1213
    %v1226 = vunpack.c.l.b16 %v1214
    %v1227 = vpack.c.b16 %v1224, %v1223
    %v1228 = vpack.c.b16 %v1226, %v1225
    %v1232 = vsel %vm48, %v1210, 0
    %1234 = vmatpush.bf16.msra.mxu0 0
    %1235 = vmatpush.bf16.msra.mxu0 0
    %1236 = vmatpush.bf16.msra.mxu0 0
    %1237 = vmatpush.bf16.msra.mxu0 0
    %1238 = vmatpush.bf16.msra.mxu0 0
    %1239 = vmatpush.bf16.msra.mxu0 0
    %1240 = vmatpush.bf16.msra.mxu0 %v1228
    %1241 = vmatpush.bf16.msra.mxu0 %v1227
    %1242 = vmatmul.bf16.gmra.mxu0 %v1232
    %v1243 = vpop.f32.mrf.mxu0
    %v1244 = vadd.f32 %v1217, %v1243
    %v1245 = vpop.f32.mrf.mxu0
    %v1246 = vadd.f32 %v1217, %v1245
    %1247 = vdwg.mxu0
    %v1248 = vadd.f32 %v46, %v1244
    %v1249 = vadd.f32 %v47, %v1246
    %v1250 = vsel %vm48, %v1248, 0.0
    %1251 = vadd.xlane.f32.xlu0 %v1250
    %v1252 = vpop.xlane.xlu0 %1251
    %v1253 = vsel %vm48, %v1249, 0.0
    %1254 = vadd.xlane.f32.xlu0 %v1253
    %v1255 = vpop.xlane.xlu0 %1254
    %v1256 = vmul.f32 %v1252, %v61
    %v1257 = vmul.f32 %v1255, %v61
    %v1258 = vsub.f32 %v1248, %v1256
    %v1259 = vsub.f32 %v1249, %v1257
    %v1260 = vmul.f32 %v1258, %v1258
    %v1261 = vmul.f32 %v1259, %v1259
    %v1262 = vsel %vm48, %v1260, 0.0
    %1263 = vadd.xlane.f32.xlu0 %v1262
    %v1264 = vpop.xlane.xlu0 %1263
    %v1265 = vsel %vm48, %v1261, 0.0
    %1266 = vadd.xlane.f32.xlu0 %v1265
    %v1267 = vpop.xlane.xlu0 %1266
    %v1268 = vmul.f32 %v1264, %v61
    %v1269 = vmul.f32 %v1267, %v61
    %v1270 = vadd.f32 %v1268, 1e-05
    %v1271 = vadd.f32 %v1269, 1e-05
    %v1272 = vrsqrt.pop %v1270
    %v1273 = vmul.f32 %v1272, %v1270
    %v1274 = vmul.f32 %v1273, %v1272
    %v1275 = vmul.f32 0.5, %v1274
    %v1276 = vsub.f32 1.5, %v1275
    %v1277 = vmul.f32 %v1272, %v1276
    %vm1278 = vweird.f32 %v1270
    %vm1279 = vweird.f32 %v1272
    %vm1280 = vmor %vm1278, %vm1279
    %v1281 = vsel %vm1280, %v1272, %v1277
    %v1282 = vrsqrt.pop %v1271
    %v1283 = vmul.f32 %v1282, %v1271
    %v1284 = vmul.f32 %v1283, %v1282
    %v1285 = vmul.f32 0.5, %v1284
    %v1286 = vsub.f32 1.5, %v1285
    %v1287 = vmul.f32 %v1282, %v1286
    %vm1288 = vweird.f32 %v1271
    %vm1289 = vweird.f32 %v1282
    %vm1290 = vmor %vm1288, %vm1289
    %v1291 = vsel %vm1290, %v1282, %v1287
    %v1292 = vmul.f32 %v1258, %v1281
    %v1293 = vmul.f32 %v1259, %v1291
    %v1294 = vld [vmem:[%s6] sm:$0x1]
    %v1296 = vperm.slane %v1294, 0
    %v1298 = vmul.f32 %v1292, %v1296
    %v1299 = vmul.f32 %v1293, %v1296
    %v1300 = vld [vmem:[%s7] sm:$0x1]
    %v1302 = vperm.slane %v1300, 0
    %v1304 = vadd.f32 %v1298, %v1302
    %v1305 = vadd.f32 %v1299, %v1302
    %v1306 = vpack.c.bf16 %v1305, %v1304
    %v1307 = vld [vmem:[%s8] sm:$0xf]
    %v1308 = vld [vmem:[%s8 + $0x4] sm:$0xf]
    %v1309 = vld [vmem:[%s8 + $0x8] sm:$0xf]
    %v1310 = vld [vmem:[%s8 + $0xc] sm:$0xf]
    %v1311 = vld [vmem:[%s9] sm:$0x1]
    %v1313 = vperm.slane %v1311, 0
    %v1319 = vunpack.c.l.b16 %v1307
    %v1320 = vunpack.c.l.b16 %v1308
    %v1321 = vunpack.c.l.b16 %v1309
    %v1322 = vunpack.c.l.b16 %v1310
    %v1323 = vpack.c.b16 %v1320, %v1319
    %v1324 = vpack.c.b16 %v1322, %v1321
    %v1328 = vsel %vm48, %v1306, 0
    %1330 = vmatpush.bf16.msra.mxu0 0
    %1331 = vmatpush.bf16.msra.mxu0 0
    %1332 = vmatpush.bf16.msra.mxu0 0
    %1333 = vmatpush.bf16.msra.mxu0 0
    %1334 = vmatpush.bf16.msra.mxu0 0
    %1335 = vmatpush.bf16.msra.mxu0 0
    %1336 = vmatpush.bf16.msra.mxu0 %v1324
    %1337 = vmatpush.bf16.msra.mxu0 %v1323
    %1338 = vmatmul.bf16.gmra.mxu0 %v1328
    %v1339 = vpop.f32.mrf.mxu0
    %v1340 = vadd.f32 %v1313, %v1339
    %v1341 = vpop.f32.mrf.mxu0
    %v1342 = vadd.f32 %v1313, %v1341
    %1343 = vdwg.mxu0
    %v1344 = vmul.f32 %v1340, 0.5
    %v1345 = vmul.f32 %v1342, 0.5
    %v1346 = vmul.f32 %v1340, 0.044715
    %v1347 = vmul.f32 %v1342, 0.044715
    %v1348 = vmul.f32 %v1346, %v1340
    %v1349 = vmul.f32 %v1347, %v1342
    %v1350 = vmul.f32 %v1348, %v1340
    %v1351 = vmul.f32 %v1349, %v1342
    %v1352 = vadd.f32 %v1340, %v1350
    %v1353 = vadd.f32 %v1342, %v1351
    %v1354 = vmul.f32 %v1352, 0.7978846
    %v1355 = vmul.f32 %v1353, 0.7978846
    %v1356 = vtanh.pop %v1354
    %v1357 = vtanh.pop %v1355
    %v1358 = vadd.f32 %v1356, 1.0
    %v1359 = vadd.f32 %v1357, 1.0
    %v1360 = vmul.f32 %v1344, %v1358
    %v1361 = vmul.f32 %v1345, %v1359
    %v1362 = vpack.c.bf16 %v1361, %v1360
    %v1363 = vld [vmem:[%s10] sm:$0xf]
    %v1364 = vld [vmem:[%s10 + $0x4] sm:$0xf]
    %v1365 = vld [vmem:[%s10 + $0x8] sm:$0xf]
    %v1366 = vld [vmem:[%s10 + $0xc] sm:$0xf]
    %v1367 = vld [vmem:[%s10 + $0x10] sm:$0xf]
    %v1368 = vld [vmem:[%s10 + $0x14] sm:$0xf]
    %v1369 = vld [vmem:[%s10 + $0x18] sm:$0xf]
    %v1370 = vld [vmem:[%s10 + $0x1c] sm:$0xf]
    %v1371 = vld [vmem:[%s10 + $0x20] sm:$0xf]
    %v1372 = vld [vmem:[%s10 + $0x24] sm:$0xf]
    %v1373 = vld [vmem:[%s10 + $0x28] sm:$0xf]
    %v1374 = vld [vmem:[%s10 + $0x2c] sm:$0xf]
    %v1375 = vld [vmem:[%s10 + $0x30] sm:$0xf]
    %v1376 = vld [vmem:[%s10 + $0x34] sm:$0xf]
    %v1377 = vld [vmem:[%s10 + $0x38] sm:$0xf]
    %v1378 = vld [vmem:[%s10 + $0x3c] sm:$0xf]
    %v1379 = vld [vmem:[%s11] sm:$0x1]
    %v1381 = vperm.slane %v1379, 0
    %v1399 = vunpack.c.l.b16 %v1363
    %v1400 = vunpack.c.l.b16 %v1364
    %v1401 = vunpack.c.l.b16 %v1365
    %v1402 = vunpack.c.l.b16 %v1366
    %v1403 = vunpack.c.l.b16 %v1367
    %v1404 = vunpack.c.l.b16 %v1368
    %v1405 = vunpack.c.l.b16 %v1369
    %v1406 = vunpack.c.l.b16 %v1370
    %v1407 = vunpack.c.l.b16 %v1371
    %v1408 = vunpack.c.l.b16 %v1372
    %v1409 = vunpack.c.l.b16 %v1373
    %v1410 = vunpack.c.l.b16 %v1374
    %v1411 = vunpack.c.l.b16 %v1375
    %v1412 = vunpack.c.l.b16 %v1376
    %v1413 = vunpack.c.l.b16 %v1377
    %v1414 = vunpack.c.l.b16 %v1378
    %v1415 = vpack.c.b16 %v1400, %v1399
    %v1416 = vpack.c.b16 %v1402, %v1401
    %v1417 = vpack.c.b16 %v1404, %v1403
    %v1418 = vpack.c.b16 %v1406, %v1405
    %v1419 = vpack.c.b16 %v1408, %v1407
    %v1420 = vpack.c.b16 %v1410, %v1409
    %v1421 = vpack.c.b16 %v1412, %v1411
    %v1422 = vpack.c.b16 %v1414, %v1413
    %1431 = vmatpush.bf16.msra.mxu0 %v1422
    %1432 = vmatpush.bf16.msra.mxu0 %v1421
    %1433 = vmatpush.bf16.msra.mxu0 %v1420
    %1434 = vmatpush.bf16.msra.mxu0 %v1419
    %1435 = vmatpush.bf16.msra.mxu0 %v1418
    %1436 = vmatpush.bf16.msra.mxu0 %v1417
    %1437 = vmatpush.bf16.msra.mxu0 %v1416
    %1438 = vmatpush.bf16.msra.mxu0 %v1415
    %1439 = vmatmul.bf16.gmra.mxu0 %v1362
    %v1440 = vpop.f32.mrf.mxu0
    %v1441 = vadd.f32 %v1381, %v1440
    %v1442 = vpop.f32.mrf.mxu0
    %v1443 = vadd.f32 %v1381, %v1442
    %1444 = vdwg.mxu0
    %v1445 = vadd.f32 %v1248, %v1441
    %v1446 = vadd.f32 %v1249, %v1443
    %1447 = vst.msk [vmem:[#allocation2] sm:$0xff] %vm48, %v1445
    %1448 = vst.msk [vmem:[#allocation2 + $0x8] sm:$0xff] %vm48, %v1446
    // Predicated region
    $region50: #{tpu_custom_call.1} parent=1 // pred_check
      _
    $region51: #{tpu_custom_call.1} parent=1 // pred_check_branch
      %1450 = sbr.rel (0) target = $region53
    $region52: #{tpu_custom_call.1} parent=1 // pred_region
      %1452 = vsyncadd [#allocation3], 0
      %s1453 = sshll.u32 [#allocation2], 4
      %s1454 = int_to_ptr.vmem [resolvable:$true] %s1453
      %s1455 = sshll.u32 %s12, 4
      %s1456 = int_to_ptr.hbm [resolvable:$true] %s1455
      %1461 = dma.vmem_to_hbm [thread:$0]  %s1454, 256, %s1456, [#allocation3], 128, 128, 8
    $region53: #{tpu_custom_call.1} parent=1 // pred_fallthru
      _
    // Predicated region
    $region54: #{tpu_custom_call.1} parent=1 // pred_check
      _
    $region55: #{tpu_custom_call.1} parent=1 // pred_check_branch
      %1463 = sbr.rel (0) target = $region57
    $region56: #{tpu_custom_call.1} parent=1 // pred_region
      %1465 = vsyncadd [#allocation5], 0
      %s1466 = sshll.u32 [#allocation4], 4
      %s1467 = int_to_ptr.vmem [resolvable:$true] %s1466
      %s1468 = sshll.u32 %s13, 4
      %s1469 = int_to_ptr.hbm [resolvable:$true] %s1468
      %1474 = dma.vmem_to_hbm [thread:$0]  %s1467, 1024, %s1469, [#allocation5], 128, 128, 8
    $region57: #{tpu_custom_call.1} parent=1 // pred_fallthru
      _
    // Predicated region
    $region58: #{tpu_custom_call.1} parent=1 // pred_check
      _
    $region59: #{tpu_custom_call.1} parent=1 // pred_check_branch
      %1476 = sbr.rel (0) target = $region61
    $region60: #{tpu_custom_call.1} parent=1 // pred_region
      %1478 = dma.done [#allocation3], 256
    $region61: #{tpu_custom_call.1} parent=1 // pred_fallthru
      _
    // Predicated region
    $region62: #{tpu_custom_call.1} parent=1 // pred_check
      _
    $region63: #{tpu_custom_call.1} parent=1 // pred_check_branch
      %1480 = sbr.rel (0) target = $region65
    $region64: #{tpu_custom_call.1} parent=1 // pred_region
      %1482 = dma.done [#allocation5], 1024
    $region65: #{tpu_custom_call.1} parent=1 // pred_fallthru
      _
    %1483 = vsyncpa [#allocation3], 1
    %1484 = vsyncpa [#allocation5], 1

// kernel: tpu_custom_call.1
$region0: #{tpu_custom_call.1}
  #allocation0 [shape = 'u32[]', space=smem, size = 0x4, offset = 0x4, fixed_abs, tag = 'smem constant byte address 0x4 - core index']
  #allocation1 [shape = 'u32[72,128]{1,0:T(1,128)}', space=vmem, size = 0x9000, scoped, tag = 'internal scratch']
  %s0 = inlined_call_operand.vmem [shape: f32[16,32], index: 0, kind: input, shape index: {}]
  %s1 = inlined_call_operand.vmem [shape: f32[1,32], index: 1, kind: input, shape index: {}]
  %s2 = inlined_call_operand.vmem [shape: f32[1,32], index: 2, kind: input, shape index: {}]
  %s3 = inlined_call_operand.vmem [shape: bf16[32,96], index: 3, kind: input, shape index: {}]
  %s4 = inlined_call_operand.vmem [shape: bf16[32,32], index: 4, kind: input, shape index: {}]
  %s5 = inlined_call_operand.vmem [shape: f32[1,32], index: 5, kind: input, shape index: {}]
  %s6 = inlined_call_operand.vmem [shape: f32[1,32], index: 6, kind: input, shape index: {}]
  %s7 = inlined_call_operand.vmem [shape: f32[1,32], index: 7, kind: input, shape index: {}]
  %s8 = inlined_call_operand.vmem [shape: bf16[32,128], index: 8, kind: input, shape index: {}]
  %s9 = inlined_call_operand.vmem [shape: f32[1,128], index: 9, kind: input, shape index: {}]
  %s10 = inlined_call_operand.vmem [shape: bf16[128,32], index: 10, kind: input, shape index: {}]
  %s11 = inlined_call_operand.vmem [shape: f32[1,32], index: 11, kind: input, shape index: {}]
  %s12 = inlined_call_operand.hbm [shape: f32[16,32], index: 12, kind: output, shape index: {0}]
  %s13 = inlined_call_operand.hbm [shape: f32[2,4,8,8], index: 13, kind: output, shape index: {1}]
  %14 = xla_tuple %s12, %s13
  %s15 = sld [smem:[#allocation0]]
  $region66: #{tpu_custom_call.1} parent=0
    _
  %s17 = ssub.s32 1, %s15
  %s18 = scalar_select 0, %s17, %s15
  $region1: #{tpu_custom_call.1} parent=0
    #allocation2 [shape = 'u8[8192]{0}', space=vmem, size = 0x2000, scoped, tag = 'output window, operand 0, single buffered']
    #allocation3 [shape = 's32[1]{0}', space=sflag, size = 0x4, scoped, tag = 'scoped memory for tpu_custom_call.1']
    #allocation4 [shape = 'u8[32768]{0}', space=vmem, size = 0x8000, scoped, tag = 'output window, operand 1, single buffered']
    #allocation5 [shape = 's32[1]{0}', space=sflag, size = 0x4, scoped, tag = 'scoped memory for tpu_custom_call.1']
    %19 = vsyncpa [#allocation3], 0
    %20 = vsyncpa [#allocation5], 0
    // Predicated region
    $region2: #{tpu_custom_call.1} parent=1 // pred_check
      _
    $region3: #{tpu_custom_call.1} parent=1 // pred_check_branch
      %22 = sbr.rel (0) target = $region5
    $region4: #{tpu_custom_call.1} parent=1 // pred_region
      _
    $region5: #{tpu_custom_call.1} parent=1 // pred_fallthru
      _
    // Predicated region
    $region6: #{tpu_custom_call.1} parent=1 // pred_check
      _
    $region7: #{tpu_custom_call.1} parent=1 // pred_check_branch
      %24 = sbr.rel (0) target = $region9
    $region8: #{tpu_custom_call.1} parent=1 // pred_region
      _
    $region9: #{tpu_custom_call.1} parent=1 // pred_fallthru
      _
    // Predicated region
    $region10: #{tpu_custom_call.1} parent=1 // pred_check
      _
    $region11: #{tpu_custom_call.1} parent=1 // pred_check_branch
      %26 = sbr.rel (0) target = $region13
    $region12: #{tpu_custom_call.1} parent=1 // pred_region
      _
    $region13: #{tpu_custom_call.1} parent=1 // pred_fallthru
      _
    // Predicated region
    $region14: #{tpu_custom_call.1} parent=1 // pred_check
      _
    $region15: #{tpu_custom_call.1} parent=1 // pred_check_branch
      %28 = sbr.rel (0) target = $region17
    $region16: #{tpu_custom_call.1} parent=1 // pred_region
      _
    $region17: #{tpu_custom_call.1} parent=1 // pred_fallthru
      _
    // Predicated region
    $region18: #{tpu_custom_call.1} parent=1 // pred_check
      _
    $region19: #{tpu_custom_call.1} parent=1 // pred_check_branch
      %30 = sbr.rel (0) target = $region21
    $region20: #{tpu_custom_call.1} parent=1 // pred_region
      _
    $region21: #{tpu_custom_call.1} parent=1 // pred_fallthru
      _
    // Predicated region
    $region22: #{tpu_custom_call.1} parent=1 // pred_check
      _
    $region23: #{tpu_custom_call.1} parent=1 // pred_check_branch
      %32 = sbr.rel (0) target = $region25
    $region24: #{tpu_custom_call.1} parent=1 // pred_region
      _
    $region25: #{tpu_custom_call.1} parent=1 // pred_fallthru
      _
    // Predicated region
    $region26: #{tpu_custom_call.1} parent=1 // pred_check
      _
    $region27: #{tpu_custom_call.1} parent=1 // pred_check_branch
      %34 = sbr.rel (0) target = $region29
    $region28: #{tpu_custom_call.1} parent=1 // pred_region
      _
    $region29: #{tpu_custom_call.1} parent=1 // pred_fallthru
      _
    // Predicated region
    $region30: #{tpu_custom_call.1} parent=1 // pred_check
      _
    $region31: #{tpu_custom_call.1} parent=1 // pred_check_branch
      %36 = sbr.rel (0) target = $region33
    $region32: #{tpu_custom_call.1} parent=1 // pred_region
      _
    $region33: #{tpu_custom_call.1} parent=1 // pred_fallthru
      _
    // Predicated region
    $region34: #{tpu_custom_call.1} parent=1 // pred_check
      _
    $region35: #{tpu_custom_call.1} parent=1 // pred_check_branch
      %38 = sbr.rel (0) target = $region37
    $region36: #{tpu_custom_call.1} parent=1 // pred_region
      _
    $region37: #{tpu_custom_call.1} parent=1 // pred_fallthru
      _
    // Predicated region
    $region38: #{tpu_custom_call.1} parent=1 // pred_check
      _
    $region39: #{tpu_custom_call.1} parent=1 // pred_check_branch
      %40 = sbr.rel (0) target = $region41
    $region40: #{tpu_custom_call.1} parent=1 // pred_region
      _
    $region41: #{tpu_custom_call.1} parent=1 // pred_fallthru
      _
    // Predicated region
    $region42: #{tpu_custom_call.1} parent=1 // pred_check
      _
    $region43: #{tpu_custom_call.1} parent=1 // pred_check_branch
      %42 = sbr.rel (0) target = $region45
    $region44: #{tpu_custom_call.1} parent=1 // pred_region
      _
    $region45: #{tpu_custom_call.1} parent=1 // pred_fallthru
      _
    // Predicated region
    $region46: #{tpu_custom_call.1} parent=1 // pred_check
      _
    $region47: #{tpu_custom_call.1} parent=1 // pred_check_branch
      %44 = sbr.rel (0) target = $region49
    $region48: #{tpu_custom_call.1} parent=1 // pred_region
      _
    $region49: #{tpu_custom_call.1} parent=1 // pred_fallthru
      _
    %v46 = vld [vmem:[%s0] sm:$0xff]
    %v47 = vld [vmem:[%s0 + $0x8] sm:$0xff]
    %vm48 = vcmask 261120
    %v49 = vsel %vm48, %v46, 0.0
    %50 = vadd.xlane.f32.xlu0 %v49
    %v51 = vpop.xlane.xlu0 %50
    %v52 = vsel %vm48, %v47, 0.0
    %53 = vadd.xlane.f32.xlu0 %v52
    %v54 = vpop.xlane.xlu0 %53
    %v55 = vrcp.pop 32.0
    %v56 = vmul.f32 32.0, %v55
    %v57 = vsub.f32 1.0, %v56
    %v58 = vmul.f32 %v55, %v57
    %v59 = vadd.f32 %v55, %v58
    %vm60 = vweird.f32 %v55
    %v61 = vsel %vm60, %v55, %v59
    %v62 = vmul.f32 %v51, %v61
    %v63 = vmul.f32 %v54, %v61
    %v64 = vsub.f32 %v46, %v62
    %v65 = vsub.f32 %v47, %v63
    %v66 = vmul.f32 %v64, %v64
    %v67 = vmul.f32 %v65, %v65
    %v68 = vsel %vm48, %v66, 0.0
    %69 = vadd.xlane.f32.xlu0 %v68
    %v70 = vpop.xlane.xlu0 %69
    %v71 = vsel %vm48, %v67, 0.0
    %72 = vadd.xlane.f32.xlu0 %v71
    %v73 = vpop.xlane.xlu0 %72
    %v74 = vmul.f32 %v70, %v61
    %v75 = vmul.f32 %v73, %v61
    %v76 = vadd.f32 %v74, 1e-05
    %v77 = vadd.f32 %v75, 1e-05
    %v78 = vrsqrt.pop %v76
    %v79 = vmul.f32 %v78, %v76
    %v80 = vmul.f32 %v79, %v78
    %v81 = vmul.f32 0.5, %v80
    %v82 = vsub.f32 1.5, %v81
    %v83 = vmul.f32 %v78, %v82
    %vm84 = vweird.f32 %v76
    %vm85 = vweird.f32 %v78
    %vm86 = vmor %vm84, %vm85
    %v87 = vsel %vm86, %v78, %v83
    %v88 = vrsqrt.pop %v77
    %v89 = vmul.f32 %v88, %v77
    %v90 = vmul.f32 %v89, %v88
    %v91 = vmul.f32 0.5, %v90
    %v92 = vsub.f32 1.5, %v91
    %v93 = vmul.f32 %v88, %v92
    %vm94 = vweird.f32 %v77
    %vm95 = vweird.f32 %v88
    %vm96 = vmor %vm94, %vm95
    %v97 = vsel %vm96, %v88, %v93
    %v98 = vmul.f32 %v64, %v87
    %v99 = vmul.f32 %v65, %v97
    %v100 = vld [vmem:[%s1] sm:$0x1]
    %v102 = vperm.slane %v100, 0
    %v104 = vmul.f32 %v98, %v102
    %v105 = vmul.f32 %v99, %v102
    %v106 = vld [vmem:[%s2] sm:$0x1]
    %v108 = vperm.slane %v106, 0
    %v110 = vadd.f32 %v104, %v108
    %v111 = vadd.f32 %v105, %v108
    %v112 = vpack.c.bf16 %v111, %v110
    %v113 = vld [vmem:[%s3] sm:$0xf]
    %v114 = vld [vmem:[%s3 + $0x4] sm:$0xf]
    %v115 = vld [vmem:[%s3 + $0x8] sm:$0xf]
    %v116 = vld [vmem:[%s3 + $0xc] sm:$0xf]
    %v121 = vunpack.c.l.b16 %v113
    %v122 = vunpack.c.l.b16 %v114
    %v123 = vunpack.c.l.b16 %v115
    %v124 = vunpack.c.l.b16 %v116
    %v125 = vpack.c.b16 %v122, %v121
    %v126 = vpack.c.b16 %v124, %v123
    %v130 = vsel %vm48, %v112, 0
    %132 = vmatpush.bf16.msra.mxu0 0
    %133 = vmatpush.bf16.msra.mxu0 0
    %134 = vmatpush.bf16.msra.mxu0 0
    %135 = vmatpush.bf16.msra.mxu0 0
    %136 = vmatpush.bf16.msra.mxu0 0
    %137 = vmatpush.bf16.msra.mxu0 0
    %138 = vmatpush.bf16.msra.mxu0 %v126
    %139 = vmatpush.bf16.msra.mxu0 %v125
    %140 = vmatmul.bf16.gmra.mxu0 %v130
    %v141 = vpop.f32.mrf.mxu0
    %v142 = vadd.f32 0.0, %v141
    %v143 = vpop.f32.mrf.mxu0
    %v144 = vadd.f32 0.0, %v143
    %145 = vdwg.mxu0
    %146 = vxpose.xlu0.b32.start [1/16] %v142, 128
    %147 = vxpose.xlu0.b32.cont [2/16] 0.0, 128
    %148 = vxpose.xlu0.b32.cont [3/16] 0.0, 128
    %149 = vxpose.xlu0.b32.cont [4/16] 0.0, 128
    %150 = vxpose.xlu0.b32.cont [5/16] 0.0, 128
    %151 = vxpose.xlu0.b32.cont [6/16] 0.0, 128
    %152 = vxpose.xlu0.b32.cont [7/16] 0.0, 128
    %153 = vxpose.xlu0.b32.cont [8/16] 0.0, 128
    %154 = vxpose.xlu0.b32.cont [9/16] 0.0, 128
    %155 = vxpose.xlu0.b32.cont [10/16] 0.0, 128
    %156 = vxpose.xlu0.b32.cont [11/16] 0.0, 128
    %157 = vxpose.xlu0.b32.cont [12/16] 0.0, 128
    %158 = vxpose.xlu0.b32.cont [13/16] 0.0, 128
    %159 = vxpose.xlu0.b32.cont [14/16] 0.0, 128
    %160 = vxpose.xlu0.b32.cont [15/16] 0.0, 128
    %161 = vxpose.xlu0.b32.end [16/16] 0.0, 128
    %v162 = vpop.trf.xlu0
    %v163 = vpop.trf.xlu0
    %v164 = vpop.trf.xlu0
    %v165 = vpop.trf.xlu0
    %v166 = vpop.trf.xlu0
    %v167 = vpop.trf.xlu0
    %v168 = vpop.trf.xlu0
    %v169 = vpop.trf.xlu0
    %v170 = vpop.trf.xlu0
    %v171 = vpop.trf.xlu0
    %v172 = vpop.trf.xlu0
    %v173 = vpop.trf.xlu0
    %v174 = vpop.trf.xlu0
    %v175 = vpop.trf.xlu0
    %v176 = vpop.trf.xlu0
    %v177 = vpop.trf.xlu0
    %178 = vxpose.xlu0.b32.start [1/16] %v144, 128
    %179 = vxpose.xlu0.b32.cont [2/16] 0.0, 128
    %180 = vxpose.xlu0.b32.cont [3/16] 0.0, 128
    %181 = vxpose.xlu0.b32.cont [4/16] 0.0, 128
    %182 = vxpose.xlu0.b32.cont [5/16] 0.0, 128
    %183 = vxpose.xlu0.b32.cont [6/16] 0.0, 128
    %184 = vxpose.xlu0.b32.cont [7/16] 0.0, 128
    %185 = vxpose.xlu0.b32.cont [8/16] 0.0, 128
    %186 = vxpose.xlu0.b32.cont [9/16] 0.0, 128
    %187 = vxpose.xlu0.b32.cont [10/16] 0.0, 128
    %188 = vxpose.xlu0.b32.cont [11/16] 0.0, 128
    %189 = vxpose.xlu0.b32.cont [12/16] 0.0, 128
    %190 = vxpose.xlu0.b32.cont [13/16] 0.0, 128
    %191 = vxpose.xlu0.b32.cont [14/16] 0.0, 128
    %192 = vxpose.xlu0.b32.cont [15/16] 0.0, 128
    %193 = vxpose.xlu0.b32.end [16/16] 0.0, 128
    %v194 = vpop.trf.xlu0
    %v195 = vpop.trf.xlu0
    %v196 = vpop.trf.xlu0
    %v197 = vpop.trf.xlu0
    %v198 = vpop.trf.xlu0
    %v199 = vpop.trf.xlu0
    %v200 = vpop.trf.xlu0
    %v201 = vpop.trf.xlu0
    %v202 = vpop.trf.xlu0
    %v203 = vpop.trf.xlu0
    %v204 = vpop.trf.xlu0
    %v205 = vpop.trf.xlu0
    %v206 = vpop.trf.xlu0
    %v207 = vpop.trf.xlu0
    %v208 = vpop.trf.xlu0
    %v209 = vpop.trf.xlu0
    %212 = vrot.lane.b32.xlu0 %v142, 96
    %v213 = vpop.permute.xlu0 %212
    %214 = vrot.lane.b32.xlu0 %v144, 96
    %v215 = vpop.permute.xlu0 %214
    %218 = vxpose.xlu0.b32.start [1/16] %v213, 128
    %219 = vxpose.xlu0.b32.cont [2/16] 0.0, 128
    %220 = vxpose.xlu0.b32.cont [3/16] 0.0, 128
    %221 = vxpose.xlu0.b32.cont [4/16] 0.0, 128
    %222 = vxpose.xlu0.b32.cont [5/16] 0.0, 128
    %223 = vxpose.xlu0.b32.cont [6/16] 0.0, 128
    %224 = vxpose.xlu0.b32.cont [7/16] 0.0, 128
    %225 = vxpose.xlu0.b32.cont [8/16] 0.0, 128
    %226 = vxpose.xlu0.b32.cont [9/16] 0.0, 128
    %227 = vxpose.xlu0.b32.cont [10/16] 0.0, 128
    %228 = vxpose.xlu0.b32.cont [11/16] 0.0, 128
    %229 = vxpose.xlu0.b32.cont [12/16] 0.0, 128
    %230 = vxpose.xlu0.b32.cont [13/16] 0.0, 128
    %231 = vxpose.xlu0.b32.cont [14/16] 0.0, 128
    %232 = vxpose.xlu0.b32.cont [15/16] 0.0, 128
    %233 = vxpose.xlu0.b32.end [16/16] 0.0, 128
    %v234 = vpop.trf.xlu0
    %v235 = vpop.trf.xlu0
    %v236 = vpop.trf.xlu0
    %v237 = vpop.trf.xlu0
    %v238 = vpop.trf.xlu0
    %v239 = vpop.trf.xlu0
    %v240 = vpop.trf.xlu0
    %v241 = vpop.trf.xlu0
    %v242 = vpop.trf.xlu0
    %v243 = vpop.trf.xlu0
    %v244 = vpop.trf.xlu0
    %v245 = vpop.trf.xlu0
    %v246 = vpop.trf.xlu0
    %v247 = vpop.trf.xlu0
    %v248 = vpop.trf.xlu0
    %v249 = vpop.trf.xlu0
    %250 = vxpose.xlu0.b32.start [1/16] %v215, 128
    %251 = vxpose.xlu0.b32.cont [2/16] 0.0, 128
    %252 = vxpose.xlu0.b32.cont [3/16] 0.0, 128
    %253 = vxpose.xlu0.b32.cont [4/16] 0.0, 128
    %254 = vxpose.xlu0.b32.cont [5/16] 0.0, 128
    %255 = vxpose.xlu0.b32.cont [6/16] 0.0, 128
    %256 = vxpose.xlu0.b32.cont [7/16] 0.0, 128
    %257 = vxpose.xlu0.b32.cont [8/16] 0.0, 128
    %258 = vxpose.xlu0.b32.cont [9/16] 0.0, 128
    %259 = vxpose.xlu0.b32.cont [10/16] 0.0, 128
    %260 = vxpose.xlu0.b32.cont [11/16] 0.0, 128
    %261 = vxpose.xlu0.b32.cont [12/16] 0.0, 128
    %262 = vxpose.xlu0.b32.cont [13/16] 0.0, 128
    %263 = vxpose.xlu0.b32.cont [14/16] 0.0, 128
    %264 = vxpose.xlu0.b32.cont [15/16] 0.0, 128
    %265 = vxpose.xlu0.b32.end [16/16] 0.0, 128
    %v266 = vpop.trf.xlu0
    %v267 = vpop.trf.xlu0
    %v268 = vpop.trf.xlu0
    %v269 = vpop.trf.xlu0
    %v270 = vpop.trf.xlu0
    %v271 = vpop.trf.xlu0
    %v272 = vpop.trf.xlu0
    %v273 = vpop.trf.xlu0
    %v274 = vpop.trf.xlu0
    %v275 = vpop.trf.xlu0
    %v276 = vpop.trf.xlu0
    %v277 = vpop.trf.xlu0
    %v278 = vpop.trf.xlu0
    %v279 = vpop.trf.xlu0
    %v280 = vpop.trf.xlu0
    %v281 = vpop.trf.xlu0
    %282 = vrot.lane.b32.xlu0 %v142, 64
    %v283 = vpop.permute.xlu0 %282
    %284 = vrot.lane.b32.xlu0 %v144, 64
    %v285 = vpop.permute.xlu0 %284
    %288 = vxpose.xlu0.b32.start [1/16] %v283, 128
    %289 = vxpose.xlu0.b32.cont [2/16] 0.0, 128
    %290 = vxpose.xlu0.b32.cont [3/16] 0.0, 128
    %291 = vxpose.xlu0.b32.cont [4/16] 0.0, 128
    %292 = vxpose.xlu0.b32.cont [5/16] 0.0, 128
    %293 = vxpose.xlu0.b32.cont [6/16] 0.0, 128
    %294 = vxpose.xlu0.b32.cont [7/16] 0.0, 128
    %295 = vxpose.xlu0.b32.cont [8/16] 0.0, 128
    %296 = vxpose.xlu0.b32.cont [9/16] 0.0, 128
    %297 = vxpose.xlu0.b32.cont [10/16] 0.0, 128
    %298 = vxpose.xlu0.b32.cont [11/16] 0.0, 128
    %299 = vxpose.xlu0.b32.cont [12/16] 0.0, 128
    %300 = vxpose.xlu0.b32.cont [13/16] 0.0, 128
    %301 = vxpose.xlu0.b32.cont [14/16] 0.0, 128
    %302 = vxpose.xlu0.b32.cont [15/16] 0.0, 128
    %303 = vxpose.xlu0.b32.end [16/16] 0.0, 128
    %v304 = vpop.trf.xlu0
    %v305 = vpop.trf.xlu0
    %v306 = vpop.trf.xlu0
    %v307 = vpop.trf.xlu0
    %v308 = vpop.trf.xlu0
    %v309 = vpop.trf.xlu0
    %v310 = vpop.trf.xlu0
    %v311 = vpop.trf.xlu0
    %v312 = vpop.trf.xlu0
    %v313 = vpop.trf.xlu0
    %v314 = vpop.trf.xlu0
    %v315 = vpop.trf.xlu0
    %v316 = vpop.trf.xlu0
    %v317 = vpop.trf.xlu0
    %v318 = vpop.trf.xlu0
    %v319 = vpop.trf.xlu0
    %320 = vxpose.xlu0.b32.start [1/16] %v285, 128
    %321 = vxpose.xlu0.b32.cont [2/16] 0.0, 128
    %322 = vxpose.xlu0.b32.cont [3/16] 0.0, 128
    %323 = vxpose.xlu0.b32.cont [4/16] 0.0, 128
    %324 = vxpose.xlu0.b32.cont [5/16] 0.0, 128
    %325 = vxpose.xlu0.b32.cont [6/16] 0.0, 128
    %326 = vxpose.xlu0.b32.cont [7/16] 0.0, 128
    %327 = vxpose.xlu0.b32.cont [8/16] 0.0, 128
    %328 = vxpose.xlu0.b32.cont [9/16] 0.0, 128
    %329 = vxpose.xlu0.b32.cont [10/16] 0.0, 128
    %330 = vxpose.xlu0.b32.cont [11/16] 0.0, 128
    %331 = vxpose.xlu0.b32.cont [12/16] 0.0, 128
    %332 = vxpose.xlu0.b32.cont [13/16] 0.0, 128
    %333 = vxpose.xlu0.b32.cont [14/16] 0.0, 128
    %334 = vxpose.xlu0.b32.cont [15/16] 0.0, 128
    %335 = vxpose.xlu0.b32.end [16/16] 0.0, 128
    %v336 = vpop.trf.xlu0
    %v337 = vpop.trf.xlu0
    %v338 = vpop.trf.xlu0
    %v339 = vpop.trf.xlu0
    %v340 = vpop.trf.xlu0
    %v341 = vpop.trf.xlu0
    %v342 = vpop.trf.xlu0
    %v343 = vpop.trf.xlu0
    %v344 = vpop.trf.xlu0
    %v345 = vpop.trf.xlu0
    %v346 = vpop.trf.xlu0
    %v347 = vpop.trf.xlu0
    %v348 = vpop.trf.xlu0
    %v349 = vpop.trf.xlu0
    %v350 = vpop.trf.xlu0
    %v351 = vpop.trf.xlu0
    %352 = vxpose.xlu0.b32.start [1/16] %v162, 128
    %353 = vxpose.xlu0.b32.cont [2/16] 0.0, 128
    %354 = vxpose.xlu0.b32.cont [3/16] 0.0, 128
    %355 = vxpose.xlu0.b32.cont [4/16] 0.0, 128
    %356 = vxpose.xlu0.b32.cont [5/16] 0.0, 128
    %357 = vxpose.xlu0.b32.cont [6/16] 0.0, 128
    %358 = vxpose.xlu0.b32.cont [7/16] 0.0, 128
    %359 = vxpose.xlu0.b32.cont [8/16] 0.0, 128
    %360 = vxpose.xlu0.b32.cont [9/16] 0.0, 128
    %361 = vxpose.xlu0.b32.cont [10/16] 0.0, 128
    %362 = vxpose.xlu0.b32.cont [11/16] 0.0, 128
    %363 = vxpose.xlu0.b32.cont [12/16] 0.0, 128
    %364 = vxpose.xlu0.b32.cont [13/16] 0.0, 128
    %365 = vxpose.xlu0.b32.cont [14/16] 0.0, 128
    %366 = vxpose.xlu0.b32.cont [15/16] 0.0, 128
    %367 = vxpose.xlu0.b32.end [16/16] 0.0, 128
    %v368 = vpop.trf.xlu0
    %v369 = vpop.trf.xlu0
    %v370 = vpop.trf.xlu0
    %v371 = vpop.trf.xlu0
    %v372 = vpop.trf.xlu0
    %v373 = vpop.trf.xlu0
    %v374 = vpop.trf.xlu0
    %v375 = vpop.trf.xlu0
    %v376 = vpop.trf.xlu0
    %v377 = vpop.trf.xlu0
    %v378 = vpop.trf.xlu0
    %v379 = vpop.trf.xlu0
    %v380 = vpop.trf.xlu0
    %v381 = vpop.trf.xlu0
    %v382 = vpop.trf.xlu0
    %v383 = vpop.trf.xlu0
    %384 = vxpose.xlu0.b32.start [1/16] %v163, 128
    %385 = vxpose.xlu0.b32.cont [2/16] 0.0, 128
    %386 = vxpose.xlu0.b32.cont [3/16] 0.0, 128
    %387 = vxpose.xlu0.b32.cont [4/16] 0.0, 128
    %388 = vxpose.xlu0.b32.cont [5/16] 0.0, 128
    %389 = vxpose.xlu0.b32.cont [6/16] 0.0, 128
    %390 = vxpose.xlu0.b32.cont [7/16] 0.0, 128
    %391 = vxpose.xlu0.b32.cont [8/16] 0.0, 128
    %392 = vxpose.xlu0.b32.cont [9/16] 0.0, 128
    %393 = vxpose.xlu0.b32.cont [10/16] 0.0, 128
    %394 = vxpose.xlu0.b32.cont [11/16] 0.0, 128
    %395 = vxpose.xlu0.b32.cont [12/16] 0.0, 128
    %396 = vxpose.xlu0.b32.cont [13/16] 0.0, 128
    %397 = vxpose.xlu0.b32.cont [14/16] 0.0, 128
    %398 = vxpose.xlu0.b32.cont [15/16] 0.0, 128
    %399 = vxpose.xlu0.b32.end [16/16] 0.0, 128
    %v400 = vpop.trf.xlu0
    %v401 = vpop.trf.xlu0
    %v402 = vpop.trf.xlu0
    %v403 = vpop.trf.xlu0
    %v404 = vpop.trf.xlu0
    %v405 = vpop.trf.xlu0
    %v406 = vpop.trf.xlu0
    %v407 = vpop.trf.xlu0
    %v408 = vpop.trf.xlu0
    %v409 = vpop.trf.xlu0
    %v410 = vpop.trf.xlu0
    %v411 = vpop.trf.xlu0
    %v412 = vpop.trf.xlu0
    %v413 = vpop.trf.xlu0
    %v414 = vpop.trf.xlu0
    %v415 = vpop.trf.xlu0
    %416 = vxpose.xlu0.b32.start [1/16] %v164, 128
    %417 = vxpose.xlu0.b32.cont [2/16] 0.0, 128
    %418 = vxpose.xlu0.b32.cont [3/16] 0.0, 128
    %419 = vxpose.xlu0.b32.cont [4/16] 0.0, 128
    %420 = vxpose.xlu0.b32.cont [5/16] 0.0, 128
    %421 = vxpose.xlu0.b32.cont [6/16] 0.0, 128
    %422 = vxpose.xlu0.b32.cont [7/16] 0.0, 128
    %423 = vxpose.xlu0.b32.cont [8/16] 0.0, 128
    %424 = vxpose.xlu0.b32.cont [9/16] 0.0, 128
    %425 = vxpose.xlu0.b32.cont [10/16] 0.0, 128
    %426 = vxpose.xlu0.b32.cont [11/16] 0.0, 128
    %427 = vxpose.xlu0.b32.cont [12/16] 0.0, 128
    %428 = vxpose.xlu0.b32.cont [13/16] 0.0, 128
    %429 = vxpose.xlu0.b32.cont [14/16] 0.0, 128
    %430 = vxpose.xlu0.b32.cont [15/16] 0.0, 128
    %431 = vxpose.xlu0.b32.end [16/16] 0.0, 128
    %v432 = vpop.trf.xlu0
    %v433 = vpop.trf.xlu0
    %v434 = vpop.trf.xlu0
    %v435 = vpop.trf.xlu0
    %v436 = vpop.trf.xlu0
    %v437 = vpop.trf.xlu0
    %v438 = vpop.trf.xlu0
    %v439 = vpop.trf.xlu0
    %v440 = vpop.trf.xlu0
    %v441 = vpop.trf.xlu0
    %v442 = vpop.trf.xlu0
    %v443 = vpop.trf.xlu0
    %v444 = vpop.trf.xlu0
    %v445 = vpop.trf.xlu0
    %v446 = vpop.trf.xlu0
    %v447 = vpop.trf.xlu0
    %448 = vxpose.xlu0.b32.start [1/16] %v165, 128
    %449 = vxpose.xlu0.b32.cont [2/16] 0.0, 128
    %450 = vxpose.xlu0.b32.cont [3/16] 0.0, 128
    %451 = vxpose.xlu0.b32.cont [4/16] 0.0, 128
    %452 = vxpose.xlu0.b32.cont [5/16] 0.0, 128
    %453 = vxpose.xlu0.b32.cont [6/16] 0.0, 128
    %454 = vxpose.xlu0.b32.cont [7/16] 0.0, 128
    %455 = vxpose.xlu0.b32.cont [8/16] 0.0, 128
    %456 = vxpose.xlu0.b32.cont [9/16] 0.0, 128
    %457 = vxpose.xlu0.b32.cont [10/16] 0.0, 128
    %458 = vxpose.xlu0.b32.cont [11/16] 0.0, 128
    %459 = vxpose.xlu0.b32.cont [12/16] 0.0, 128
    %460 = vxpose.xlu0.b32.cont [13/16] 0.0, 128
    %461 = vxpose.xlu0.b32.cont [14/16] 0.0, 128
    %462 = vxpose.xlu0.b32.cont [15/16] 0.0, 128
    %463 = vxpose.xlu0.b32.end [16/16] 0.0, 128
    %v464 = vpop.trf.xlu0
    %v465 = vpop.trf.xlu0
    %v466 = vpop.trf.xlu0
    %v467 = vpop.trf.xlu0
    %v468 = vpop.trf.xlu0
    %v469 = vpop.trf.xlu0
    %v470 = vpop.trf.xlu0
    %v471 = vpop.trf.xlu0
    %v472 = vpop.trf.xlu0
    %v473 = vpop.trf.xlu0
    %v474 = vpop.trf.xlu0
    %v475 = vpop.trf.xlu0
    %v476 = vpop.trf.xlu0
    %v477 = vpop.trf.xlu0
    %v478 = vpop.trf.xlu0
    %v479 = vpop.trf.xlu0
    %480 = vxpose.xlu0.b32.start [1/16] %v194, 128
    %481 = vxpose.xlu0.b32.cont [2/16] 0.0, 128
    %482 = vxpose.xlu0.b32.cont [3/16] 0.0, 128
    %483 = vxpose.xlu0.b32.cont [4/16] 0.0, 128
    %484 = vxpose.xlu0.b32.cont [5/16] 0.0, 128
    %485 = vxpose.xlu0.b32.cont [6/16] 0.0, 128
    %486 = vxpose.xlu0.b32.cont [7/16] 0.0, 128
    %487 = vxpose.xlu0.b32.cont [8/16] 0.0, 128
    %488 = vxpose.xlu0.b32.cont [9/16] 0.0, 128
    %489 = vxpose.xlu0.b32.cont [10/16] 0.0, 128
    %490 = vxpose.xlu0.b32.cont [11/16] 0.0, 128
    %491 = vxpose.xlu0.b32.cont [12/16] 0.0, 128
    %492 = vxpose.xlu0.b32.cont [13/16] 0.0, 128
    %493 = vxpose.xlu0.b32.cont [14/16] 0.0, 128
    %494 = vxpose.xlu0.b32.cont [15/16] 0.0, 128
    %495 = vxpose.xlu0.b32.end [16/16] 0.0, 128
    %v496 = vpop.trf.xlu0
    %v497 = vpop.trf.xlu0
    %v498 = vpop.trf.xlu0
    %v499 = vpop.trf.xlu0
    %v500 = vpop.trf.xlu0
    %v501 = vpop.trf.xlu0
    %v502 = vpop.trf.xlu0
    %v503 = vpop.trf.xlu0
    %v504 = vpop.trf.xlu0
    %v505 = vpop.trf.xlu0
    %v506 = vpop.trf.xlu0
    %v507 = vpop.trf.xlu0
    %v508 = vpop.trf.xlu0
    %v509 = vpop.trf.xlu0
    %v510 = vpop.trf.xlu0
    %v511 = vpop.trf.xlu0
    %512 = vxpose.xlu0.b32.start [1/16] %v195, 128
    %513 = vxpose.xlu0.b32.cont [2/16] 0.0, 128
    %514 = vxpose.xlu0.b32.cont [3/16] 0.0, 128
    %515 = vxpose.xlu0.b32.cont [4/16] 0.0, 128
    %516 = vxpose.xlu0.b32.cont [5/16] 0.0, 128
    %517 = vxpose.xlu0.b32.cont [6/16] 0.0, 128
    %518 = vxpose.xlu0.b32.cont [7/16] 0.0, 128
    %519 = vxpose.xlu0.b32.cont [8/16] 0.0, 128
    %520 = vxpose.xlu0.b32.cont [9/16] 0.0, 128
    %521 = vxpose.xlu0.b32.cont [10/16] 0.0, 128
    %522 = vxpose.xlu0.b32.cont [11/16] 0.0, 128
    %523 = vxpose.xlu0.b32.cont [12/16] 0.0, 128
    %524 = vxpose.xlu0.b32.cont [13/16] 0.0, 128
    %525 = vxpose.xlu0.b32.cont [14/16] 0.0, 128
    %526 = vxpose.xlu0.b32.cont [15/16] 0.0, 128
    %527 = vxpose.xlu0.b32.end [16/16] 0.0, 128
    %v528 = vpop.trf.xlu0
    %v529 = vpop.trf.xlu0
    %v530 = vpop.trf.xlu0
    %v531 = vpop.trf.xlu0
    %v532 = vpop.trf.xlu0
    %v533 = vpop.trf.xlu0
    %v534 = vpop.trf.xlu0
    %v535 = vpop.trf.xlu0
    %v536 = vpop.trf.xlu0
    %v537 = vpop.trf.xlu0
    %v538 = vpop.trf.xlu0
    %v539 = vpop.trf.xlu0
    %v540 = vpop.trf.xlu0
    %v541 = vpop.trf.xlu0
    %v542 = vpop.trf.xlu0
    %v543 = vpop.trf.xlu0
    %544 = vxpose.xlu0.b32.start [1/16] %v196, 128
    %545 = vxpose.xlu0.b32.cont [2/16] 0.0, 128
    %546 = vxpose.xlu0.b32.cont [3/16] 0.0, 128
    %547 = vxpose.xlu0.b32.cont [4/16] 0.0, 128
    %548 = vxpose.xlu0.b32.cont [5/16] 0.0, 128
    %549 = vxpose.xlu0.b32.cont [6/16] 0.0, 128
    %550 = vxpose.xlu0.b32.cont [7/16] 0.0, 128
    %551 = vxpose.xlu0.b32.cont [8/16] 0.0, 128
    %552 = vxpose.xlu0.b32.cont [9/16] 0.0, 128
    %553 = vxpose.xlu0.b32.cont [10/16] 0.0, 128
    %554 = vxpose.xlu0.b32.cont [11/16] 0.0, 128
    %555 = vxpose.xlu0.b32.cont [12/16] 0.0, 128
    %556 = vxpose.xlu0.b32.cont [13/16] 0.0, 128
    %557 = vxpose.xlu0.b32.cont [14/16] 0.0, 128
    %558 = vxpose.xlu0.b32.cont [15/16] 0.0, 128
    %559 = vxpose.xlu0.b32.end [16/16] 0.0, 128
    %v560 = vpop.trf.xlu0
    %v561 = vpop.trf.xlu0
    %v562 = vpop.trf.xlu0
    %v563 = vpop.trf.xlu0
    %v564 = vpop.trf.xlu0
    %v565 = vpop.trf.xlu0
    %v566 = vpop.trf.xlu0
    %v567 = vpop.trf.xlu0
    %v568 = vpop.trf.xlu0
    %v569 = vpop.trf.xlu0
    %v570 = vpop.trf.xlu0
    %v571 = vpop.trf.xlu0
    %v572 = vpop.trf.xlu0
    %v573 = vpop.trf.xlu0
    %v574 = vpop.trf.xlu0
    %v575 = vpop.trf.xlu0
    %576 = vxpose.xlu0.b32.start [1/16] %v197, 128
    %577 = vxpose.xlu0.b32.cont [2/16] 0.0, 128
    %578 = vxpose.xlu0.b32.cont [3/16] 0.0, 128
    %579 = vxpose.xlu0.b32.cont [4/16] 0.0, 128
    %580 = vxpose.xlu0.b32.cont [5/16] 0.0, 128
    %581 = vxpose.xlu0.b32.cont [6/16] 0.0, 128
    %582 = vxpose.xlu0.b32.cont [7/16] 0.0, 128
    %583 = vxpose.xlu0.b32.cont [8/16] 0.0, 128
    %584 = vxpose.xlu0.b32.cont [9/16] 0.0, 128
    %585 = vxpose.xlu0.b32.cont [10/16] 0.0, 128
    %586 = vxpose.xlu0.b32.cont [11/16] 0.0, 128
    %587 = vxpose.xlu0.b32.cont [12/16] 0.0, 128
    %588 = vxpose.xlu0.b32.cont [13/16] 0.0, 128
    %589 = vxpose.xlu0.b32.cont [14/16] 0.0, 128
    %590 = vxpose.xlu0.b32.cont [15/16] 0.0, 128
    %591 = vxpose.xlu0.b32.end [16/16] 0.0, 128
    %v592 = vpop.trf.xlu0
    %v593 = vpop.trf.xlu0
    %v594 = vpop.trf.xlu0
    %v595 = vpop.trf.xlu0
    %v596 = vpop.trf.xlu0
    %v597 = vpop.trf.xlu0
    %v598 = vpop.trf.xlu0
    %v599 = vpop.trf.xlu0
    %v600 = vpop.trf.xlu0
    %v601 = vpop.trf.xlu0
    %v602 = vpop.trf.xlu0
    %v603 = vpop.trf.xlu0
    %v604 = vpop.trf.xlu0
    %v605 = vpop.trf.xlu0
    %v606 = vpop.trf.xlu0
    %v607 = vpop.trf.xlu0
    %v608 = vpack.c.bf16 %v368, %v368
    %v609 = vpack.c.bf16 %v400, %v400
    %v610 = vpack.c.bf16 %v432, %v432
    %v611 = vpack.c.bf16 %v464, %v464
    %v612 = vpack.c.bf16 %v496, %v496
    %v613 = vpack.c.bf16 %v528, %v528
    %v614 = vpack.c.bf16 %v560, %v560
    %v615 = vpack.c.bf16 %v592, %v592
    %v616 = vpack.c.bf16 %v234, %v234
    %v617 = vpack.c.bf16 %v235, %v235
    %v618 = vpack.c.bf16 %v236, %v236
    %v619 = vpack.c.bf16 %v237, %v237
    %v620 = vpack.c.bf16 %v266, %v266
    %v621 = vpack.c.bf16 %v267, %v267
    %v622 = vpack.c.bf16 %v268, %v268
    %v623 = vpack.c.bf16 %v269, %v269
    %vm624 = vcmask 64512
    %v626 = vsel %vm624, %v608, 0
    %vm628 = vcmask 1043456
    %v630 = vsel %vm628, %v616, 0
    %632 = vmatpush.bf16.msra.mxu0 0
    %633 = vmatpush.bf16.msra.mxu0 0
    %634 = vmatpush.bf16.msra.mxu0 0
    %635 = vmatpush.bf16.msra.mxu0 0
    %636 = vmatpush.bf16.msra.mxu0 0
    %637 = vmatpush.bf16.msra.mxu0 0
    %638 = vmatpush.bf16.msra.mxu0 0
    %639 = vmatpush.bf16.msra.mxu0 %v630
    %640 = vmatmul.bf16.gmra.mxu0 %v626
    %v641 = vpop.f32.mrf.mxu0
    %v642 = vadd.f32 0.0, %v641
    %v643 = vpop.f32.mrf.mxu0
    %644 = vdwg.mxu0
    %v646 = vsel %vm624, %v609, 0
    %v649 = vsel %vm628, %v617, 0
    %651 = vmatpush.bf16.msra.mxu0 0
    %652 = vmatpush.bf16.msra.mxu0 0
    %653 = vmatpush.bf16.msra.mxu0 0
    %654 = vmatpush.bf16.msra.mxu0 0
    %655 = vmatpush.bf16.msra.mxu0 0
    %656 = vmatpush.bf16.msra.mxu0 0
    %657 = vmatpush.bf16.msra.mxu0 0
    %658 = vmatpush.bf16.msra.mxu0 %v649
    %659 = vmatmul.bf16.gmra.mxu0 %v646
    %v660 = vpop.f32.mrf.mxu0
    %v661 = vadd.f32 0.0, %v660
    %v662 = vpop.f32.mrf.mxu0
    %663 = vdwg.mxu0
    %v665 = vsel %vm624, %v610, 0
    %v668 = vsel %vm628, %v618, 0
    %670 = vmatpush.bf16.msra.mxu0 0
    %671 = vmatpush.bf16.msra.mxu0 0
    %672 = vmatpush.bf16.msra.mxu0 0
    %673 = vmatpush.bf16.msra.mxu0 0
    %674 = vmatpush.bf16.msra.mxu0 0
    %675 = vmatpush.bf16.msra.mxu0 0
    %676 = vmatpush.bf16.msra.mxu0 0
    %677 = vmatpush.bf16.msra.mxu0 %v668
    %678 = vmatmul.bf16.gmra.mxu0 %v665
    %v679 = vpop.f32.mrf.mxu0
    %v680 = vadd.f32 0.0, %v679
    %v681 = vpop.f32.mrf.mxu0
    %682 = vdwg.mxu0
    %v684 = vsel %vm624, %v611, 0
    %v687 = vsel %vm628, %v619, 0
    %689 = vmatpush.bf16.msra.mxu0 0
    %690 = vmatpush.bf16.msra.mxu0 0
    %691 = vmatpush.bf16.msra.mxu0 0
    %692 = vmatpush.bf16.msra.mxu0 0
    %693 = vmatpush.bf16.msra.mxu0 0
    %694 = vmatpush.bf16.msra.mxu0 0
    %695 = vmatpush.bf16.msra.mxu0 0
    %696 = vmatpush.bf16.msra.mxu0 %v687
    %697 = vmatmul.bf16.gmra.mxu0 %v684
    %v698 = vpop.f32.mrf.mxu0
    %v699 = vadd.f32 0.0, %v698
    %v700 = vpop.f32.mrf.mxu0
    %701 = vdwg.mxu0
    %v703 = vsel %vm624, %v612, 0
    %v706 = vsel %vm628, %v620, 0
    %708 = vmatpush.bf16.msra.mxu0 0
    %709 = vmatpush.bf16.msra.mxu0 0
    %710 = vmatpush.bf16.msra.mxu0 0
    %711 = vmatpush.bf16.msra.mxu0 0
    %712 = vmatpush.bf16.msra.mxu0 0
    %713 = vmatpush.bf16.msra.mxu0 0
    %714 = vmatpush.bf16.msra.mxu0 0
    %715 = vmatpush.bf16.msra.mxu0 %v706
    %716 = vmatmul.bf16.gmra.mxu0 %v703
    %v717 = vpop.f32.mrf.mxu0
    %v718 = vadd.f32 0.0, %v717
    %v719 = vpop.f32.mrf.mxu0
    %720 = vdwg.mxu0
    %v722 = vsel %vm624, %v613, 0
    %v725 = vsel %vm628, %v621, 0
    %727 = vmatpush.bf16.msra.mxu0 0
    %728 = vmatpush.bf16.msra.mxu0 0
    %729 = vmatpush.bf16.msra.mxu0 0
    %730 = vmatpush.bf16.msra.mxu0 0
    %731 = vmatpush.bf16.msra.mxu0 0
    %732 = vmatpush.bf16.msra.mxu0 0
    %733 = vmatpush.bf16.msra.mxu0 0
    %734 = vmatpush.bf16.msra.mxu0 %v725
    %735 = vmatmul.bf16.gmra.mxu0 %v722
    %v736 = vpop.f32.mrf.mxu0
    %v737 = vadd.f32 0.0, %v736
    %v738 = vpop.f32.mrf.mxu0
    %739 = vdwg.mxu0
    %v741 = vsel %vm624, %v614, 0
    %v744 = vsel %vm628, %v622, 0
    %746 = vmatpush.bf16.msra.mxu0 0
    %747 = vmatpush.bf16.msra.mxu0 0
    %748 = vmatpush.bf16.msra.mxu0 0
    %749 = vmatpush.bf16.msra.mxu0 0
    %750 = vmatpush.bf16.msra.mxu0 0
    %751 = vmatpush.bf16.msra.mxu0 0
    %752 = vmatpush.bf16.msra.mxu0 0
    %753 = vmatpush.bf16.msra.mxu0 %v744
    %754 = vmatmul.bf16.gmra.mxu0 %v741
    %v755 = vpop.f32.mrf.mxu0
    %v756 = vadd.f32 0.0, %v755
    %v757 = vpop.f32.mrf.mxu0
    %758 = vdwg.mxu0
    %v760 = vsel %vm624, %v615, 0
    %v763 = vsel %vm628, %v623, 0
    %765 = vmatpush.bf16.msra.mxu0 0
    %766 = vmatpush.bf16.msra.mxu0 0
    %767 = vmatpush.bf16.msra.mxu0 0
    %768 = vmatpush.bf16.msra.mxu0 0
    %769 = vmatpush.bf16.msra.mxu0 0
    %770 = vmatpush.bf16.msra.mxu0 0
    %771 = vmatpush.bf16.msra.mxu0 0
    %772 = vmatpush.bf16.msra.mxu0 %v763
    %773 = vmatmul.bf16.gmra.mxu0 %v760
    %v774 = vpop.f32.mrf.mxu0
    %v775 = vadd.f32 0.0, %v774
    %v776 = vpop.f32.mrf.mxu0
    %777 = vdwg.mxu0
    %v778 = vsel %vm624, %v642, -inf
    %779 = vmax.xlane.f32.xlu0 %v778
    %v780 = vpop.xlane.xlu0 %779
    %v781 = vsel %vm624, %v661, -inf
    %782 = vmax.xlane.f32.xlu0 %v781
    %v783 = vpop.xlane.xlu0 %782
    %v784 = vsel %vm624, %v680, -inf
    %785 = vmax.xlane.f32.xlu0 %v784
    %v786 = vpop.xlane.xlu0 %785
    %v787 = vsel %vm624, %v699, -inf
    %788 = vmax.xlane.f32.xlu0 %v787
    %v789 = vpop.xlane.xlu0 %788
    %v790 = vsel %vm624, %v718, -inf
    %791 = vmax.xlane.f32.xlu0 %v790
    %v792 = vpop.xlane.xlu0 %791
    %v793 = vsel %vm624, %v737, -inf
    %794 = vmax.xlane.f32.xlu0 %v793
    %v795 = vpop.xlane.xlu0 %794
    %v796 = vsel %vm624, %v756, -inf
    %797 = vmax.xlane.f32.xlu0 %v796
    %v798 = vpop.xlane.xlu0 %797
    %v799 = vsel %vm624, %v775, -inf
    %800 = vmax.xlane.f32.xlu0 %v799
    %v801 = vpop.xlane.xlu0 %800
    %v802 = vsub.f32 %v642, %v780
    %v803 = vsub.f32 %v661, %v783
    %v804 = vsub.f32 %v680, %v786
    %v805 = vsub.f32 %v699, %v789
    %v806 = vsub.f32 %v718, %v792
    %v807 = vsub.f32 %v737, %v795
    %v808 = vsub.f32 %v756, %v798
    %v809 = vsub.f32 %v775, %v801
    %v810 = vmul.f32 %v802, 1.442695
    %v811 = vpow.pop %v810
    %v812 = vmul.f32 %v803, 1.442695
    %v813 = vpow.pop %v812
    %v814 = vmul.f32 %v804, 1.442695
    %v815 = vpow.pop %v814
    %v816 = vmul.f32 %v805, 1.442695
    %v817 = vpow.pop %v816
    %v818 = vmul.f32 %v806, 1.442695
    %v819 = vpow.pop %v818
    %v820 = vmul.f32 %v807, 1.442695
    %v821 = vpow.pop %v820
    %v822 = vmul.f32 %v808, 1.442695
    %v823 = vpow.pop %v822
    %v824 = vmul.f32 %v809, 1.442695
    %v825 = vpow.pop %v824
    %v826 = vsel %vm624, %v811, 0.0
    %827 = vadd.xlane.f32.xlu0 %v826
    %v828 = vpop.xlane.xlu0 %827
    %v829 = vsel %vm624, %v813, 0.0
    %830 = vadd.xlane.f32.xlu0 %v829
    %v831 = vpop.xlane.xlu0 %830
    %v832 = vsel %vm624, %v815, 0.0
    %833 = vadd.xlane.f32.xlu0 %v832
    %v834 = vpop.xlane.xlu0 %833
    %v835 = vsel %vm624, %v817, 0.0
    %836 = vadd.xlane.f32.xlu0 %v835
    %v837 = vpop.xlane.xlu0 %836
    %v838 = vsel %vm624, %v819, 0.0
    %839 = vadd.xlane.f32.xlu0 %v838
    %v840 = vpop.xlane.xlu0 %839
    %v841 = vsel %vm624, %v821, 0.0
    %842 = vadd.xlane.f32.xlu0 %v841
    %v843 = vpop.xlane.xlu0 %842
    %v844 = vsel %vm624, %v823, 0.0
    %845 = vadd.xlane.f32.xlu0 %v844
    %v846 = vpop.xlane.xlu0 %845
    %v847 = vsel %vm624, %v825, 0.0
    %848 = vadd.xlane.f32.xlu0 %v847
    %v849 = vpop.xlane.xlu0 %848
    %v850 = vrcp.pop %v828
    %v851 = vmul.f32 %v828, %v850
    %v852 = vsub.f32 1.0, %v851
    %v853 = vmul.f32 %v850, %v852
    %v854 = vadd.f32 %v850, %v853
    %vm855 = vweird.f32 %v828
    %vm856 = vweird.f32 %v850
    %vm857 = vmor %vm855, %vm856
    %v858 = vsel %vm857, %v850, %v854
    %v859 = vand.u32 2147483647, %v828
    %vm860 = vcmp.eq.f32.partialorder %v859, 8.507059e+37
    %v861 = vand.u32 %v828, 2147483648
    %v862 = vor.u32 1.1754944e-38, %v861
    %v863 = vsel %vm860, %v862, %v858
    %v864 = vmul.f32 %v811, %v863
    %v865 = vrcp.pop %v831
    %v866 = vmul.f32 %v831, %v865
    %v867 = vsub.f32 1.0, %v866
    %v868 = vmul.f32 %v865, %v867
    %v869 = vadd.f32 %v865, %v868
    %vm870 = vweird.f32 %v831
    %vm871 = vweird.f32 %v865
    %vm872 = vmor %vm870, %vm871
    %v873 = vsel %vm872, %v865, %v869
    %v874 = vand.u32 2147483647, %v831
    %vm875 = vcmp.eq.f32.partialorder %v874, 8.507059e+37
    %v876 = vand.u32 %v831, 2147483648
    %v877 = vor.u32 1.1754944e-38, %v876
    %v878 = vsel %vm875, %v877, %v873
    %v879 = vmul.f32 %v813, %v878
    %v880 = vrcp.pop %v834
    %v881 = vmul.f32 %v834, %v880
    %v882 = vsub.f32 1.0, %v881
    %v883 = vmul.f32 %v880, %v882
    %v884 = vadd.f32 %v880, %v883
    %vm885 = vweird.f32 %v834
    %vm886 = vweird.f32 %v880
    %vm887 = vmor %vm885, %vm886
    %v888 = vsel %vm887, %v880, %v884
    %v889 = vand.u32 2147483647, %v834
    %vm890 = vcmp.eq.f32.partialorder %v889, 8.507059e+37
    %v891 = vand.u32 %v834, 2147483648
    %v892 = vor.u32 1.1754944e-38, %v891
    %v893 = vsel %vm890, %v892, %v888
    %v894 = vmul.f32 %v815, %v893
    %v895 = vrcp.pop %v837
    %v896 = vmul.f32 %v837, %v895
    %v897 = vsub.f32 1.0, %v896
    %v898 = vmul.f32 %v895, %v897
    %v899 = vadd.f32 %v895, %v898
    %vm900 = vweird.f32 %v837
    %vm901 = vweird.f32 %v895
    %vm902 = vmor %vm900, %vm901
    %v903 = vsel %vm902, %v895, %v899
    %v904 = vand.u32 2147483647, %v837
    %vm905 = vcmp.eq.f32.partialorder %v904, 8.507059e+37
    %v906 = vand.u32 %v837, 2147483648
    %v907 = vor.u32 1.1754944e-38, %v906
    %v908 = vsel %vm905, %v907, %v903
    %v909 = vmul.f32 %v817, %v908
    %v910 = vrcp.pop %v840
    %v911 = vmul.f32 %v840, %v910
    %v912 = vsub.f32 1.0, %v911
    %v913 = vmul.f32 %v910, %v912
    %v914 = vadd.f32 %v910, %v913
    %vm915 = vweird.f32 %v840
    %vm916 = vweird.f32 %v910
    %vm917 = vmor %vm915, %vm916
    %v918 = vsel %vm917, %v910, %v914
    %v919 = vand.u32 2147483647, %v840
    %vm920 = vcmp.eq.f32.partialorder %v919, 8.507059e+37
    %v921 = vand.u32 %v840, 2147483648
    %v922 = vor.u32 1.1754944e-38, %v921
    %v923 = vsel %vm920, %v922, %v918
    %v924 = vmul.f32 %v819, %v923
    %v925 = vrcp.pop %v843
    %v926 = vmul.f32 %v843, %v925
    %v927 = vsub.f32 1.0, %v926
    %v928 = vmul.f32 %v925, %v927
    %v929 = vadd.f32 %v925, %v928
    %vm930 = vweird.f32 %v843
    %vm931 = vweird.f32 %v925
    %vm932 = vmor %vm930, %vm931
    %v933 = vsel %vm932, %v925, %v929
    %v934 = vand.u32 2147483647, %v843
    %vm935 = vcmp.eq.f32.partialorder %v934, 8.507059e+37
    %v936 = vand.u32 %v843, 2147483648
    %v937 = vor.u32 1.1754944e-38, %v936
    %v938 = vsel %vm935, %v937, %v933
    %v939 = vmul.f32 %v821, %v938
    %v940 = vrcp.pop %v846
    %v941 = vmul.f32 %v846, %v940
    %v942 = vsub.f32 1.0, %v941
    %v943 = vmul.f32 %v940, %v942
    %v944 = vadd.f32 %v940, %v943
    %vm945 = vweird.f32 %v846
    %vm946 = vweird.f32 %v940
    %vm947 = vmor %vm945, %vm946
    %v948 = vsel %vm947, %v940, %v944
    %v949 = vand.u32 2147483647, %v846
    %vm950 = vcmp.eq.f32.partialorder %v949, 8.507059e+37
    %v951 = vand.u32 %v846, 2147483648
    %v952 = vor.u32 1.1754944e-38, %v951
    %v953 = vsel %vm950, %v952, %v948
    %v954 = vmul.f32 %v823, %v953
    %v955 = vrcp.pop %v849
    %v956 = vmul.f32 %v849, %v955
    %v957 = vsub.f32 1.0, %v956
    %v958 = vmul.f32 %v955, %v957
    %v959 = vadd.f32 %v955, %v958
    %vm960 = vweird.f32 %v849
    %vm961 = vweird.f32 %v955
    %vm962 = vmor %vm960, %vm961
    %v963 = vsel %vm962, %v955, %v959
    %v964 = vand.u32 2147483647, %v849
    %vm965 = vcmp.eq.f32.partialorder %v964, 8.507059e+37
    %v966 = vand.u32 %v849, 2147483648
    %v967 = vor.u32 1.1754944e-38, %v966
    %v968 = vsel %vm965, %v967, %v963
    %v969 = vmul.f32 %v825, %v968
    %970 = vst.msk [vmem:[#allocation4] sm:$0xff] %vm624, %v864
    %971 = vst.msk [vmem:[#allocation4 + $0x8] sm:$0xff] %vm624, %v879
    %972 = vst.msk [vmem:[#allocation4 + $0x10] sm:$0xff] %vm624, %v894
    %973 = vst.msk [vmem:[#allocation4 + $0x18] sm:$0xff] %vm624, %v909
    %974 = vst.msk [vmem:[#allocation4 + $0x20] sm:$0xff] %vm624, %v924
    %975 = vst.msk [vmem:[#allocation4 + $0x28] sm:$0xff] %vm624, %v939
    %976 = vst.msk [vmem:[#allocation4 + $0x30] sm:$0xff] %vm624, %v954
    %977 = vst.msk [vmem:[#allocation4 + $0x38] sm:$0xff] %vm624, %v969
    %v978 = vpack.c.bf16 %v304, %v304
    %v979 = vpack.c.bf16 %v305, %v305
    %v980 = vpack.c.bf16 %v306, %v306
    %v981 = vpack.c.bf16 %v307, %v307
    %v982 = vpack.c.bf16 %v336, %v336
    %v983 = vpack.c.bf16 %v337, %v337
    %v984 = vpack.c.bf16 %v338, %v338
    %v985 = vpack.c.bf16 %v339, %v339
    %v986 = vpack.c.bf16 %v864, %v864
    %v987 = vpack.c.bf16 %v879, %v879
    %v988 = vpack.c.bf16 %v894, %v894
    %v989 = vpack.c.bf16 %v909, %v909
    %v990 = vpack.c.bf16 %v924, %v924
    %v991 = vpack.c.bf16 %v939, %v939
    %v992 = vpack.c.bf16 %v954, %v954
    %v993 = vpack.c.bf16 %v969, %v969
    %v995 = vsel %vm624, %v978, 0
    %v998 = vsel %vm624, %v986, 0
    %1000 = vmatpush.bf16.xpose.msra.mxu0 0
    %1001 = vmatpush.bf16.xpose.msra.mxu0 0
    %1002 = vmatpush.bf16.xpose.msra.mxu0 0
    %1003 = vmatpush.bf16.xpose.msra.mxu0 0
    %1004 = vmatpush.bf16.xpose.msra.mxu0 0
    %1005 = vmatpush.bf16.xpose.msra.mxu0 0
    %1006 = vmatpush.bf16.xpose.msra.mxu0 0
    %1007 = vmatpush.bf16.xpose.msra.mxu0 %v998
    %1008 = vmatmul.bf16.gmra.mxu0 %v995
    %v1009 = vpop.f32.mrf.mxu0
    %v1010 = vadd.f32 0.0, %v1009
    %v1011 = vpop.f32.mrf.mxu0
    %1012 = vdwg.mxu0
    %v1014 = vsel %vm624, %v979, 0
    %v1017 = vsel %vm624, %v987, 0
    %1019 = vmatpush.bf16.xpose.msra.mxu0 0
    %1020 = vmatpush.bf16.xpose.msra.mxu0 0
    %1021 = vmatpush.bf16.xpose.msra.mxu0 0
    %1022 = vmatpush.bf16.xpose.msra.mxu0 0
    %1023 = vmatpush.bf16.xpose.msra.mxu0 0
    %1024 = vmatpush.bf16.xpose.msra.mxu0 0
    %1025 = vmatpush.bf16.xpose.msra.mxu0 0
    %1026 = vmatpush.bf16.xpose.msra.mxu0 %v1017
    %1027 = vmatmul.bf16.gmra.mxu0 %v1014
    %v1028 = vpop.f32.mrf.mxu0
    %v1029 = vadd.f32 0.0, %v1028
    %v1030 = vpop.f32.mrf.mxu0
    %1031 = vdwg.mxu0
    %v1033 = vsel %vm624, %v980, 0
    %v1036 = vsel %vm624, %v988, 0
    %1038 = vmatpush.bf16.xpose.msra.mxu0 0
    %1039 = vmatpush.bf16.xpose.msra.mxu0 0
    %1040 = vmatpush.bf16.xpose.msra.mxu0 0
    %1041 = vmatpush.bf16.xpose.msra.mxu0 0
    %1042 = vmatpush.bf16.xpose.msra.mxu0 0
    %1043 = vmatpush.bf16.xpose.msra.mxu0 0
    %1044 = vmatpush.bf16.xpose.msra.mxu0 0
    %1045 = vmatpush.bf16.xpose.msra.mxu0 %v1036
    %1046 = vmatmul.bf16.gmra.mxu0 %v1033
    %v1047 = vpop.f32.mrf.mxu0
    %v1048 = vadd.f32 0.0, %v1047
    %v1049 = vpop.f32.mrf.mxu0
    %1050 = vdwg.mxu0
    %v1052 = vsel %vm624, %v981, 0
    %v1055 = vsel %vm624, %v989, 0
    %1057 = vmatpush.bf16.xpose.msra.mxu0 0
    %1058 = vmatpush.bf16.xpose.msra.mxu0 0
    %1059 = vmatpush.bf16.xpose.msra.mxu0 0
    %1060 = vmatpush.bf16.xpose.msra.mxu0 0
    %1061 = vmatpush.bf16.xpose.msra.mxu0 0
    %1062 = vmatpush.bf16.xpose.msra.mxu0 0
    %1063 = vmatpush.bf16.xpose.msra.mxu0 0
    %1064 = vmatpush.bf16.xpose.msra.mxu0 %v1055
    %1065 = vmatmul.bf16.gmra.mxu0 %v1052
    %v1066 = vpop.f32.mrf.mxu0
    %v1067 = vadd.f32 0.0, %v1066
    %v1068 = vpop.f32.mrf.mxu0
    %1069 = vdwg.mxu0
    %v1071 = vsel %vm624, %v982, 0
    %v1074 = vsel %vm624, %v990, 0
    %1076 = vmatpush.bf16.xpose.msra.mxu0 0
    %1077 = vmatpush.bf16.xpose.msra.mxu0 0
    %1078 = vmatpush.bf16.xpose.msra.mxu0 0
    %1079 = vmatpush.bf16.xpose.msra.mxu0 0
    %1080 = vmatpush.bf16.xpose.msra.mxu0 0
    %1081 = vmatpush.bf16.xpose.msra.mxu0 0
    %1082 = vmatpush.bf16.xpose.msra.mxu0 0
    %1083 = vmatpush.bf16.xpose.msra.mxu0 %v1074
    %1084 = vmatmul.bf16.gmra.mxu0 %v1071
    %v1085 = vpop.f32.mrf.mxu0
    %v1086 = vadd.f32 0.0, %v1085
    %v1087 = vpop.f32.mrf.mxu0
    %1088 = vdwg.mxu0
    %v1090 = vsel %vm624, %v983, 0
    %v1093 = vsel %vm624, %v991, 0
    %1095 = vmatpush.bf16.xpose.msra.mxu0 0
    %1096 = vmatpush.bf16.xpose.msra.mxu0 0
    %1097 = vmatpush.bf16.xpose.msra.mxu0 0
    %1098 = vmatpush.bf16.xpose.msra.mxu0 0
    %1099 = vmatpush.bf16.xpose.msra.mxu0 0
    %1100 = vmatpush.bf16.xpose.msra.mxu0 0
    %1101 = vmatpush.bf16.xpose.msra.mxu0 0
    %1102 = vmatpush.bf16.xpose.msra.mxu0 %v1093
    %1103 = vmatmul.bf16.gmra.mxu0 %v1090
    %v1104 = vpop.f32.mrf.mxu0
    %v1105 = vadd.f32 0.0, %v1104
    %v1106 = vpop.f32.mrf.mxu0
    %1107 = vdwg.mxu0
    %v1109 = vsel %vm624, %v984, 0
    %v1112 = vsel %vm624, %v992, 0
    %1114 = vmatpush.bf16.xpose.msra.mxu0 0
    %1115 = vmatpush.bf16.xpose.msra.mxu0 0
    %1116 = vmatpush.bf16.xpose.msra.mxu0 0
    %1117 = vmatpush.bf16.xpose.msra.mxu0 0
    %1118 = vmatpush.bf16.xpose.msra.mxu0 0
    %1119 = vmatpush.bf16.xpose.msra.mxu0 0
    %1120 = vmatpush.bf16.xpose.msra.mxu0 0
    %1121 = vmatpush.bf16.xpose.msra.mxu0 %v1112
    %1122 = vmatmul.bf16.gmra.mxu0 %v1109
    %v1123 = vpop.f32.mrf.mxu0
    %v1124 = vadd.f32 0.0, %v1123
    %v1125 = vpop.f32.mrf.mxu0
    %1126 = vdwg.mxu0
    %v1128 = vsel %vm624, %v985, 0
    %v1131 = vsel %vm624, %v993, 0
    %1133 = vmatpush.bf16.xpose.msra.mxu0 0
    %1134 = vmatpush.bf16.xpose.msra.mxu0 0
    %1135 = vmatpush.bf16.xpose.msra.mxu0 0
    %1136 = vmatpush.bf16.xpose.msra.mxu0 0
    %1137 = vmatpush.bf16.xpose.msra.mxu0 0
    %1138 = vmatpush.bf16.xpose.msra.mxu0 0
    %1139 = vmatpush.bf16.xpose.msra.mxu0 0
    %1140 = vmatpush.bf16.xpose.msra.mxu0 %v1131
    %1141 = vmatmul.bf16.gmra.mxu0 %v1128
    %v1142 = vpop.f32.mrf.mxu0
    %v1143 = vadd.f32 0.0, %v1142
    %v1144 = vpop.f32.mrf.mxu0
    %1145 = vdwg.mxu0
    %1146 = vxpose.xlu0.b32.start [1/16] %v1010, 128
    %1147 = vxpose.xlu0.b32.cont [2/16] %v1029, 128
    %1148 = vxpose.xlu0.b32.cont [3/16] %v1048, 128
    %1149 = vxpose.xlu0.b32.cont [4/16] %v1067, 128
    %1150 = vxpose.xlu0.b32.cont [5/16] 0.0, 128
    %1151 = vxpose.xlu0.b32.cont [6/16] 0.0, 128
    %1152 = vxpose.xlu0.b32.cont [7/16] 0.0, 128
    %1153 = vxpose.xlu0.b32.cont [8/16] 0.0, 128
    %1154 = vxpose.xlu0.b32.cont [9/16] 0.0, 128
    %1155 = vxpose.xlu0.b32.cont [10/16] 0.0, 128
    %1156 = vxpose.xlu0.b32.cont [11/16] 0.0, 128
    %1157 = vxpose.xlu0.b32.cont [12/16] 0.0, 128
    %1158 = vxpose.xlu0.b32.cont [13/16] 0.0, 128
    %1159 = vxpose.xlu0.b32.cont [14/16] 0.0, 128
    %1160 = vxpose.xlu0.b32.cont [15/16] 0.0, 128
    %1161 = vxpose.xlu0.b32.end [16/16] 0.0, 128
    %v1162 = vpop.trf.xlu0
    %v1163 = vpop.trf.xlu0
    %v1164 = vpop.trf.xlu0
    %v1165 = vpop.trf.xlu0
    %v1166 = vpop.trf.xlu0
    %v1167 = vpop.trf.xlu0
    %v1168 = vpop.trf.xlu0
    %v1169 = vpop.trf.xlu0
    %v1170 = vpop.trf.xlu0
    %v1171 = vpop.trf.xlu0
    %v1172 = vpop.trf.xlu0
    %v1173 = vpop.trf.xlu0
    %v1174 = vpop.trf.xlu0
    %v1175 = vpop.trf.xlu0
    %v1176 = vpop.trf.xlu0
    %v1177 = vpop.trf.xlu0
    %1178 = vxpose.xlu0.b32.start [1/16] %v1086, 128
    %1179 = vxpose.xlu0.b32.cont [2/16] %v1105, 128
    %1180 = vxpose.xlu0.b32.cont [3/16] %v1124, 128
    %1181 = vxpose.xlu0.b32.cont [4/16] %v1143, 128
    %1182 = vxpose.xlu0.b32.cont [5/16] 0.0, 128
    %1183 = vxpose.xlu0.b32.cont [6/16] 0.0, 128
    %1184 = vxpose.xlu0.b32.cont [7/16] 0.0, 128
    %1185 = vxpose.xlu0.b32.cont [8/16] 0.0, 128
    %1186 = vxpose.xlu0.b32.cont [9/16] 0.0, 128
    %1187 = vxpose.xlu0.b32.cont [10/16] 0.0, 128
    %1188 = vxpose.xlu0.b32.cont [11/16] 0.0, 128
    %1189 = vxpose.xlu0.b32.cont [12/16] 0.0, 128
    %1190 = vxpose.xlu0.b32.cont [13/16] 0.0, 128
    %1191 = vxpose.xlu0.b32.cont [14/16] 0.0, 128
    %1192 = vxpose.xlu0.b32.cont [15/16] 0.0, 128
    %1193 = vxpose.xlu0.b32.end [16/16] 0.0, 128
    %v1194 = vpop.trf.xlu0
    %v1195 = vpop.trf.xlu0
    %v1196 = vpop.trf.xlu0
    %v1197 = vpop.trf.xlu0
    %v1198 = vpop.trf.xlu0
    %v1199 = vpop.trf.xlu0
    %v1200 = vpop.trf.xlu0
    %v1201 = vpop.trf.xlu0
    %v1202 = vpop.trf.xlu0
    %v1203 = vpop.trf.xlu0
    %v1204 = vpop.trf.xlu0
    %v1205 = vpop.trf.xlu0
    %v1206 = vpop.trf.xlu0
    %v1207 = vpop.trf.xlu0
    %v1208 = vpop.trf.xlu0
    %v1209 = vpop.trf.xlu0
    %v1210 = vpack.c.bf16 %v1194, %v1162
    %v1211 = vld [vmem:[%s4] sm:$0xf]
    %v1212 = vld [vmem:[%s4 + $0x4] sm:$0xf]
    %v1213 = vld [vmem:[%s4 + $0x8] sm:$0xf]
    %v1214 = vld [vmem:[%s4 + $0xc] sm:$0xf]
    %v1215 = vld [vmem:[%s5] sm:$0x1]
    %v1217 = vperm.slane %v1215, 0
    %v1223 = vunpack.c.l.b16 %v1211
    %v1224 = vunpack.c.l.b16 %v1212
    %v1225 = vunpack.c.l.b16 %v1213
    %v1226 = vunpack.c.l.b16 %v1214
    %v1227 = vpack.c.b16 %v1224, %v1223
    %v1228 = vpack.c.b16 %v1226, %v1225
    %v1232 = vsel %vm48, %v1210, 0
    %1234 = vmatpush.bf16.msra.mxu0 0
    %1235 = vmatpush.bf16.msra.mxu0 0
    %1236 = vmatpush.bf16.msra.mxu0 0
    %1237 = vmatpush.bf16.msra.mxu0 0
    %1238 = vmatpush.bf16.msra.mxu0 0
    %1239 = vmatpush.bf16.msra.mxu0 0
    %1240 = vmatpush.bf16.msra.mxu0 %v1228
    %1241 = vmatpush.bf16.msra.mxu0 %v1227
    %1242 = vmatmul.bf16.gmra.mxu0 %v1232
    %v1243 = vpop.f32.mrf.mxu0
    %v1244 = vadd.f32 %v1217, %v1243
    %v1245 = vpop.f32.mrf.mxu0
    %v1246 = vadd.f32 %v1217, %v1245
    %1247 = vdwg.mxu0
    %v1248 = vadd.f32 %v46, %v1244
    %v1249 = vadd.f32 %v47, %v1246
    %v1250 = vsel %vm48, %v1248, 0.0
    %1251 = vadd.xlane.f32.xlu0 %v1250
    %v1252 = vpop.xlane.xlu0 %1251
    %v1253 = vsel %vm48, %v1249, 0.0
    %1254 = vadd.xlane.f32.xlu0 %v1253
    %v1255 = vpop.xlane.xlu0 %1254
    %v1256 = vmul.f32 %v1252, %v61
    %v1257 = vmul.f32 %v1255, %v61
    %v1258 = vsub.f32 %v1248, %v1256
    %v1259 = vsub.f32 %v1249, %v1257
    %v1260 = vmul.f32 %v1258, %v1258
    %v1261 = vmul.f32 %v1259, %v1259
    %v1262 = vsel %vm48, %v1260, 0.0
    %1263 = vadd.xlane.f32.xlu0 %v1262
    %v1264 = vpop.xlane.xlu0 %1263
    %v1265 = vsel %vm48, %v1261, 0.0
    %1266 = vadd.xlane.f32.xlu0 %v1265
    %v1267 = vpop.xlane.xlu0 %1266
    %v1268 = vmul.f32 %v1264, %v61
    %v1269 = vmul.f32 %v1267, %v61
    %v1270 = vadd.f32 %v1268, 1e-05
    %v1271 = vadd.f32 %v1269, 1e-05
    %v1272 = vrsqrt.pop %v1270
    %v1273 = vmul.f32 %v1272, %v1270
    %v1274 = vmul.f32 %v1273, %v1272
    %v1275 = vmul.f32 0.5, %v1274
    %v1276 = vsub.f32 1.5, %v1275
    %v1277 = vmul.f32 %v1272, %v1276
    %vm1278 = vweird.f32 %v1270
    %vm1279 = vweird.f32 %v1272
    %vm1280 = vmor %vm1278, %vm1279
    %v1281 = vsel %vm1280, %v1272, %v1277
    %v1282 = vrsqrt.pop %v1271
    %v1283 = vmul.f32 %v1282, %v1271
    %v1284 = vmul.f32 %v1283, %v1282
    %v1285 = vmul.f32 0.5, %v1284
    %v1286 = vsub.f32 1.5, %v1285
    %v1287 = vmul.f32 %v1282, %v1286
    %vm1288 = vweird.f32 %v1271
    %vm1289 = vweird.f32 %v1282
    %vm1290 = vmor %vm1288, %vm1289
    %v1291 = vsel %vm1290, %v1282, %v1287
    %v1292 = vmul.f32 %v1258, %v1281
    %v1293 = vmul.f32 %v1259, %v1291
    %v1294 = vld [vmem:[%s6] sm:$0x1]
    %v1296 = vperm.slane %v1294, 0
    %v1298 = vmul.f32 %v1292, %v1296
    %v1299 = vmul.f32 %v1293, %v1296
    %v1300 = vld [vmem:[%s7] sm:$0x1]
    %v1302 = vperm.slane %v1300, 0
    %v1304 = vadd.f32 %v1298, %v1302
    %v1305 = vadd.f32 %v1299, %v1302
    %v1306 = vpack.c.bf16 %v1305, %v1304
    %v1307 = vld [vmem:[%s8] sm:$0xf]
    %v1308 = vld [vmem:[%s8 + $0x4] sm:$0xf]
    %v1309 = vld [vmem:[%s8 + $0x8] sm:$0xf]
    %v1310 = vld [vmem:[%s8 + $0xc] sm:$0xf]
    %v1311 = vld [vmem:[%s9] sm:$0x1]
    %v1313 = vperm.slane %v1311, 0
    %v1319 = vunpack.c.l.b16 %v1307
    %v1320 = vunpack.c.l.b16 %v1308
    %v1321 = vunpack.c.l.b16 %v1309
    %v1322 = vunpack.c.l.b16 %v1310
    %v1323 = vpack.c.b16 %v1320, %v1319
    %v1324 = vpack.c.b16 %v1322, %v1321
    %v1328 = vsel %vm48, %v1306, 0
    %1330 = vmatpush.bf16.msra.mxu0 0
    %1331 = vmatpush.bf16.msra.mxu0 0
    %1332 = vmatpush.bf16.msra.mxu0 0
    %1333 = vmatpush.bf16.msra.mxu0 0
    %1334 = vmatpush.bf16.msra.mxu0 0
    %1335 = vmatpush.bf16.msra.mxu0 0
    %1336 = vmatpush.bf16.msra.mxu0 %v1324
    %1337 = vmatpush.bf16.msra.mxu0 %v1323
    %1338 = vmatmul.bf16.gmra.mxu0 %v1328
    %v1339 = vpop.f32.mrf.mxu0
    %v1340 = vadd.f32 %v1313, %v1339
    %v1341 = vpop.f32.mrf.mxu0
    %v1342 = vadd.f32 %v1313, %v1341
    %1343 = vdwg.mxu0
    %v1344 = vmul.f32 %v1340, 0.5
    %v1345 = vmul.f32 %v1342, 0.5
    %v1346 = vmul.f32 %v1340, 0.044715
    %v1347 = vmul.f32 %v1342, 0.044715
    %v1348 = vmul.f32 %v1346, %v1340
    %v1349 = vmul.f32 %v1347, %v1342
    %v1350 = vmul.f32 %v1348, %v1340
    %v1351 = vmul.f32 %v1349, %v1342
    %v1352 = vadd.f32 %v1340, %v1350
    %v1353 = vadd.f32 %v1342, %v1351
    %v1354 = vmul.f32 %v1352, 0.7978846
    %v1355 = vmul.f32 %v1353, 0.7978846
    %v1356 = vtanh.pop %v1354
    %v1357 = vtanh.pop %v1355
    %v1358 = vadd.f32 %v1356, 1.0
    %v1359 = vadd.f32 %v1357, 1.0
    %v1360 = vmul.f32 %v1344, %v1358
    %v1361 = vmul.f32 %v1345, %v1359
    %v1362 = vpack.c.bf16 %v1361, %v1360
    %v1363 = vld [vmem:[%s10] sm:$0xf]
    %v1364 = vld [vmem:[%s10 + $0x4] sm:$0xf]
    %v1365 = vld [vmem:[%s10 + $0x8] sm:$0xf]
    %v1366 = vld [vmem:[%s10 + $0xc] sm:$0xf]
    %v1367 = vld [vmem:[%s10 + $0x10] sm:$0xf]
    %v1368 = vld [vmem:[%s10 + $0x14] sm:$0xf]
    %v1369 = vld [vmem:[%s10 + $0x18] sm:$0xf]
    %v1370 = vld [vmem:[%s10 + $0x1c] sm:$0xf]
    %v1371 = vld [vmem:[%s10 + $0x20] sm:$0xf]
    %v1372 = vld [vmem:[%s10 + $0x24] sm:$0xf]
    %v1373 = vld [vmem:[%s10 + $0x28] sm:$0xf]
    %v1374 = vld [vmem:[%s10 + $0x2c] sm:$0xf]
    %v1375 = vld [vmem:[%s10 + $0x30] sm:$0xf]
    %v1376 = vld [vmem:[%s10 + $0x34] sm:$0xf]
    %v1377 = vld [vmem:[%s10 + $0x38] sm:$0xf]
    %v1378 = vld [vmem:[%s10 + $0x3c] sm:$0xf]
    %v1379 = vld [vmem:[%s11] sm:$0x1]
    %v1381 = vperm.slane %v1379, 0
    %v1399 = vunpack.c.l.b16 %v1363
    %v1400 = vunpack.c.l.b16 %v1364
    %v1401 = vunpack.c.l.b16 %v1365
    %v1402 = vunpack.c.l.b16 %v1366
    %v1403 = vunpack.c.l.b16 %v1367
    %v1404 = vunpack.c.l.b16 %v1368
    %v1405 = vunpack.c.l.b16 %v1369
    %v1406 = vunpack.c.l.b16 %v1370
    %v1407 = vunpack.c.l.b16 %v1371
    %v1408 = vunpack.c.l.b16 %v1372
    %v1409 = vunpack.c.l.b16 %v1373
    %v1410 = vunpack.c.l.b16 %v1374
    %v1411 = vunpack.c.l.b16 %v1375
    %v1412 = vunpack.c.l.b16 %v1376
    %v1413 = vunpack.c.l.b16 %v1377
    %v1414 = vunpack.c.l.b16 %v1378
    %v1415 = vpack.c.b16 %v1400, %v1399
    %v1416 = vpack.c.b16 %v1402, %v1401
    %v1417 = vpack.c.b16 %v1404, %v1403
    %v1418 = vpack.c.b16 %v1406, %v1405
    %v1419 = vpack.c.b16 %v1408, %v1407
    %v1420 = vpack.c.b16 %v1410, %v1409
    %v1421 = vpack.c.b16 %v1412, %v1411
    %v1422 = vpack.c.b16 %v1414, %v1413
    %1431 = vmatpush.bf16.msra.mxu0 %v1422
    %1432 = vmatpush.bf16.msra.mxu0 %v1421
    %1433 = vmatpush.bf16.msra.mxu0 %v1420
    %1434 = vmatpush.bf16.msra.mxu0 %v1419
    %1435 = vmatpush.bf16.msra.mxu0 %v1418
    %1436 = vmatpush.bf16.msra.mxu0 %v1417
    %1437 = vmatpush.bf16.msra.mxu0 %v1416
    %1438 = vmatpush.bf16.msra.mxu0 %v1415
    %1439 = vmatmul.bf16.gmra.mxu0 %v1362
    %v1440 = vpop.f32.mrf.mxu0
    %v1441 = vadd.f32 %v1381, %v1440
    %v1442 = vpop.f32.mrf.mxu0
    %v1443 = vadd.f32 %v1381, %v1442
    %1444 = vdwg.mxu0
    %v1445 = vadd.f32 %v1248, %v1441
    %v1446 = vadd.f32 %v1249, %v1443
    %1447 = vst.msk [vmem:[#allocation2] sm:$0xff] %vm48, %v1445
    %1448 = vst.msk [vmem:[#allocation2 + $0x8] sm:$0xff] %vm48, %v1446
    // Predicated region
    $region50: #{tpu_custom_call.1} parent=1 // pred_check
      _
    $region51: #{tpu_custom_call.1} parent=1 // pred_check_branch
      %1450 = sbr.rel (0) target = $region53
    $region52: #{tpu_custom_call.1} parent=1 // pred_region
      %1452 = vsyncadd [#allocation3], 0
      %s1453 = sshll.u32 [#allocation2], 4
      %s1454 = int_to_ptr.vmem [resolvable:$true] %s1453
      %s1455 = sshll.u32 %s12, 4
      %s1456 = int_to_ptr.hbm [resolvable:$true] %s1455
      %1461 = dma.vmem_to_hbm [thread:$0]  %s1454, 256, %s1456, [#allocation3], 128, 128, 8
    $region53: #{tpu_custom_call.1} parent=1 // pred_fallthru
      _
    // Predicated region
    $region54: #{tpu_custom_call.1} parent=1 // pred_check
      _
    $region55: #{tpu_custom_call.1} parent=1 // pred_check_branch
      %1463 = sbr.rel (0) target = $region57
    $region56: #{tpu_custom_call.1} parent=1 // pred_region
      %1465 = vsyncadd [#allocation5], 0
      %s1466 = sshll.u32 [#allocation4], 4
      %s1467 = int_to_ptr.vmem [resolvable:$true] %s1466
      %s1468 = sshll.u32 %s13, 4
      %s1469 = int_to_ptr.hbm [resolvable:$true] %s1468
      %1474 = dma.vmem_to_hbm [thread:$0]  %s1467, 1024, %s1469, [#allocation5], 128, 128, 8
    $region57: #{tpu_custom_call.1} parent=1 // pred_fallthru
      _
    // Predicated region
    $region58: #{tpu_custom_call.1} parent=1 // pred_check
      _
    $region59: #{tpu_custom_call.1} parent=1 // pred_check_branch
      %1476 = sbr.rel (0) target = $region61
    $region60: #{tpu_custom_call.1} parent=1 // pred_region
      %1478 = dma.done [#allocation3], 256
    $region61: #{tpu_custom_call.1} parent=1 // pred_fallthru
      _
    // Predicated region
    $region62: #{tpu_custom_call.1} parent=1 // pred_check
      _
    $region63: #{tpu_custom_call.1} parent=1 // pred_check_branch
      %1480 = sbr.rel (0) target = $region65
    $region64: #{tpu_custom_call.1} parent=1 // pred_region
      %1482 = dma.done [#allocation5], 1024
    $region65: #{tpu_custom_call.1} parent=1 // pred_fallthru
      _
    %1483 = vsyncpa [#allocation3], 1
    %1484 = vsyncpa [#allocation5], 1

</llo_original>
